<compile_context>
chip_gen: v7x
topology: tpu7x:2x2x1
jax: 0.10.0
libtpu: 0.0.40
codegen_flags: <defaults>
</compile_context>

<pallas_src>
import math

import jax
import jax.numpy as jnp
from jax.experimental import pallas as pl
from jax.experimental.pallas import tpu as pltpu

BN_EPS = 1e-5


# ------------------------------ Pallas kernel ------------------------------ #
def _make_fused_kernel(B, H, W):
    hp, wp = H + 2, W + 2
    n_img = B * hp * wp              # zero-padded image columns
    halo = wp + 1                    # max |column shift| of a 3x3 tap
    w1_width = n_img + 2 * halo      # block-1 output width (= block-2 input)
    inv_m = 1.0 / float(B * H * W)   # BN stats over all real pixels
    # 3x3 taps expressed as static column shifts of the flat (chan, col) slab.
    deltas = [(kh - 1) * wp + (kw - 1) for kh in range(3) for kw in range(3)]

    def conv_relu_bn(xin, mask, w_ref, g_ref, b_ref, out_w):
        """conv3x3 (9 shifted MXU matmuls) + ReLU + BatchNorm (batch stats)."""
        d0 = deltas[0]
        acc = jnp.dot(w_ref[0], xin[:, halo + d0: halo + d0 + out_w],
                      preferred_element_type=jnp.float32)
        for k in range(1, 9):
            d = deltas[k]
            acc = acc + jnp.dot(w_ref[k], xin[:, halo + d: halo + d + out_w],
                                preferred_element_type=jnp.float32)
        h = jnp.maximum(acc, 0.0) * mask           # ReLU; zero non-image columns
        # One pass for the stats: sum and sum-of-squares per channel row.
        s1 = jnp.sum(h, axis=1, keepdims=True)     # (Cout, 1)
        s2 = jnp.sum(h * h, axis=1, keepdims=True)
        mean = s1 * inv_m
        var = s2 * inv_m - mean * mean             # biased variance
        scale = g_ref[...] * jax.lax.rsqrt(var + BN_EPS)
        shift = b_ref[...] - mean * scale
        return h * scale + shift * mask            # single FMA; 0 outside image

    def kernel(t_ref, x_ref, mask_ref, w1_ref, w2_ref,
               g1_ref, b1_ref, g2_ref, b2_ref, o_ref):
        t = t_ref[0, 0]                                    # scalar from SMEM
        mask_full = mask_ref[...]                          # (1, n_img + 4*halo)
        # One-hot selector of the spare (all-zero) time-channel row.
        nrow = x_ref.shape[0]
        sel = (jax.lax.broadcasted_iota(jnp.int32, (nrow, 1), 0) == nrow - 1
               ).astype(jnp.float32)

        # ---- block 1: norm1(relu(conv1(add_time(x, t)))) ----
        x1 = x_ref[...] + sel * (t * mask_full)            # time channel in-kernel
        mask1 = mask_full[:, halo: halo + w1_width]
        h1 = conv_relu_bn(x1, mask1, w1_ref, g1_ref, b1_ref, w1_width)
        # h1 has an extra all-zero row (w1/gamma1/beta1 were zero-extended).

        # ---- block 2: norm2(relu(conv2(add_time(h, t)))) ----
        x2 = h1 + sel * (t * mask1)                        # reuse zero row for time
        mask2 = mask_full[:, 2 * halo: 2 * halo + n_img]
        o_ref[...] = conv_relu_bn(x2, mask2, w2_ref, g2_ref, b2_ref, n_img)

    return kernel


def _fused_forward(t_arr, x_ext, mask_f, w1, w2, g1, b1, g2, b2,
                   B, H, W, cout, n_img):
    kernel = _make_fused_kernel(B, H, W)
    vmem = pl.BlockSpec(memory_space=pltpu.MemorySpace.VMEM)
    smem = pl.BlockSpec(memory_space=pltpu.MemorySpace.SMEM)
    return pl.pallas_call(
        kernel,
        out_shape=jax.ShapeDtypeStruct((cout, n_img), jnp.float32),
        in_specs=[smem] + [vmem] * 8,
        out_specs=vmem,
    )(t_arr, x_ext, mask_f, w1, w2, g1, b1, g2, b2)


# -------------------------------- JAX wrapper -------------------------------- #
@jax.jit
def conv_odef_forward(x_nchw, t, params):
    """Mirrors ConvODEF.forward(x, t).  x_nchw: (B, dim, H, W); t: scalar."""
    B, cin, H, W = x_nchw.shape
    cout = params["w1"].shape[-1]
    assert cin == cout, "ConvODEF blocks map dim -> dim"
    hp, wp = H + 2, W + 2
    n_img = B * hp * wp
    halo = wp + 1

    # Layout plumbing only (tiny tensors, no im2col): channel-major, spatially
    # zero-padded, flattened columns with a 2*halo zero margin per side and one
    # spare all-zero channel row the kernel fills with the time channel.
    x = jnp.transpose(x_nchw.astype(jnp.float32), (1, 0, 2, 3))     # (C,B,H,W)
    x = jnp.pad(x, ((0, 1), (0, 0), (1, 1), (1, 1)))                # +row, +pad
    x_ext = jnp.pad(x.reshape(cin + 1, n_img), ((0, 0), (2 * halo, 2 * halo)))

    mask = jnp.pad(jnp.ones((1, B, H, W), jnp.float32),
                   ((0, 0), (0, 0), (1, 1), (1, 1)))
    mask_f = jnp.pad(mask.reshape(1, n_img), ((0, 0), (2 * halo, 2 * halo)))

    # HWIO (3,3,cin+1,cout) -> (9, cout, cin+1); w1/gamma1/beta1 get one extra
    # zero output row so block-1's result keeps a spare row for block-2's time.
    w1 = jnp.transpose(params["w1"].reshape(9, cin + 1, cout), (0, 2, 1))
    w1 = jnp.pad(w1, ((0, 0), (0, 1), (0, 0))).astype(jnp.float32)
    w2 = jnp.transpose(params["w2"].reshape(9, cin + 1, cout),
                       (0, 2, 1)).astype(jnp.float32)
    g1 = jnp.pad(params["g1"].reshape(cout, 1), ((0, 1), (0, 0))).astype(jnp.float32)
    b1 = jnp.pad(params["b1"].reshape(cout, 1), ((0, 1), (0, 0))).astype(jnp.float32)
    g2 = params["g2"].reshape(cout, 1).astype(jnp.float32)
    b2 = params["b2"].reshape(cout, 1).astype(jnp.float32)
    t_arr = jnp.asarray(t, jnp.float32).reshape(1, 1)

    out_flat = _fused_forward(t_arr, x_ext, mask_f, w1, w2, g1, b1, g2, b2,
                              B, H, W, cout, n_img)

    out = out_flat.reshape(cout, B, hp, wp)[:, :, 1:H + 1, 1:W + 1]
    return jnp.transpose(out, (1, 0, 2, 3))                          # back to NCHW


# --------------------------- deterministic parameters ------------------------ #
def init_params(key, dim):
    # Conv weights stored HWIO: (3, 3, dim+1, dim); BatchNorm affine defaults.
    k1, k2 = jax.random.split(key)
    fan_in = 9 * (dim + 1)
    bound = 1.0 / math.sqrt(fan_in)
    w1 = jax.random.uniform(k1, (3, 3, dim + 1, dim), jnp.float32, -bound, bound)
    w2 = jax.random.uniform(k2, (3, 3, dim + 1, dim), jnp.float32, -bound, bound)
    return {
        "w1": w1, "g1": jnp.ones((dim,), jnp.float32), "b1": jnp.zeros((dim,), jnp.float32),
        "w2": w2, "g2": jnp.ones((dim,), jnp.float32), "b2": jnp.zeros((dim,), jnp.float32),
    }


# ----------------------------- pure-JAX reference ---------------------------- #
def _reference_forward(x_nchw, t, params):
    def add_time(x):
        bs, _, h, w = x.shape
        return jnp.concatenate([x, jnp.full((bs, 1, h, w), t, x.dtype)], axis=1)

    def conv3x3(x, w_hwio):
        w_oihw = jnp.transpose(w_hwio, (3, 2, 0, 1))
        return jax.lax.conv_general_dilated(
            x, w_oihw, (1, 1), ((1, 1), (1, 1)),
            dimension_numbers=("NCHW", "OIHW", "NCHW"))

    def bn(x, g, b):
        mean = jnp.mean(x, axis=(0, 2, 3), keepdims=True)
        var = jnp.mean((x - mean) ** 2, axis=(0, 2, 3), keepdims=True)
        xn = (x - mean) * jax.lax.rsqrt(var + BN_EPS)
        return xn * g.reshape(1, -1, 1, 1) + b.reshape(1, -1, 1, 1)

    xt = add_time(x_nchw)
    h = bn(jax.nn.relu(conv3x3(xt, params["w1"])), params["g1"], params["b1"])
    ht = add_time(h)
    return bn(jax.nn.relu(conv3x3(ht, params["w2"])), params["g2"], params["b2"])


# ------------------------------------ main ----------------------------------- #
if __name__ == "__main__":
    key = jax.random.PRNGKey(0)
    kx, kp = jax.random.split(key)

    dim, B, H, W = 4, 2, 16, 16
    x = jax.random.normal(kx, (B, dim, H, W), jnp.float32)
    t = jnp.float32(0.5)
    params = init_params(kp, dim)

    out = jax.block_until_ready(conv_odef_forward(x, t, params))
    ref = jax.block_until_ready(_reference_forward(x, t, params))

    assert out.shape == (B, dim, H, W), out.shape
    max_err = float(jnp.max(jnp.abs(out - ref)))
    assert jnp.allclose(out, ref, atol=1e-4, rtol=1e-4), max_err
    print("KERNEL_OK")
</pallas_src>

<mosaic_0001>
module attributes {stable_mosaic.version = 11 : i64} {
  func.func @kernel(%arg0: memref<1x1xf32, #tpu.memory_space<smem>>, %arg1: memref<5x724xf32, #tpu.memory_space<vmem>>, %arg2: memref<1x724xf32, #tpu.memory_space<vmem>>, %arg3: memref<9x5x5xf32, #tpu.memory_space<vmem>>, %arg4: memref<9x4x5xf32, #tpu.memory_space<vmem>>, %arg5: memref<5x1xf32, #tpu.memory_space<vmem>>, %arg6: memref<5x1xf32, #tpu.memory_space<vmem>>, %arg7: memref<4x1xf32, #tpu.memory_space<vmem>>, %arg8: memref<4x1xf32, #tpu.memory_space<vmem>>, %arg9: memref<4x648xf32, #tpu.memory_space<vmem>>) attributes {dimension_semantics = [], scalar_prefetch = 0 : i64, scratch_operands = 0 : i64, tpu.core_type = #tpu.core_type<tc>} {
    %c0 = arith.constant 0 : index
    %c0_0 = arith.constant 0 : index
    %0 = memref.load %arg0[%c0, %c0_0] : memref<1x1xf32, #tpu.memory_space<smem>>
    %c0_1 = arith.constant 0 : index
    %c0_2 = arith.constant 0 : index
    %1 = vector.load %arg2[%c0_1, %c0_2] : memref<1x724xf32, #tpu.memory_space<vmem>>, vector<1x724xf32>
    %2 = tpu.iota {dimensions = array<i32: 0>} : vector<5x1xi32>
    %c4_i32 = arith.constant 4 : i32
    %3 = vector.broadcast %c4_i32 : i32 to vector<5x1xi32>
    %4 = arith.cmpi eq, %2, %3 : vector<5x1xi32>
    %5 = arith.extui %4 : vector<5x1xi1> to vector<5x1xi32>
    %6 = arith.sitofp %5 : vector<5x1xi32> to vector<5x1xf32>
    %c0_3 = arith.constant 0 : index
    %c0_4 = arith.constant 0 : index
    %7 = vector.load %arg1[%c0_3, %c0_4] : memref<5x724xf32, #tpu.memory_space<vmem>>, vector<5x724xf32>
    %8 = vector.broadcast %0 : f32 to vector<1x724xf32>
    %9 = arith.mulf %8, %1 : vector<1x724xf32>
    %10 = vector.broadcast %6 : vector<5x1xf32> to vector<5x724xf32>
    %11 = vector.broadcast %9 : vector<1x724xf32> to vector<5x724xf32>
    %12 = arith.mulf %10, %11 : vector<5x724xf32>
    %13 = arith.addf %7, %12 : vector<5x724xf32>
    %14 = vector.extract_strided_slice %1 {offsets = [0, 19], sizes = [1, 686], strides = [1, 1]} : vector<1x724xf32> to vector<1x686xf32>
    %c0_5 = arith.constant 0 : index
    %c0_6 = arith.constant 0 : index
    %c0_7 = arith.constant 0 : index
    %15 = vector.load %arg3[%c0_5, %c0_6, %c0_7] : memref<9x5x5xf32, #tpu.memory_space<vmem>>, vector<1x5x5xf32>
    %16 = vector.shape_cast %15 : vector<1x5x5xf32> to vector<5x5xf32>
    %17 = vector.extract_strided_slice %13 {offsets = [0, 0], sizes = [5, 686], strides = [1, 1]} : vector<5x724xf32> to vector<5x686xf32>
    %cst = arith.constant dense<0.000000e+00> : vector<5x686xf32>
    %18 = tpu.matmul %16, %17, %cst {dimension_numbers = #tpu.dot_dimension_numbers<[1], [0], [0], [1], [0, 0, 1, 1], [], []>} : vector<5x5xf32>, vector<5x686xf32>, vector<5x686xf32> -> vector<5x686xf32>
    %c1 = arith.constant 1 : index
    %c0_8 = arith.constant 0 : index
    %c0_9 = arith.constant 0 : index
    %19 = vector.load %arg3[%c1, %c0_8, %c0_9] : memref<9x5x5xf32, #tpu.memory_space<vmem>>, vector<1x5x5xf32>
    %20 = vector.shape_cast %19 : vector<1x5x5xf32> to vector<5x5xf32>
    %21 = vector.extract_strided_slice %13 {offsets = [0, 1], sizes = [5, 686], strides = [1, 1]} : vector<5x724xf32> to vector<5x686xf32>
    %cst_10 = arith.constant dense<0.000000e+00> : vector<5x686xf32>
    %22 = tpu.matmul %20, %21, %cst_10 {dimension_numbers = #tpu.dot_dimension_numbers<[1], [0], [0], [1], [0, 0, 1, 1], [], []>} : vector<5x5xf32>, vector<5x686xf32>, vector<5x686xf32> -> vector<5x686xf32>
    %23 = arith.addf %18, %22 : vector<5x686xf32>
    %c2 = arith.constant 2 : index
    %c0_11 = arith.constant 0 : index
    %c0_12 = arith.constant 0 : index
    %24 = vector.load %arg3[%c2, %c0_11, %c0_12] : memref<9x5x5xf32, #tpu.memory_space<vmem>>, vector<1x5x5xf32>
    %25 = vector.shape_cast %24 : vector<1x5x5xf32> to vector<5x5xf32>
    %26 = vector.extract_strided_slice %13 {offsets = [0, 2], sizes = [5, 686], strides = [1, 1]} : vector<5x724xf32> to vector<5x686xf32>
    %cst_13 = arith.constant dense<0.000000e+00> : vector<5x686xf32>
    %27 = tpu.matmul %25, %26, %cst_13 {dimension_numbers = #tpu.dot_dimension_numbers<[1], [0], [0], [1], [0, 0, 1, 1], [], []>} : vector<5x5xf32>, vector<5x686xf32>, vector<5x686xf32> -> vector<5x686xf32>
    %28 = arith.addf %23, %27 : vector<5x686xf32>
    %c3 = arith.constant 3 : index
    %c0_14 = arith.constant 0 : index
    %c0_15 = arith.constant 0 : index
    %29 = vector.load %arg3[%c3, %c0_14, %c0_15] : memref<9x5x5xf32, #tpu.memory_space<vmem>>, vector<1x5x5xf32>
    %30 = vector.shape_cast %29 : vector<1x5x5xf32> to vector<5x5xf32>
    %31 = vector.extract_strided_slice %13 {offsets = [0, 18], sizes = [5, 686], strides = [1, 1]} : vector<5x724xf32> to vector<5x686xf32>
    %cst_16 = arith.constant dense<0.000000e+00> : vector<5x686xf32>
    %32 = tpu.matmul %30, %31, %cst_16 {dimension_numbers = #tpu.dot_dimension_numbers<[1], [0], [0], [1], [0, 0, 1, 1], [], []>} : vector<5x5xf32>, vector<5x686xf32>, vector<5x686xf32> -> vector<5x686xf32>
    %33 = arith.addf %28, %32 : vector<5x686xf32>
    %c4 = arith.constant 4 : index
    %c0_17 = arith.constant 0 : index
    %c0_18 = arith.constant 0 : index
    %34 = vector.load %arg3[%c4, %c0_17, %c0_18] : memref<9x5x5xf32, #tpu.memory_space<vmem>>, vector<1x5x5xf32>
    %35 = vector.shape_cast %34 : vector<1x5x5xf32> to vector<5x5xf32>
    %36 = vector.extract_strided_slice %13 {offsets = [0, 19], sizes = [5, 686], strides = [1, 1]} : vector<5x724xf32> to vector<5x686xf32>
    %cst_19 = arith.constant dense<0.000000e+00> : vector<5x686xf32>
    %37 = tpu.matmul %35, %36, %cst_19 {dimension_numbers = #tpu.dot_dimension_numbers<[1], [0], [0], [1], [0, 0, 1, 1], [], []>} : vector<5x5xf32>, vector<5x686xf32>, vector<5x686xf32> -> vector<5x686xf32>
    %38 = arith.addf %33, %37 : vector<5x686xf32>
    %c5 = arith.constant 5 : index
    %c0_20 = arith.constant 0 : index
    %c0_21 = arith.constant 0 : index
    %39 = vector.load %arg3[%c5, %c0_20, %c0_21] : memref<9x5x5xf32, #tpu.memory_space<vmem>>, vector<1x5x5xf32>
    %40 = vector.shape_cast %39 : vector<1x5x5xf32> to vector<5x5xf32>
    %41 = vector.extract_strided_slice %13 {offsets = [0, 20], sizes = [5, 686], strides = [1, 1]} : vector<5x724xf32> to vector<5x686xf32>
    %cst_22 = arith.constant dense<0.000000e+00> : vector<5x686xf32>
    %42 = tpu.matmul %40, %41, %cst_22 {dimension_numbers = #tpu.dot_dimension_numbers<[1], [0], [0], [1], [0, 0, 1, 1], [], []>} : vector<5x5xf32>, vector<5x686xf32>, vector<5x686xf32> -> vector<5x686xf32>
    %43 = arith.addf %38, %42 : vector<5x686xf32>
    %c6 = arith.constant 6 : index
    %c0_23 = arith.constant 0 : index
    %c0_24 = arith.constant 0 : index
    %44 = vector.load %arg3[%c6, %c0_23, %c0_24] : memref<9x5x5xf32, #tpu.memory_space<vmem>>, vector<1x5x5xf32>
    %45 = vector.shape_cast %44 : vector<1x5x5xf32> to vector<5x5xf32>
    %46 = vector.extract_strided_slice %13 {offsets = [0, 36], sizes = [5, 686], strides = [1, 1]} : vector<5x724xf32> to vector<5x686xf32>
    %cst_25 = arith.constant dense<0.000000e+00> : vector<5x686xf32>
    %47 = tpu.matmul %45, %46, %cst_25 {dimension_numbers = #tpu.dot_dimension_numbers<[1], [0], [0], [1], [0, 0, 1, 1], [], []>} : vector<5x5xf32>, vector<5x686xf32>, vector<5x686xf32> -> vector<5x686xf32>
    %48 = arith.addf %43, %47 : vector<5x686xf32>
    %c7 = arith.constant 7 : index
    %c0_26 = arith.constant 0 : index
    %c0_27 = arith.constant 0 : index
    %49 = vector.load %arg3[%c7, %c0_26, %c0_27] : memref<9x5x5xf32, #tpu.memory_space<vmem>>, vector<1x5x5xf32>
    %50 = vector.shape_cast %49 : vector<1x5x5xf32> to vector<5x5xf32>
    %51 = vector.extract_strided_slice %13 {offsets = [0, 37], sizes = [5, 686], strides = [1, 1]} : vector<5x724xf32> to vector<5x686xf32>
    %cst_28 = arith.constant dense<0.000000e+00> : vector<5x686xf32>
    %52 = tpu.matmul %50, %51, %cst_28 {dimension_numbers = #tpu.dot_dimension_numbers<[1], [0], [0], [1], [0, 0, 1, 1], [], []>} : vector<5x5xf32>, vector<5x686xf32>, vector<5x686xf32> -> vector<5x686xf32>
    %53 = arith.addf %48, %52 : vector<5x686xf32>
    %c8 = arith.constant 8 : index
    %c0_29 = arith.constant 0 : index
    %c0_30 = arith.constant 0 : index
    %54 = vector.load %arg3[%c8, %c0_29, %c0_30] : memref<9x5x5xf32, #tpu.memory_space<vmem>>, vector<1x5x5xf32>
    %55 = vector.shape_cast %54 : vector<1x5x5xf32> to vector<5x5xf32>
    %56 = vector.extract_strided_slice %13 {offsets = [0, 38], sizes = [5, 686], strides = [1, 1]} : vector<5x724xf32> to vector<5x686xf32>
    %cst_31 = arith.constant dense<0.000000e+00> : vector<5x686xf32>
    %57 = tpu.matmul %55, %56, %cst_31 {dimension_numbers = #tpu.dot_dimension_numbers<[1], [0], [0], [1], [0, 0, 1, 1], [], []>} : vector<5x5xf32>, vector<5x686xf32>, vector<5x686xf32> -> vector<5x686xf32>
    %58 = arith.addf %53, %57 : vector<5x686xf32>
    %cst_32 = arith.constant 0.000000e+00 : f32
    %59 = vector.broadcast %cst_32 : f32 to vector<5x686xf32>
    %60 = arith.maximumf %58, %59 : vector<5x686xf32>
    %61 = vector.broadcast %14 : vector<1x686xf32> to vector<5x686xf32>
    %62 = arith.mulf %60, %61 : vector<5x686xf32>
    %cst_33 = arith.constant dense<0.000000e+00> : vector<5xf32>
    %63 = vector.multi_reduction <add>, %62, %cst_33 [1] : vector<5x686xf32> to vector<5xf32>
    %64 = vector.shape_cast %63 : vector<5xf32> to vector<5x1xf32>
    %65 = arith.mulf %62, %62 : vector<5x686xf32>
    %cst_34 = arith.constant dense<0.000000e+00> : vector<5xf32>
    %66 = vector.multi_reduction <add>, %65, %cst_34 [1] : vector<5x686xf32> to vector<5xf32>
    %67 = vector.shape_cast %66 : vector<5xf32> to vector<5x1xf32>
    %cst_35 = arith.constant 0.001953125 : f32
    %68 = vector.broadcast %cst_35 : f32 to vector<5x1xf32>
    %69 = arith.mulf %64, %68 : vector<5x1xf32>
    %cst_36 = arith.constant 0.001953125 : f32
    %70 = vector.broadcast %cst_36 : f32 to vector<5x1xf32>
    %71 = arith.mulf %67, %70 : vector<5x1xf32>
    %72 = arith.mulf %69, %69 : vector<5x1xf32>
    %73 = arith.subf %71, %72 : vector<5x1xf32>
    %c0_37 = arith.constant 0 : index
    %c0_38 = arith.constant 0 : index
    %74 = vector.load %arg5[%c0_37, %c0_38] : memref<5x1xf32, #tpu.memory_space<vmem>>, vector<5x1xf32>
    %cst_39 = arith.constant 9.99999974E-6 : f32
    %75 = vector.broadcast %cst_39 : f32 to vector<5x1xf32>
    %76 = arith.addf %73, %75 : vector<5x1xf32>
    %77 = math.rsqrt %76 : vector<5x1xf32>
    %78 = arith.mulf %74, %77 : vector<5x1xf32>
    %c0_40 = arith.constant 0 : index
    %c0_41 = arith.constant 0 : index
    %79 = vector.load %arg6[%c0_40, %c0_41] : memref<5x1xf32, #tpu.memory_space<vmem>>, vector<5x1xf32>
    %80 = arith.mulf %69, %78 : vector<5x1xf32>
    %81 = arith.subf %79, %80 : vector<5x1xf32>
    %82 = vector.broadcast %78 : vector<5x1xf32> to vector<5x686xf32>
    %83 = arith.mulf %62, %82 : vector<5x686xf32>
    %84 = vector.broadcast %81 : vector<5x1xf32> to vector<5x686xf32>
    %85 = vector.broadcast %14 : vector<1x686xf32> to vector<5x686xf32>
    %86 = arith.mulf %84, %85 : vector<5x686xf32>
    %87 = arith.addf %83, %86 : vector<5x686xf32>
    %88 = vector.broadcast %0 : f32 to vector<1x686xf32>
    %89 = arith.mulf %88, %14 : vector<1x686xf32>
    %90 = vector.broadcast %6 : vector<5x1xf32> to vector<5x686xf32>
    %91 = vector.broadcast %89 : vector<1x686xf32> to vector<5x686xf32>
    %92 = arith.mulf %90, %91 : vector<5x686xf32>
    %93 = arith.addf %87, %92 : vector<5x686xf32>
    %94 = vector.extract_strided_slice %1 {offsets = [0, 38], sizes = [1, 648], strides = [1, 1]} : vector<1x724xf32> to vector<1x648xf32>
    %c0_42 = arith.constant 0 : index
    %c0_43 = arith.constant 0 : index
    %c0_44 = arith.constant 0 : index
    %95 = vector.load %arg4[%c0_42, %c0_43, %c0_44] : memref<9x4x5xf32, #tpu.memory_space<vmem>>, vector<1x4x5xf32>
    %96 = vector.shape_cast %95 : vector<1x4x5xf32> to vector<4x5xf32>
    %97 = vector.extract_strided_slice %93 {offsets = [0, 0], sizes = [5, 648], strides = [1, 1]} : vector<5x686xf32> to vector<5x648xf32>
    %cst_45 = arith.constant dense<0.000000e+00> : vector<4x648xf32>
    %98 = tpu.matmul %96, %97, %cst_45 {dimension_numbers = #tpu.dot_dimension_numbers<[1], [0], [0], [1], [0, 0, 1, 1], [], []>} : vector<4x5xf32>, vector<5x648xf32>, vector<4x648xf32> -> vector<4x648xf32>
    %c1_46 = arith.constant 1 : index
    %c0_47 = arith.constant 0 : index
    %c0_48 = arith.constant 0 : index
    %99 = vector.load %arg4[%c1_46, %c0_47, %c0_48] : memref<9x4x5xf32, #tpu.memory_space<vmem>>, vector<1x4x5xf32>
    %100 = vector.shape_cast %99 : vector<1x4x5xf32> to vector<4x5xf32>
    %101 = vector.extract_strided_slice %93 {offsets = [0, 1], sizes = [5, 648], strides = [1, 1]} : vector<5x686xf32> to vector<5x648xf32>
    %cst_49 = arith.constant dense<0.000000e+00> : vector<4x648xf32>
    %102 = tpu.matmul %100, %101, %cst_49 {dimension_numbers = #tpu.dot_dimension_numbers<[1], [0], [0], [1], [0, 0, 1, 1], [], []>} : vector<4x5xf32>, vector<5x648xf32>, vector<4x648xf32> -> vector<4x648xf32>
    %103 = arith.addf %98, %102 : vector<4x648xf32>
    %c2_50 = arith.constant 2 : index
    %c0_51 = arith.constant 0 : index
    %c0_52 = arith.constant 0 : index
    %104 = vector.load %arg4[%c2_50, %c0_51, %c0_52] : memref<9x4x5xf32, #tpu.memory_space<vmem>>, vector<1x4x5xf32>
    %105 = vector.shape_cast %104 : vector<1x4x5xf32> to vector<4x5xf32>
    %106 = vector.extract_strided_slice %93 {offsets = [0, 2], sizes = [5, 648], strides = [1, 1]} : vector<5x686xf32> to vector<5x648xf32>
    %cst_53 = arith.constant dense<0.000000e+00> : vector<4x648xf32>
    %107 = tpu.matmul %105, %106, %cst_53 {dimension_numbers = #tpu.dot_dimension_numbers<[1], [0], [0], [1], [0, 0, 1, 1], [], []>} : vector<4x5xf32>, vector<5x648xf32>, vector<4x648xf32> -> vector<4x648xf32>
    %108 = arith.addf %103, %107 : vector<4x648xf32>
    %c3_54 = arith.constant 3 : index
    %c0_55 = arith.constant 0 : index
    %c0_56 = arith.constant 0 : index
    %109 = vector.load %arg4[%c3_54, %c0_55, %c0_56] : memref<9x4x5xf32, #tpu.memory_space<vmem>>, vector<1x4x5xf32>
    %110 = vector.shape_cast %109 : vector<1x4x5xf32> to vector<4x5xf32>
    %111 = vector.extract_strided_slice %93 {offsets = [0, 18], sizes = [5, 648], strides = [1, 1]} : vector<5x686xf32> to vector<5x648xf32>
    %cst_57 = arith.constant dense<0.000000e+00> : vector<4x648xf32>
    %112 = tpu.matmul %110, %111, %cst_57 {dimension_numbers = #tpu.dot_dimension_numbers<[1], [0], [0], [1], [0, 0, 1, 1], [], []>} : vector<4x5xf32>, vector<5x648xf32>, vector<4x648xf32> -> vector<4x648xf32>
    %113 = arith.addf %108, %112 : vector<4x648xf32>
    %c4_58 = arith.constant 4 : index
    %c0_59 = arith.constant 0 : index
    %c0_60 = arith.constant 0 : index
    %114 = vector.load %arg4[%c4_58, %c0_59, %c0_60] : memref<9x4x5xf32, #tpu.memory_space<vmem>>, vector<1x4x5xf32>
    %115 = vector.shape_cast %114 : vector<1x4x5xf32> to vector<4x5xf32>
    %116 = vector.extract_strided_slice %93 {offsets = [0, 19], sizes = [5, 648], strides = [1, 1]} : vector<5x686xf32> to vector<5x648xf32>
    %cst_61 = arith.constant dense<0.000000e+00> : vector<4x648xf32>
    %117 = tpu.matmul %115, %116, %cst_61 {dimension_numbers = #tpu.dot_dimension_numbers<[1], [0], [0], [1], [0, 0, 1, 1], [], []>} : vector<4x5xf32>, vector<5x648xf32>, vector<4x648xf32> -> vector<4x648xf32>
    %118 = arith.addf %113, %117 : vector<4x648xf32>
    %c5_62 = arith.constant 5 : index
    %c0_63 = arith.constant 0 : index
    %c0_64 = arith.constant 0 : index
    %119 = vector.load %arg4[%c5_62, %c0_63, %c0_64] : memref<9x4x5xf32, #tpu.memory_space<vmem>>, vector<1x4x5xf32>
    %120 = vector.shape_cast %119 : vector<1x4x5xf32> to vector<4x5xf32>
    %121 = vector.extract_strided_slice %93 {offsets = [0, 20], sizes = [5, 648], strides = [1, 1]} : vector<5x686xf32> to vector<5x648xf32>
    %cst_65 = arith.constant dense<0.000000e+00> : vector<4x648xf32>
    %122 = tpu.matmul %120, %121, %cst_65 {dimension_numbers = #tpu.dot_dimension_numbers<[1], [0], [0], [1], [0, 0, 1, 1], [], []>} : vector<4x5xf32>, vector<5x648xf32>, vector<4x648xf32> -> vector<4x648xf32>
    %123 = arith.addf %118, %122 : vector<4x648xf32>
    %c6_66 = arith.constant 6 : index
    %c0_67 = arith.constant 0 : index
    %c0_68 = arith.constant 0 : index
    %124 = vector.load %arg4[%c6_66, %c0_67, %c0_68] : memref<9x4x5xf32, #tpu.memory_space<vmem>>, vector<1x4x5xf32>
    %125 = vector.shape_cast %124 : vector<1x4x5xf32> to vector<4x5xf32>
    %126 = vector.extract_strided_slice %93 {offsets = [0, 36], sizes = [5, 648], strides = [1, 1]} : vector<5x686xf32> to vector<5x648xf32>
    %cst_69 = arith.constant dense<0.000000e+00> : vector<4x648xf32>
    %127 = tpu.matmul %125, %126, %cst_69 {dimension_numbers = #tpu.dot_dimension_numbers<[1], [0], [0], [1], [0, 0, 1, 1], [], []>} : vector<4x5xf32>, vector<5x648xf32>, vector<4x648xf32> -> vector<4x648xf32>
    %128 = arith.addf %123, %127 : vector<4x648xf32>
    %c7_70 = arith.constant 7 : index
    %c0_71 = arith.constant 0 : index
    %c0_72 = arith.constant 0 : index
    %129 = vector.load %arg4[%c7_70, %c0_71, %c0_72] : memref<9x4x5xf32, #tpu.memory_space<vmem>>, vector<1x4x5xf32>
    %130 = vector.shape_cast %129 : vector<1x4x5xf32> to vector<4x5xf32>
    %131 = vector.extract_strided_slice %93 {offsets = [0, 37], sizes = [5, 648], strides = [1, 1]} : vector<5x686xf32> to vector<5x648xf32>
    %cst_73 = arith.constant dense<0.000000e+00> : vector<4x648xf32>
    %132 = tpu.matmul %130, %131, %cst_73 {dimension_numbers = #tpu.dot_dimension_numbers<[1], [0], [0], [1], [0, 0, 1, 1], [], []>} : vector<4x5xf32>, vector<5x648xf32>, vector<4x648xf32> -> vector<4x648xf32>
    %133 = arith.addf %128, %132 : vector<4x648xf32>
    %c8_74 = arith.constant 8 : index
    %c0_75 = arith.constant 0 : index
    %c0_76 = arith.constant 0 : index
    %134 = vector.load %arg4[%c8_74, %c0_75, %c0_76] : memref<9x4x5xf32, #tpu.memory_space<vmem>>, vector<1x4x5xf32>
    %135 = vector.shape_cast %134 : vector<1x4x5xf32> to vector<4x5xf32>
    %136 = vector.extract_strided_slice %93 {offsets = [0, 38], sizes = [5, 648], strides = [1, 1]} : vector<5x686xf32> to vector<5x648xf32>
    %cst_77 = arith.constant dense<0.000000e+00> : vector<4x648xf32>
    %137 = tpu.matmul %135, %136, %cst_77 {dimension_numbers = #tpu.dot_dimension_numbers<[1], [0], [0], [1], [0, 0, 1, 1], [], []>} : vector<4x5xf32>, vector<5x648xf32>, vector<4x648xf32> -> vector<4x648xf32>
    %138 = arith.addf %133, %137 : vector<4x648xf32>
    %cst_78 = arith.constant 0.000000e+00 : f32
    %139 = vector.broadcast %cst_78 : f32 to vector<4x648xf32>
    %140 = arith.maximumf %138, %139 : vector<4x648xf32>
    %141 = vector.broadcast %94 : vector<1x648xf32> to vector<4x648xf32>
    %142 = arith.mulf %140, %141 : vector<4x648xf32>
    %cst_79 = arith.constant dense<0.000000e+00> : vector<4xf32>
    %143 = vector.multi_reduction <add>, %142, %cst_79 [1] : vector<4x648xf32> to vector<4xf32>
    %144 = vector.shape_cast %143 : vector<4xf32> to vector<4x1xf32>
    %145 = arith.mulf %142, %142 : vector<4x648xf32>
    %cst_80 = arith.constant dense<0.000000e+00> : vector<4xf32>
    %146 = vector.multi_reduction <add>, %145, %cst_80 [1] : vector<4x648xf32> to vector<4xf32>
    %147 = vector.shape_cast %146 : vector<4xf32> to vector<4x1xf32>
    %cst_81 = arith.constant 0.001953125 : f32
    %148 = vector.broadcast %cst_81 : f32 to vector<4x1xf32>
    %149 = arith.mulf %144, %148 : vector<4x1xf32>
    %cst_82 = arith.constant 0.001953125 : f32
    %150 = vector.broadcast %cst_82 : f32 to vector<4x1xf32>
    %151 = arith.mulf %147, %150 : vector<4x1xf32>
    %152 = arith.mulf %149, %149 : vector<4x1xf32>
    %153 = arith.subf %151, %152 : vector<4x1xf32>
    %c0_83 = arith.constant 0 : index
    %c0_84 = arith.constant 0 : index
    %154 = vector.load %arg7[%c0_83, %c0_84] : memref<4x1xf32, #tpu.memory_space<vmem>>, vector<4x1xf32>
    %cst_85 = arith.constant 9.99999974E-6 : f32
    %155 = vector.broadcast %cst_85 : f32 to vector<4x1xf32>
    %156 = arith.addf %153, %155 : vector<4x1xf32>
    %157 = math.rsqrt %156 : vector<4x1xf32>
    %158 = arith.mulf %154, %157 : vector<4x1xf32>
    %c0_86 = arith.constant 0 : index
    %c0_87 = arith.constant 0 : index
    %159 = vector.load %arg8[%c0_86, %c0_87] : memref<4x1xf32, #tpu.memory_space<vmem>>, vector<4x1xf32>
    %160 = arith.mulf %149, %158 : vector<4x1xf32>
    %161 = arith.subf %159, %160 : vector<4x1xf32>
    %162 = vector.broadcast %158 : vector<4x1xf32> to vector<4x648xf32>
    %163 = arith.mulf %142, %162 : vector<4x648xf32>
    %164 = vector.broadcast %161 : vector<4x1xf32> to vector<4x648xf32>
    %165 = vector.broadcast %94 : vector<1x648xf32> to vector<4x648xf32>
    %166 = arith.mulf %164, %165 : vector<4x648xf32>
    %167 = arith.addf %163, %166 : vector<4x648xf32>
    %c0_88 = arith.constant 0 : index
    %c0_89 = arith.constant 0 : index
    %168 = vector.load %arg9[%c0_88, %c0_89] : memref<4x648xf32, #tpu.memory_space<vmem>>, vector<4x648xf32>
    tpu.vector_store %arg9[%c0_88, %c0_89], %167 {strides = array<i32>} : memref<4x648xf32, #tpu.memory_space<vmem>>, vector<4x648xf32>,
    return
  }
}

</mosaic_0001>

<llo_original>
// kernel: conv_odef_forward.1
$region0: #{conv_odef_forward.1}
  #allocation0 [shape = 'u32[]', space=smem, size = 0x4, offset = 0x4, fixed_abs, tag = 'smem constant byte address 0x4 - core index']
  #allocation1 [shape = 'u32[144,128]{1,0:T(1,128)}', space=vmem, size = 0x12000, scoped, tag = 'internal scratch']
  #allocation2 [shape = 'f32[1,1]{1,0:T(1,128)S(6)}', space=smem, size = 0x200, scoped, tag = 'scoped memory for conv_odef_forward.1']
  %s0 = inlined_call_operand.<no memory space> [shape: f32[1,1], index: 0, kind: input, shape index: {}]
  %s1 = inlined_call_operand.vmem [shape: f32[5,724], index: 1, kind: input, shape index: {}]
  %s2 = inlined_call_operand.vmem [shape: f32[1,724], index: 2, kind: input, shape index: {}]
  %s3 = inlined_call_operand.vmem [shape: f32[9,5,5], index: 3, kind: input, shape index: {}]
  %s4 = inlined_call_operand.vmem [shape: f32[9,4,5], index: 4, kind: input, shape index: {}]
  %s5 = inlined_call_operand.vmem [shape: f32[5,1], index: 5, kind: input, shape index: {}]
  %s6 = inlined_call_operand.vmem [shape: f32[5,1], index: 6, kind: input, shape index: {}]
  %s7 = inlined_call_operand.vmem [shape: f32[4,1], index: 7, kind: input, shape index: {}]
  %s8 = inlined_call_operand.vmem [shape: f32[4,1], index: 8, kind: input, shape index: {}]
  %s9 = inlined_call_operand.vmem [shape: f32[4,648], index: 9, kind: output, shape index: {}]
  %s10 = sld [smem:[#allocation0]]
  $region46: #{conv_odef_forward.1} parent=0
    _
  %s12 = ssub.s32 1, %s10
  %s13 = scalar_select 0, %s12, %s10
  %14 = sst [smem:[#allocation2]] %s0
  // Predicated region
  $region2: #{conv_odef_forward.1} parent=0 // pred_check
    _
  $region3: #{conv_odef_forward.1} parent=0 // pred_check_branch
    %16 = sbr.rel (0) target = $region5
  $region4: #{conv_odef_forward.1} parent=0 // pred_region
    _
  $region5: #{conv_odef_forward.1} parent=0 // pred_fallthru
    _
  // Predicated region
  $region6: #{conv_odef_forward.1} parent=0 // pred_check
    _
  $region7: #{conv_odef_forward.1} parent=0 // pred_check_branch
    %18 = sbr.rel (0) target = $region9
  $region8: #{conv_odef_forward.1} parent=0 // pred_region
    _
  $region9: #{conv_odef_forward.1} parent=0 // pred_fallthru
    _
  // Predicated region
  $region10: #{conv_odef_forward.1} parent=0 // pred_check
    _
  $region11: #{conv_odef_forward.1} parent=0 // pred_check_branch
    %20 = sbr.rel (0) target = $region13
  $region12: #{conv_odef_forward.1} parent=0 // pred_region
    _
  $region13: #{conv_odef_forward.1} parent=0 // pred_fallthru
    _
  // Predicated region
  $region14: #{conv_odef_forward.1} parent=0 // pred_check
    _
  $region15: #{conv_odef_forward.1} parent=0 // pred_check_branch
    %22 = sbr.rel (0) target = $region17
  $region16: #{conv_odef_forward.1} parent=0 // pred_region
    _
  $region17: #{conv_odef_forward.1} parent=0 // pred_fallthru
    _
  // Predicated region
  $region18: #{conv_odef_forward.1} parent=0 // pred_check
    _
  $region19: #{conv_odef_forward.1} parent=0 // pred_check_branch
    %24 = sbr.rel (0) target = $region21
  $region20: #{conv_odef_forward.1} parent=0 // pred_region
    _
  $region21: #{conv_odef_forward.1} parent=0 // pred_fallthru
    _
  // Predicated region
  $region22: #{conv_odef_forward.1} parent=0 // pred_check
    _
  $region23: #{conv_odef_forward.1} parent=0 // pred_check_branch
    %26 = sbr.rel (0) target = $region25
  $region24: #{conv_odef_forward.1} parent=0 // pred_region
    _
  $region25: #{conv_odef_forward.1} parent=0 // pred_fallthru
    _
  // Predicated region
  $region26: #{conv_odef_forward.1} parent=0 // pred_check
    _
  $region27: #{conv_odef_forward.1} parent=0 // pred_check_branch
    %28 = sbr.rel (0) target = $region29
  $region28: #{conv_odef_forward.1} parent=0 // pred_region
    _
  $region29: #{conv_odef_forward.1} parent=0 // pred_fallthru
    _
  // Predicated region
  $region30: #{conv_odef_forward.1} parent=0 // pred_check
    _
  $region31: #{conv_odef_forward.1} parent=0 // pred_check_branch
    %30 = sbr.rel (0) target = $region33
  $region32: #{conv_odef_forward.1} parent=0 // pred_region
    _
  $region33: #{conv_odef_forward.1} parent=0 // pred_fallthru
    _
  // Predicated region
  $region34: #{conv_odef_forward.1} parent=0 // pred_check
    _
  $region35: #{conv_odef_forward.1} parent=0 // pred_check_branch
    %32 = sbr.rel (0) target = $region37
  $region36: #{conv_odef_forward.1} parent=0 // pred_region
    _
  $region37: #{conv_odef_forward.1} parent=0 // pred_fallthru
    _
  %s33 = sld [smem:[#allocation2]]
  %v34 = vld [vmem:[%s2] sm:$0x3f]
  %v35 = vlaneseq
  %v36 = vshrl.u32 %v35, 7
  %vm37 = vcmp.eq.s32.totalorder %v36, 4
  %v38 = vsel %vm37, 1, 0
  %v39 = vcvt.s32.f32 %v38
  %v40 = vld [vmem:[%s1] sm:$0x1f]
  %v41 = vld [vmem:[%s1 + $0x8] sm:$0x1f]
  %v42 = vld [vmem:[%s1 + $0x10] sm:$0x1f]
  %v43 = vld [vmem:[%s1 + $0x18] sm:$0x1f]
  %v44 = vld [vmem:[%s1 + $0x20] sm:$0x1f]
  %v45 = vld [vmem:[%s1 + $0x28] sm:$0x1f]
  %v46 = vstv %s33
  %v47 = vmul.f32 %v46, %v34
  %v49 = vlaneseq
  %v50 = vshrl.u32 %v49, 7
  %v51 = vsub.s32 0, %v50
  %v52 = vrot.slane %v47, %v51
  %v53 = vlaneseq
  %v54 = vshrl.u32 %v53, 7
  %v55 = vsub.s32 1, %v54
  %v56 = vrot.slane %v47, %v55
  %v57 = vlaneseq
  %v58 = vshrl.u32 %v57, 7
  %v59 = vsub.s32 2, %v58
  %v60 = vrot.slane %v47, %v59
  %v61 = vlaneseq
  %v62 = vshrl.u32 %v61, 7
  %v63 = vsub.s32 3, %v62
  %v64 = vrot.slane %v47, %v63
  %v65 = vlaneseq
  %v66 = vshrl.u32 %v65, 7
  %v67 = vsub.s32 4, %v66
  %v68 = vrot.slane %v47, %v67
  %v69 = vlaneseq
  %v70 = vshrl.u32 %v69, 7
  %v71 = vsub.s32 5, %v70
  %v72 = vrot.slane %v47, %v71
  %v79 = vmul.f32 %v39, %v52
  %v80 = vmul.f32 %v39, %v56
  %v81 = vmul.f32 %v39, %v60
  %v82 = vmul.f32 %v39, %v64
  %v83 = vmul.f32 %v39, %v68
  %v84 = vmul.f32 %v39, %v72
  %v85 = vadd.f32 %v40, %v79
  %v86 = vadd.f32 %v41, %v80
  %v87 = vadd.f32 %v42, %v81
  %v88 = vadd.f32 %v43, %v82
  %v89 = vadd.f32 %v44, %v83
  %v90 = vadd.f32 %v45, %v84
  %v91 = vld [vmem:[%s3] sm:$0x1f]
  %s92 = scalar_lea.vmem %s3, 8
  %v93 = vld [vmem:[%s92] sm:$0x1f]
  %100 = vrot.lane.b32.xlu0 %v85, 127
  %v101 = vpop.permute.xlu0 %100
  %102 = vrot.lane.b32.xlu0 %v86, 127
  %v103 = vpop.permute.xlu0 %102
  %104 = vrot.lane.b32.xlu0 %v87, 127
  %v105 = vpop.permute.xlu0 %104
  %106 = vrot.lane.b32.xlu0 %v88, 127
  %v107 = vpop.permute.xlu0 %106
  %108 = vrot.lane.b32.xlu0 %v89, 127
  %v109 = vpop.permute.xlu0 %108
  %110 = vrot.lane.b32.xlu0 %v90, 127
  %v111 = vpop.permute.xlu0 %110
  %vm112 = vcmask 1039360
  %v113 = vsel %vm112, %v101, %v103
  %v114 = vsel %vm112, %v103, %v105
  %v115 = vsel %vm112, %v105, %v107
  %v116 = vsel %vm112, %v107, %v109
  %v117 = vsel %vm112, %v109, %v111
  %vm118 = vcmask 39936
  %v120 = vsel %vm118, %v93, 0
  %vm122 = vcmask 1044480
  %v123 = vsel %vm122, %v113, 0
  %v125 = vsel %vm122, %v114, 0
  %v127 = vsel %vm122, %v115, 0
  %v129 = vsel %vm122, %v116, 0
  %v131 = vsel %vm122, %v117, 0
  %v133 = vsel %vm122, %v111, 0
  %135 = vmatprep.subr.mxu0 %v125
  %136 = vmatpush1.msra.mxu0 %v123
  %137 = vmatprep.subr.mxu0 0.0
  %138 = vmatpush1.msra.mxu0 0.0
  %139 = vmatprep.subr.mxu0 0.0
  %140 = vmatpush1.msra.mxu0 0.0
  %141 = vmatprep.subr.mxu0 0.0
  %142 = vmatpush1.msra.mxu0 0.0
  %143 = vmatprep.subr.mxu0 0.0
  %144 = vmatpush1.msra.mxu0 0.0
  %145 = vmatprep.subr.mxu0 0.0
  %146 = vmatpush1.msra.mxu0 0.0
  %147 = vmatprep.subr.mxu0 0.0
  %148 = vmatpush1.msra.mxu0 0.0
  %149 = vmatprep.subr.mxu0 0.0
  %150 = vmatpush1.msra.mxu0 0.0
  %151 = vmatprep.subr.mxu0 0.0
  %152 = vmatpush1.msra.mxu0 0.0
  %153 = vmatprep.subr.mxu0 0.0
  %154 = vmatpush1.msra.mxu0 0.0
  %155 = vmatprep.subr.mxu0 0.0
  %156 = vmatpush1.msra.mxu0 0.0
  %157 = vmatprep.subr.mxu0 0.0
  %158 = vmatpush1.msra.mxu0 0.0
  %159 = vmatprep.subr.mxu0 0.0
  %160 = vmatpush1.msra.mxu0 0.0
  %161 = vmatprep.subr.mxu0 0.0
  %162 = vmatpush1.msra.mxu0 0.0
  %163 = vmatprep.subr.mxu0 0.0
  %164 = vmatpush1.msra.mxu0 0.0
  %165 = vmatprep.subr.mxu0 0.0
  %166 = vmatpush1.msra.mxu0 0.0
  %167 = vmatprep.subr.mxu0 0.0
  %168 = vmatpush1.msra.mxu0 0.0
  %169 = vmatprep.subr.mxu0 0.0
  %170 = vmatpush1.msra.mxu0 0.0
  %171 = vmatprep.subr.mxu0 0.0
  %172 = vmatpush1.msra.mxu0 0.0
  %173 = vmatprep.subr.mxu0 0.0
  %174 = vmatpush1.msra.mxu0 0.0
  %175 = vmatprep.subr.mxu0 0.0
  %176 = vmatpush1.msra.mxu0 0.0
  %177 = vmatprep.subr.mxu0 0.0
  %178 = vmatpush1.msra.mxu0 0.0
  %179 = vmatprep.subr.mxu0 0.0
  %180 = vmatpush1.msra.mxu0 0.0
  %181 = vmatprep.subr.mxu0 0.0
  %182 = vmatpush1.msra.mxu0 0.0
  %183 = vmatprep.subr.mxu0 0.0
  %184 = vmatpush1.msra.mxu0 0.0
  %185 = vmatprep.subr.mxu0 0.0
  %186 = vmatpush1.msra.mxu0 0.0
  %187 = vmatprep.subr.mxu0 0.0
  %188 = vmatpush1.msra.mxu0 0.0
  %189 = vmatprep.subr.mxu0 0.0
  %190 = vmatpush1.msra.mxu0 0.0
  %191 = vmatprep.subr.mxu0 0.0
  %192 = vmatpush1.msra.mxu0 0.0
  %193 = vmatprep.subr.mxu0 0.0
  %194 = vmatpush1.msra.mxu0 0.0
  %195 = vmatprep.subr.mxu0 0.0
  %196 = vmatpush1.msra.mxu0 0.0
  %197 = vmatprep.subr.mxu0 0.0
  %198 = vmatpush1.msra.mxu0 0.0
  %199 = vmatprep.mubr.f32.mxu0 0.0
  %200 = vmatmul.mubr.f32.gmra.mrb[0].mxu0 %v120
  %v201 = vpop.f32.mrb[0].mxu0
  %v202 = vadd.f32 0.0, %v201
  %v203 = vpop.f32.mrb[0].mxu0
  %v204 = vadd.f32 0.0, %v203
  %205 = vdwg.mxu0
  %206 = vmatprep.subr.mxu0 %v129
  %207 = vmatpush1.msra.mxu0 %v127
  %208 = vmatprep.subr.mxu0 0.0
  %209 = vmatpush1.msra.mxu0 0.0
  %210 = vmatprep.subr.mxu0 0.0
  %211 = vmatpush1.msra.mxu0 0.0
  %212 = vmatprep.subr.mxu0 0.0
  %213 = vmatpush1.msra.mxu0 0.0
  %214 = vmatprep.subr.mxu0 0.0
  %215 = vmatpush1.msra.mxu0 0.0
  %216 = vmatprep.subr.mxu0 0.0
  %217 = vmatpush1.msra.mxu0 0.0
  %218 = vmatprep.subr.mxu0 0.0
  %219 = vmatpush1.msra.mxu0 0.0
  %220 = vmatprep.subr.mxu0 0.0
  %221 = vmatpush1.msra.mxu0 0.0
  %222 = vmatprep.subr.mxu0 0.0
  %223 = vmatpush1.msra.mxu0 0.0
  %224 = vmatprep.subr.mxu0 0.0
  %225 = vmatpush1.msra.mxu0 0.0
  %226 = vmatprep.subr.mxu0 0.0
  %227 = vmatpush1.msra.mxu0 0.0
  %228 = vmatprep.subr.mxu0 0.0
  %229 = vmatpush1.msra.mxu0 0.0
  %230 = vmatprep.subr.mxu0 0.0
  %231 = vmatpush1.msra.mxu0 0.0
  %232 = vmatprep.subr.mxu0 0.0
  %233 = vmatpush1.msra.mxu0 0.0
  %234 = vmatprep.subr.mxu0 0.0
  %235 = vmatpush1.msra.mxu0 0.0
  %236 = vmatprep.subr.mxu0 0.0
  %237 = vmatpush1.msra.mxu0 0.0
  %238 = vmatprep.subr.mxu0 0.0
  %239 = vmatpush1.msra.mxu0 0.0
  %240 = vmatprep.subr.mxu0 0.0
  %241 = vmatpush1.msra.mxu0 0.0
  %242 = vmatprep.subr.mxu0 0.0
  %243 = vmatpush1.msra.mxu0 0.0
  %244 = vmatprep.subr.mxu0 0.0
  %245 = vmatpush1.msra.mxu0 0.0
  %246 = vmatprep.subr.mxu0 0.0
  %247 = vmatpush1.msra.mxu0 0.0
  %248 = vmatprep.subr.mxu0 0.0
  %249 = vmatpush1.msra.mxu0 0.0
  %250 = vmatprep.subr.mxu0 0.0
  %251 = vmatpush1.msra.mxu0 0.0
  %252 = vmatprep.subr.mxu0 0.0
  %253 = vmatpush1.msra.mxu0 0.0
  %254 = vmatprep.subr.mxu0 0.0
  %255 = vmatpush1.msra.mxu0 0.0
  %256 = vmatprep.subr.mxu0 0.0
  %257 = vmatpush1.msra.mxu0 0.0
  %258 = vmatprep.subr.mxu0 0.0
  %259 = vmatpush1.msra.mxu0 0.0
  %260 = vmatprep.subr.mxu0 0.0
  %261 = vmatpush1.msra.mxu0 0.0
  %262 = vmatprep.subr.mxu0 0.0
  %263 = vmatpush1.msra.mxu0 0.0
  %264 = vmatprep.subr.mxu0 0.0
  %265 = vmatpush1.msra.mxu0 0.0
  %266 = vmatprep.subr.mxu0 0.0
  %267 = vmatpush1.msra.mxu0 0.0
  %268 = vmatprep.subr.mxu0 0.0
  %269 = vmatpush1.msra.mxu0 0.0
  %270 = vmatprep.mubr.f32.mxu0 0.0
  %271 = vmatmul.mubr.f32.gmra.mrb[0].mxu0 %v120
  %v272 = vpop.f32.mrb[0].mxu0
  %v273 = vadd.f32 0.0, %v272
  %v274 = vpop.f32.mrb[0].mxu0
  %v275 = vadd.f32 0.0, %v274
  %276 = vdwg.mxu0
  %277 = vmatprep.subr.mxu0 %v133
  %278 = vmatpush1.msra.mxu0 %v131
  %279 = vmatprep.subr.mxu0 0.0
  %280 = vmatpush1.msra.mxu0 0.0
  %281 = vmatprep.subr.mxu0 0.0
  %282 = vmatpush1.msra.mxu0 0.0
  %283 = vmatprep.subr.mxu0 0.0
  %284 = vmatpush1.msra.mxu0 0.0
  %285 = vmatprep.subr.mxu0 0.0
  %286 = vmatpush1.msra.mxu0 0.0
  %287 = vmatprep.subr.mxu0 0.0
  %288 = vmatpush1.msra.mxu0 0.0
  %289 = vmatprep.subr.mxu0 0.0
  %290 = vmatpush1.msra.mxu0 0.0
  %291 = vmatprep.subr.mxu0 0.0
  %292 = vmatpush1.msra.mxu0 0.0
  %293 = vmatprep.subr.mxu0 0.0
  %294 = vmatpush1.msra.mxu0 0.0
  %295 = vmatprep.subr.mxu0 0.0
  %296 = vmatpush1.msra.mxu0 0.0
  %297 = vmatprep.subr.mxu0 0.0
  %298 = vmatpush1.msra.mxu0 0.0
  %299 = vmatprep.subr.mxu0 0.0
  %300 = vmatpush1.msra.mxu0 0.0
  %301 = vmatprep.subr.mxu0 0.0
  %302 = vmatpush1.msra.mxu0 0.0
  %303 = vmatprep.subr.mxu0 0.0
  %304 = vmatpush1.msra.mxu0 0.0
  %305 = vmatprep.subr.mxu0 0.0
  %306 = vmatpush1.msra.mxu0 0.0
  %307 = vmatprep.subr.mxu0 0.0
  %308 = vmatpush1.msra.mxu0 0.0
  %309 = vmatprep.subr.mxu0 0.0
  %310 = vmatpush1.msra.mxu0 0.0
  %311 = vmatprep.subr.mxu0 0.0
  %312 = vmatpush1.msra.mxu0 0.0
  %313 = vmatprep.subr.mxu0 0.0
  %314 = vmatpush1.msra.mxu0 0.0
  %315 = vmatprep.subr.mxu0 0.0
  %316 = vmatpush1.msra.mxu0 0.0
  %317 = vmatprep.subr.mxu0 0.0
  %318 = vmatpush1.msra.mxu0 0.0
  %319 = vmatprep.subr.mxu0 0.0
  %320 = vmatpush1.msra.mxu0 0.0
  %321 = vmatprep.subr.mxu0 0.0
  %322 = vmatpush1.msra.mxu0 0.0
  %323 = vmatprep.subr.mxu0 0.0
  %324 = vmatpush1.msra.mxu0 0.0
  %325 = vmatprep.subr.mxu0 0.0
  %326 = vmatpush1.msra.mxu0 0.0
  %327 = vmatprep.subr.mxu0 0.0
  %328 = vmatpush1.msra.mxu0 0.0
  %329 = vmatprep.subr.mxu0 0.0
  %330 = vmatpush1.msra.mxu0 0.0
  %331 = vmatprep.subr.mxu0 0.0
  %332 = vmatpush1.msra.mxu0 0.0
  %333 = vmatprep.subr.mxu0 0.0
  %334 = vmatpush1.msra.mxu0 0.0
  %335 = vmatprep.subr.mxu0 0.0
  %336 = vmatpush1.msra.mxu0 0.0
  %337 = vmatprep.subr.mxu0 0.0
  %338 = vmatpush1.msra.mxu0 0.0
  %339 = vmatprep.subr.mxu0 0.0
  %340 = vmatpush1.msra.mxu0 0.0
  %341 = vmatprep.mubr.f32.mxu0 0.0
  %342 = vmatmul.mubr.f32.gmra.mrb[0].mxu0 %v120
  %v343 = vpop.f32.mrb[0].mxu0
  %v344 = vadd.f32 0.0, %v343
  %v345 = vpop.f32.mrb[0].mxu0
  %v346 = vadd.f32 0.0, %v345
  %347 = vdwg.mxu0
  %v349 = vsel %vm118, %v91, 0
  %v351 = vsel %vm122, %v85, 0
  %v353 = vsel %vm122, %v86, 0
  %v355 = vsel %vm122, %v87, 0
  %v357 = vsel %vm122, %v88, 0
  %v359 = vsel %vm122, %v89, 0
  %v361 = vsel %vm122, %v90, 0
  %363 = vmatprep.subr.mxu0 %v353
  %364 = vmatpush1.msra.mxu0 %v351
  %365 = vmatprep.subr.mxu0 0.0
  %366 = vmatpush1.msra.mxu0 0.0
  %367 = vmatprep.subr.mxu0 0.0
  %368 = vmatpush1.msra.mxu0 0.0
  %369 = vmatprep.subr.mxu0 0.0
  %370 = vmatpush1.msra.mxu0 0.0
  %371 = vmatprep.subr.mxu0 0.0
  %372 = vmatpush1.msra.mxu0 0.0
  %373 = vmatprep.subr.mxu0 0.0
  %374 = vmatpush1.msra.mxu0 0.0
  %375 = vmatprep.subr.mxu0 0.0
  %376 = vmatpush1.msra.mxu0 0.0
  %377 = vmatprep.subr.mxu0 0.0
  %378 = vmatpush1.msra.mxu0 0.0
  %379 = vmatprep.subr.mxu0 0.0
  %380 = vmatpush1.msra.mxu0 0.0
  %381 = vmatprep.subr.mxu0 0.0
  %382 = vmatpush1.msra.mxu0 0.0
  %383 = vmatprep.subr.mxu0 0.0
  %384 = vmatpush1.msra.mxu0 0.0
  %385 = vmatprep.subr.mxu0 0.0
  %386 = vmatpush1.msra.mxu0 0.0
  %387 = vmatprep.subr.mxu0 0.0
  %388 = vmatpush1.msra.mxu0 0.0
  %389 = vmatprep.subr.mxu0 0.0
  %390 = vmatpush1.msra.mxu0 0.0
  %391 = vmatprep.subr.mxu0 0.0
  %392 = vmatpush1.msra.mxu0 0.0
  %393 = vmatprep.subr.mxu0 0.0
  %394 = vmatpush1.msra.mxu0 0.0
  %395 = vmatprep.subr.mxu0 0.0
  %396 = vmatpush1.msra.mxu0 0.0
  %397 = vmatprep.subr.mxu0 0.0
  %398 = vmatpush1.msra.mxu0 0.0
  %399 = vmatprep.subr.mxu0 0.0
  %400 = vmatpush1.msra.mxu0 0.0
  %401 = vmatprep.subr.mxu0 0.0
  %402 = vmatpush1.msra.mxu0 0.0
  %403 = vmatprep.subr.mxu0 0.0
  %404 = vmatpush1.msra.mxu0 0.0
  %405 = vmatprep.subr.mxu0 0.0
  %406 = vmatpush1.msra.mxu0 0.0
  %407 = vmatprep.subr.mxu0 0.0
  %408 = vmatpush1.msra.mxu0 0.0
  %409 = vmatprep.subr.mxu0 0.0
  %410 = vmatpush1.msra.mxu0 0.0
  %411 = vmatprep.subr.mxu0 0.0
  %412 = vmatpush1.msra.mxu0 0.0
  %413 = vmatprep.subr.mxu0 0.0
  %414 = vmatpush1.msra.mxu0 0.0
  %415 = vmatprep.subr.mxu0 0.0
  %416 = vmatpush1.msra.mxu0 0.0
  %417 = vmatprep.subr.mxu0 0.0
  %418 = vmatpush1.msra.mxu0 0.0
  %419 = vmatprep.subr.mxu0 0.0
  %420 = vmatpush1.msra.mxu0 0.0
  %421 = vmatprep.subr.mxu0 0.0
  %422 = vmatpush1.msra.mxu0 0.0
  %423 = vmatprep.subr.mxu0 0.0
  %424 = vmatpush1.msra.mxu0 0.0
  %425 = vmatprep.subr.mxu0 0.0
  %426 = vmatpush1.msra.mxu0 0.0
  %427 = vmatprep.mubr.f32.mxu0 0.0
  %428 = vmatmul.mubr.f32.gmra.mrb[0].mxu0 %v349
  %v429 = vpop.f32.mrb[0].mxu0
  %v430 = vadd.f32 %v202, %v429
  %v431 = vpop.f32.mrb[0].mxu0
  %v432 = vadd.f32 %v204, %v431
  %433 = vdwg.mxu0
  %434 = vmatprep.subr.mxu0 %v357
  %435 = vmatpush1.msra.mxu0 %v355
  %436 = vmatprep.subr.mxu0 0.0
  %437 = vmatpush1.msra.mxu0 0.0
  %438 = vmatprep.subr.mxu0 0.0
  %439 = vmatpush1.msra.mxu0 0.0
  %440 = vmatprep.subr.mxu0 0.0
  %441 = vmatpush1.msra.mxu0 0.0
  %442 = vmatprep.subr.mxu0 0.0
  %443 = vmatpush1.msra.mxu0 0.0
  %444 = vmatprep.subr.mxu0 0.0
  %445 = vmatpush1.msra.mxu0 0.0
  %446 = vmatprep.subr.mxu0 0.0
  %447 = vmatpush1.msra.mxu0 0.0
  %448 = vmatprep.subr.mxu0 0.0
  %449 = vmatpush1.msra.mxu0 0.0
  %450 = vmatprep.subr.mxu0 0.0
  %451 = vmatpush1.msra.mxu0 0.0
  %452 = vmatprep.subr.mxu0 0.0
  %453 = vmatpush1.msra.mxu0 0.0
  %454 = vmatprep.subr.mxu0 0.0
  %455 = vmatpush1.msra.mxu0 0.0
  %456 = vmatprep.subr.mxu0 0.0
  %457 = vmatpush1.msra.mxu0 0.0
  %458 = vmatprep.subr.mxu0 0.0
  %459 = vmatpush1.msra.mxu0 0.0
  %460 = vmatprep.subr.mxu0 0.0
  %461 = vmatpush1.msra.mxu0 0.0
  %462 = vmatprep.subr.mxu0 0.0
  %463 = vmatpush1.msra.mxu0 0.0
  %464 = vmatprep.subr.mxu0 0.0
  %465 = vmatpush1.msra.mxu0 0.0
  %466 = vmatprep.subr.mxu0 0.0
  %467 = vmatpush1.msra.mxu0 0.0
  %468 = vmatprep.subr.mxu0 0.0
  %469 = vmatpush1.msra.mxu0 0.0
  %470 = vmatprep.subr.mxu0 0.0
  %471 = vmatpush1.msra.mxu0 0.0
  %472 = vmatprep.subr.mxu0 0.0
  %473 = vmatpush1.msra.mxu0 0.0
  %474 = vmatprep.subr.mxu0 0.0
  %475 = vmatpush1.msra.mxu0 0.0
  %476 = vmatprep.subr.mxu0 0.0
  %477 = vmatpush1.msra.mxu0 0.0
  %478 = vmatprep.subr.mxu0 0.0
  %479 = vmatpush1.msra.mxu0 0.0
  %480 = vmatprep.subr.mxu0 0.0
  %481 = vmatpush1.msra.mxu0 0.0
  %482 = vmatprep.subr.mxu0 0.0
  %483 = vmatpush1.msra.mxu0 0.0
  %484 = vmatprep.subr.mxu0 0.0
  %485 = vmatpush1.msra.mxu0 0.0
  %486 = vmatprep.subr.mxu0 0.0
  %487 = vmatpush1.msra.mxu0 0.0
  %488 = vmatprep.subr.mxu0 0.0
  %489 = vmatpush1.msra.mxu0 0.0
  %490 = vmatprep.subr.mxu0 0.0
  %491 = vmatpush1.msra.mxu0 0.0
  %492 = vmatprep.subr.mxu0 0.0
  %493 = vmatpush1.msra.mxu0 0.0
  %494 = vmatprep.subr.mxu0 0.0
  %495 = vmatpush1.msra.mxu0 0.0
  %496 = vmatprep.subr.mxu0 0.0
  %497 = vmatpush1.msra.mxu0 0.0
  %498 = vmatprep.mubr.f32.mxu0 0.0
  %499 = vmatmul.mubr.f32.gmra.mrb[0].mxu0 %v349
  %v500 = vpop.f32.mrb[0].mxu0
  %v501 = vadd.f32 %v273, %v500
  %v502 = vpop.f32.mrb[0].mxu0
  %v503 = vadd.f32 %v275, %v502
  %504 = vdwg.mxu0
  %505 = vmatprep.subr.mxu0 %v361
  %506 = vmatpush1.msra.mxu0 %v359
  %507 = vmatprep.subr.mxu0 0.0
  %508 = vmatpush1.msra.mxu0 0.0
  %509 = vmatprep.subr.mxu0 0.0
  %510 = vmatpush1.msra.mxu0 0.0
  %511 = vmatprep.subr.mxu0 0.0
  %512 = vmatpush1.msra.mxu0 0.0
  %513 = vmatprep.subr.mxu0 0.0
  %514 = vmatpush1.msra.mxu0 0.0
  %515 = vmatprep.subr.mxu0 0.0
  %516 = vmatpush1.msra.mxu0 0.0
  %517 = vmatprep.subr.mxu0 0.0
  %518 = vmatpush1.msra.mxu0 0.0
  %519 = vmatprep.subr.mxu0 0.0
  %520 = vmatpush1.msra.mxu0 0.0
  %521 = vmatprep.subr.mxu0 0.0
  %522 = vmatpush1.msra.mxu0 0.0
  %523 = vmatprep.subr.mxu0 0.0
  %524 = vmatpush1.msra.mxu0 0.0
  %525 = vmatprep.subr.mxu0 0.0
  %526 = vmatpush1.msra.mxu0 0.0
  %527 = vmatprep.subr.mxu0 0.0
  %528 = vmatpush1.msra.mxu0 0.0
  %529 = vmatprep.subr.mxu0 0.0
  %530 = vmatpush1.msra.mxu0 0.0
  %531 = vmatprep.subr.mxu0 0.0
  %532 = vmatpush1.msra.mxu0 0.0
  %533 = vmatprep.subr.mxu0 0.0
  %534 = vmatpush1.msra.mxu0 0.0
  %535 = vmatprep.subr.mxu0 0.0
  %536 = vmatpush1.msra.mxu0 0.0
  %537 = vmatprep.subr.mxu0 0.0
  %538 = vmatpush1.msra.mxu0 0.0
  %539 = vmatprep.subr.mxu0 0.0
  %540 = vmatpush1.msra.mxu0 0.0
  %541 = vmatprep.subr.mxu0 0.0
  %542 = vmatpush1.msra.mxu0 0.0
  %543 = vmatprep.subr.mxu0 0.0
  %544 = vmatpush1.msra.mxu0 0.0
  %545 = vmatprep.subr.mxu0 0.0
  %546 = vmatpush1.msra.mxu0 0.0
  %547 = vmatprep.subr.mxu0 0.0
  %548 = vmatpush1.msra.mxu0 0.0
  %549 = vmatprep.subr.mxu0 0.0
  %550 = vmatpush1.msra.mxu0 0.0
  %551 = vmatprep.subr.mxu0 0.0
  %552 = vmatpush1.msra.mxu0 0.0
  %553 = vmatprep.subr.mxu0 0.0
  %554 = vmatpush1.msra.mxu0 0.0
  %555 = vmatprep.subr.mxu0 0.0
  %556 = vmatpush1.msra.mxu0 0.0
  %557 = vmatprep.subr.mxu0 0.0
  %558 = vmatpush1.msra.mxu0 0.0
  %559 = vmatprep.subr.mxu0 0.0
  %560 = vmatpush1.msra.mxu0 0.0
  %561 = vmatprep.subr.mxu0 0.0
  %562 = vmatpush1.msra.mxu0 0.0
  %563 = vmatprep.subr.mxu0 0.0
  %564 = vmatpush1.msra.mxu0 0.0
  %565 = vmatprep.subr.mxu0 0.0
  %566 = vmatpush1.msra.mxu0 0.0
  %567 = vmatprep.subr.mxu0 0.0
  %568 = vmatpush1.msra.mxu0 0.0
  %569 = vmatprep.mubr.f32.mxu0 0.0
  %570 = vmatmul.mubr.f32.gmra.mrb[0].mxu0 %v349
  %v571 = vpop.f32.mrb[0].mxu0
  %v572 = vadd.f32 %v344, %v571
  %v573 = vpop.f32.mrb[0].mxu0
  %v574 = vadd.f32 %v346, %v573
  %575 = vdwg.mxu0
  %s576 = scalar_lea.vmem %s3, 16
  %v577 = vld [vmem:[%s576] sm:$0x1f]
  %578 = vrot.lane.b32.xlu0 %v85, 126
  %v579 = vpop.permute.xlu0 %578
  %580 = vrot.lane.b32.xlu0 %v86, 126
  %v581 = vpop.permute.xlu0 %580
  %582 = vrot.lane.b32.xlu0 %v87, 126
  %v583 = vpop.permute.xlu0 %582
  %584 = vrot.lane.b32.xlu0 %v88, 126
  %v585 = vpop.permute.xlu0 %584
  %586 = vrot.lane.b32.xlu0 %v89, 126
  %v587 = vpop.permute.xlu0 %586
  %588 = vrot.lane.b32.xlu0 %v90, 126
  %v589 = vpop.permute.xlu0 %588
  %vm590 = vcmask 1031168
  %v591 = vsel %vm590, %v579, %v581
  %v592 = vsel %vm590, %v581, %v583
  %v593 = vsel %vm590, %v583, %v585
  %v594 = vsel %vm590, %v585, %v587
  %v595 = vsel %vm590, %v587, %v589
  %v597 = vsel %vm118, %v577, 0
  %v599 = vsel %vm122, %v591, 0
  %v601 = vsel %vm122, %v592, 0
  %v603 = vsel %vm122, %v593, 0
  %v605 = vsel %vm122, %v594, 0
  %v607 = vsel %vm122, %v595, 0
  %v609 = vsel %vm122, %v589, 0
  %611 = vmatprep.subr.mxu0 %v601
  %612 = vmatpush1.msra.mxu0 %v599
  %613 = vmatprep.subr.mxu0 0.0
  %614 = vmatpush1.msra.mxu0 0.0
  %615 = vmatprep.subr.mxu0 0.0
  %616 = vmatpush1.msra.mxu0 0.0
  %617 = vmatprep.subr.mxu0 0.0
  %618 = vmatpush1.msra.mxu0 0.0
  %619 = vmatprep.subr.mxu0 0.0
  %620 = vmatpush1.msra.mxu0 0.0
  %621 = vmatprep.subr.mxu0 0.0
  %622 = vmatpush1.msra.mxu0 0.0
  %623 = vmatprep.subr.mxu0 0.0
  %624 = vmatpush1.msra.mxu0 0.0
  %625 = vmatprep.subr.mxu0 0.0
  %626 = vmatpush1.msra.mxu0 0.0
  %627 = vmatprep.subr.mxu0 0.0
  %628 = vmatpush1.msra.mxu0 0.0
  %629 = vmatprep.subr.mxu0 0.0
  %630 = vmatpush1.msra.mxu0 0.0
  %631 = vmatprep.subr.mxu0 0.0
  %632 = vmatpush1.msra.mxu0 0.0
  %633 = vmatprep.subr.mxu0 0.0
  %634 = vmatpush1.msra.mxu0 0.0
  %635 = vmatprep.subr.mxu0 0.0
  %636 = vmatpush1.msra.mxu0 0.0
  %637 = vmatprep.subr.mxu0 0.0
  %638 = vmatpush1.msra.mxu0 0.0
  %639 = vmatprep.subr.mxu0 0.0
  %640 = vmatpush1.msra.mxu0 0.0
  %641 = vmatprep.subr.mxu0 0.0
  %642 = vmatpush1.msra.mxu0 0.0
  %643 = vmatprep.subr.mxu0 0.0
  %644 = vmatpush1.msra.mxu0 0.0
  %645 = vmatprep.subr.mxu0 0.0
  %646 = vmatpush1.msra.mxu0 0.0
  %647 = vmatprep.subr.mxu0 0.0
  %648 = vmatpush1.msra.mxu0 0.0
  %649 = vmatprep.subr.mxu0 0.0
  %650 = vmatpush1.msra.mxu0 0.0
  %651 = vmatprep.subr.mxu0 0.0
  %652 = vmatpush1.msra.mxu0 0.0
  %653 = vmatprep.subr.mxu0 0.0
  %654 = vmatpush1.msra.mxu0 0.0
  %655 = vmatprep.subr.mxu0 0.0
  %656 = vmatpush1.msra.mxu0 0.0
  %657 = vmatprep.subr.mxu0 0.0
  %658 = vmatpush1.msra.mxu0 0.0
  %659 = vmatprep.subr.mxu0 0.0
  %660 = vmatpush1.msra.mxu0 0.0
  %661 = vmatprep.subr.mxu0 0.0
  %662 = vmatpush1.msra.mxu0 0.0
  %663 = vmatprep.subr.mxu0 0.0
  %664 = vmatpush1.msra.mxu0 0.0
  %665 = vmatprep.subr.mxu0 0.0
  %666 = vmatpush1.msra.mxu0 0.0
  %667 = vmatprep.subr.mxu0 0.0
  %668 = vmatpush1.msra.mxu0 0.0
  %669 = vmatprep.subr.mxu0 0.0
  %670 = vmatpush1.msra.mxu0 0.0
  %671 = vmatprep.subr.mxu0 0.0
  %672 = vmatpush1.msra.mxu0 0.0
  %673 = vmatprep.subr.mxu0 0.0
  %674 = vmatpush1.msra.mxu0 0.0
  %675 = vmatprep.mubr.f32.mxu0 0.0
  %676 = vmatmul.mubr.f32.gmra.mrb[0].mxu0 %v597
  %v677 = vpop.f32.mrb[0].mxu0
  %v678 = vadd.f32 0.0, %v677
  %v679 = vpop.f32.mrb[0].mxu0
  %v680 = vadd.f32 0.0, %v679
  %681 = vdwg.mxu0
  %682 = vmatprep.subr.mxu0 %v605
  %683 = vmatpush1.msra.mxu0 %v603
  %684 = vmatprep.subr.mxu0 0.0
  %685 = vmatpush1.msra.mxu0 0.0
  %686 = vmatprep.subr.mxu0 0.0
  %687 = vmatpush1.msra.mxu0 0.0
  %688 = vmatprep.subr.mxu0 0.0
  %689 = vmatpush1.msra.mxu0 0.0
  %690 = vmatprep.subr.mxu0 0.0
  %691 = vmatpush1.msra.mxu0 0.0
  %692 = vmatprep.subr.mxu0 0.0
  %693 = vmatpush1.msra.mxu0 0.0
  %694 = vmatprep.subr.mxu0 0.0
  %695 = vmatpush1.msra.mxu0 0.0
  %696 = vmatprep.subr.mxu0 0.0
  %697 = vmatpush1.msra.mxu0 0.0
  %698 = vmatprep.subr.mxu0 0.0
  %699 = vmatpush1.msra.mxu0 0.0
  %700 = vmatprep.subr.mxu0 0.0
  %701 = vmatpush1.msra.mxu0 0.0
  %702 = vmatprep.subr.mxu0 0.0
  %703 = vmatpush1.msra.mxu0 0.0
  %704 = vmatprep.subr.mxu0 0.0
  %705 = vmatpush1.msra.mxu0 0.0
  %706 = vmatprep.subr.mxu0 0.0
  %707 = vmatpush1.msra.mxu0 0.0
  %708 = vmatprep.subr.mxu0 0.0
  %709 = vmatpush1.msra.mxu0 0.0
  %710 = vmatprep.subr.mxu0 0.0
  %711 = vmatpush1.msra.mxu0 0.0
  %712 = vmatprep.subr.mxu0 0.0
  %713 = vmatpush1.msra.mxu0 0.0
  %714 = vmatprep.subr.mxu0 0.0
  %715 = vmatpush1.msra.mxu0 0.0
  %716 = vmatprep.subr.mxu0 0.0
  %717 = vmatpush1.msra.mxu0 0.0
  %718 = vmatprep.subr.mxu0 0.0
  %719 = vmatpush1.msra.mxu0 0.0
  %720 = vmatprep.subr.mxu0 0.0
  %721 = vmatpush1.msra.mxu0 0.0
  %722 = vmatprep.subr.mxu0 0.0
  %723 = vmatpush1.msra.mxu0 0.0
  %724 = vmatprep.subr.mxu0 0.0
  %725 = vmatpush1.msra.mxu0 0.0
  %726 = vmatprep.subr.mxu0 0.0
  %727 = vmatpush1.msra.mxu0 0.0
  %728 = vmatprep.subr.mxu0 0.0
  %729 = vmatpush1.msra.mxu0 0.0
  %730 = vmatprep.subr.mxu0 0.0
  %731 = vmatpush1.msra.mxu0 0.0
  %732 = vmatprep.subr.mxu0 0.0
  %733 = vmatpush1.msra.mxu0 0.0
  %734 = vmatprep.subr.mxu0 0.0
  %735 = vmatpush1.msra.mxu0 0.0
  %736 = vmatprep.subr.mxu0 0.0
  %737 = vmatpush1.msra.mxu0 0.0
  %738 = vmatprep.subr.mxu0 0.0
  %739 = vmatpush1.msra.mxu0 0.0
  %740 = vmatprep.subr.mxu0 0.0
  %741 = vmatpush1.msra.mxu0 0.0
  %742 = vmatprep.subr.mxu0 0.0
  %743 = vmatpush1.msra.mxu0 0.0
  %744 = vmatprep.subr.mxu0 0.0
  %745 = vmatpush1.msra.mxu0 0.0
  %746 = vmatprep.mubr.f32.mxu0 0.0
  %747 = vmatmul.mubr.f32.gmra.mrb[0].mxu0 %v597
  %v748 = vpop.f32.mrb[0].mxu0
  %v749 = vadd.f32 0.0, %v748
  %v750 = vpop.f32.mrb[0].mxu0
  %v751 = vadd.f32 0.0, %v750
  %752 = vdwg.mxu0
  %753 = vmatprep.subr.mxu0 %v609
  %754 = vmatpush1.msra.mxu0 %v607
  %755 = vmatprep.subr.mxu0 0.0
  %756 = vmatpush1.msra.mxu0 0.0
  %757 = vmatprep.subr.mxu0 0.0
  %758 = vmatpush1.msra.mxu0 0.0
  %759 = vmatprep.subr.mxu0 0.0
  %760 = vmatpush1.msra.mxu0 0.0
  %761 = vmatprep.subr.mxu0 0.0
  %762 = vmatpush1.msra.mxu0 0.0
  %763 = vmatprep.subr.mxu0 0.0
  %764 = vmatpush1.msra.mxu0 0.0
  %765 = vmatprep.subr.mxu0 0.0
  %766 = vmatpush1.msra.mxu0 0.0
  %767 = vmatprep.subr.mxu0 0.0
  %768 = vmatpush1.msra.mxu0 0.0
  %769 = vmatprep.subr.mxu0 0.0
  %770 = vmatpush1.msra.mxu0 0.0
  %771 = vmatprep.subr.mxu0 0.0
  %772 = vmatpush1.msra.mxu0 0.0
  %773 = vmatprep.subr.mxu0 0.0
  %774 = vmatpush1.msra.mxu0 0.0
  %775 = vmatprep.subr.mxu0 0.0
  %776 = vmatpush1.msra.mxu0 0.0
  %777 = vmatprep.subr.mxu0 0.0
  %778 = vmatpush1.msra.mxu0 0.0
  %779 = vmatprep.subr.mxu0 0.0
  %780 = vmatpush1.msra.mxu0 0.0
  %781 = vmatprep.subr.mxu0 0.0
  %782 = vmatpush1.msra.mxu0 0.0
  %783 = vmatprep.subr.mxu0 0.0
  %784 = vmatpush1.msra.mxu0 0.0
  %785 = vmatprep.subr.mxu0 0.0
  %786 = vmatpush1.msra.mxu0 0.0
  %787 = vmatprep.subr.mxu0 0.0
  %788 = vmatpush1.msra.mxu0 0.0
  %789 = vmatprep.subr.mxu0 0.0
  %790 = vmatpush1.msra.mxu0 0.0
  %791 = vmatprep.subr.mxu0 0.0
  %792 = vmatpush1.msra.mxu0 0.0
  %793 = vmatprep.subr.mxu0 0.0
  %794 = vmatpush1.msra.mxu0 0.0
  %795 = vmatprep.subr.mxu0 0.0
  %796 = vmatpush1.msra.mxu0 0.0
  %797 = vmatprep.subr.mxu0 0.0
  %798 = vmatpush1.msra.mxu0 0.0
  %799 = vmatprep.subr.mxu0 0.0
  %800 = vmatpush1.msra.mxu0 0.0
  %801 = vmatprep.subr.mxu0 0.0
  %802 = vmatpush1.msra.mxu0 0.0
  %803 = vmatprep.subr.mxu0 0.0
  %804 = vmatpush1.msra.mxu0 0.0
  %805 = vmatprep.subr.mxu0 0.0
  %806 = vmatpush1.msra.mxu0 0.0
  %807 = vmatprep.subr.mxu0 0.0
  %808 = vmatpush1.msra.mxu0 0.0
  %809 = vmatprep.subr.mxu0 0.0
  %810 = vmatpush1.msra.mxu0 0.0
  %811 = vmatprep.subr.mxu0 0.0
  %812 = vmatpush1.msra.mxu0 0.0
  %813 = vmatprep.subr.mxu0 0.0
  %814 = vmatpush1.msra.mxu0 0.0
  %815 = vmatprep.subr.mxu0 0.0
  %816 = vmatpush1.msra.mxu0 0.0
  %817 = vmatprep.mubr.f32.mxu0 0.0
  %818 = vmatmul.mubr.f32.gmra.mrb[0].mxu0 %v597
  %v819 = vpop.f32.mrb[0].mxu0
  %v820 = vadd.f32 0.0, %v819
  %v821 = vpop.f32.mrb[0].mxu0
  %v822 = vadd.f32 0.0, %v821
  %823 = vdwg.mxu0
  %v824 = vadd.f32 %v430, %v678
  %v825 = vadd.f32 %v432, %v680
  %v826 = vadd.f32 %v501, %v749
  %v827 = vadd.f32 %v503, %v751
  %v828 = vadd.f32 %v572, %v820
  %v829 = vadd.f32 %v574, %v822
  %s830 = scalar_lea.vmem %s3, 24
  %v831 = vld [vmem:[%s830] sm:$0x1f]
  %832 = vrot.lane.b32.xlu0 %v85, 110
  %v833 = vpop.permute.xlu0 %832
  %834 = vrot.lane.b32.xlu0 %v86, 110
  %v835 = vpop.permute.xlu0 %834
  %836 = vrot.lane.b32.xlu0 %v87, 110
  %v837 = vpop.permute.xlu0 %836
  %838 = vrot.lane.b32.xlu0 %v88, 110
  %v839 = vpop.permute.xlu0 %838
  %840 = vrot.lane.b32.xlu0 %v89, 110
  %v841 = vpop.permute.xlu0 %840
  %842 = vrot.lane.b32.xlu0 %v90, 110
  %v843 = vpop.permute.xlu0 %842
  %vm844 = vcmask 900096
  %v845 = vsel %vm844, %v833, %v835
  %v846 = vsel %vm844, %v835, %v837
  %v847 = vsel %vm844, %v837, %v839
  %v848 = vsel %vm844, %v839, %v841
  %v849 = vsel %vm844, %v841, %v843
  %v851 = vsel %vm118, %v831, 0
  %v853 = vsel %vm122, %v845, 0
  %v855 = vsel %vm122, %v846, 0
  %v857 = vsel %vm122, %v847, 0
  %v859 = vsel %vm122, %v848, 0
  %v861 = vsel %vm122, %v849, 0
  %v863 = vsel %vm122, %v843, 0
  %865 = vmatprep.subr.mxu0 %v855
  %866 = vmatpush1.msra.mxu0 %v853
  %867 = vmatprep.subr.mxu0 0.0
  %868 = vmatpush1.msra.mxu0 0.0
  %869 = vmatprep.subr.mxu0 0.0
  %870 = vmatpush1.msra.mxu0 0.0
  %871 = vmatprep.subr.mxu0 0.0
  %872 = vmatpush1.msra.mxu0 0.0
  %873 = vmatprep.subr.mxu0 0.0
  %874 = vmatpush1.msra.mxu0 0.0
  %875 = vmatprep.subr.mxu0 0.0
  %876 = vmatpush1.msra.mxu0 0.0
  %877 = vmatprep.subr.mxu0 0.0
  %878 = vmatpush1.msra.mxu0 0.0
  %879 = vmatprep.subr.mxu0 0.0
  %880 = vmatpush1.msra.mxu0 0.0
  %881 = vmatprep.subr.mxu0 0.0
  %882 = vmatpush1.msra.mxu0 0.0
  %883 = vmatprep.subr.mxu0 0.0
  %884 = vmatpush1.msra.mxu0 0.0
  %885 = vmatprep.subr.mxu0 0.0
  %886 = vmatpush1.msra.mxu0 0.0
  %887 = vmatprep.subr.mxu0 0.0
  %888 = vmatpush1.msra.mxu0 0.0
  %889 = vmatprep.subr.mxu0 0.0
  %890 = vmatpush1.msra.mxu0 0.0
  %891 = vmatprep.subr.mxu0 0.0
  %892 = vmatpush1.msra.mxu0 0.0
  %893 = vmatprep.subr.mxu0 0.0
  %894 = vmatpush1.msra.mxu0 0.0
  %895 = vmatprep.subr.mxu0 0.0
  %896 = vmatpush1.msra.mxu0 0.0
  %897 = vmatprep.subr.mxu0 0.0
  %898 = vmatpush1.msra.mxu0 0.0
  %899 = vmatprep.subr.mxu0 0.0
  %900 = vmatpush1.msra.mxu0 0.0
  %901 = vmatprep.subr.mxu0 0.0
  %902 = vmatpush1.msra.mxu0 0.0
  %903 = vmatprep.subr.mxu0 0.0
  %904 = vmatpush1.msra.mxu0 0.0
  %905 = vmatprep.subr.mxu0 0.0
  %906 = vmatpush1.msra.mxu0 0.0
  %907 = vmatprep.subr.mxu0 0.0
  %908 = vmatpush1.msra.mxu0 0.0
  %909 = vmatprep.subr.mxu0 0.0
  %910 = vmatpush1.msra.mxu0 0.0
  %911 = vmatprep.subr.mxu0 0.0
  %912 = vmatpush1.msra.mxu0 0.0
  %913 = vmatprep.subr.mxu0 0.0
  %914 = vmatpush1.msra.mxu0 0.0
  %915 = vmatprep.subr.mxu0 0.0
  %916 = vmatpush1.msra.mxu0 0.0
  %917 = vmatprep.subr.mxu0 0.0
  %918 = vmatpush1.msra.mxu0 0.0
  %919 = vmatprep.subr.mxu0 0.0
  %920 = vmatpush1.msra.mxu0 0.0
  %921 = vmatprep.subr.mxu0 0.0
  %922 = vmatpush1.msra.mxu0 0.0
  %923 = vmatprep.subr.mxu0 0.0
  %924 = vmatpush1.msra.mxu0 0.0
  %925 = vmatprep.subr.mxu0 0.0
  %926 = vmatpush1.msra.mxu0 0.0
  %927 = vmatprep.subr.mxu0 0.0
  %928 = vmatpush1.msra.mxu0 0.0
  %929 = vmatprep.mubr.f32.mxu0 0.0
  %930 = vmatmul.mubr.f32.gmra.mrb[0].mxu0 %v851
  %v931 = vpop.f32.mrb[0].mxu0
  %v932 = vadd.f32 0.0, %v931
  %v933 = vpop.f32.mrb[0].mxu0
  %v934 = vadd.f32 0.0, %v933
  %935 = vdwg.mxu0
  %936 = vmatprep.subr.mxu0 %v859
  %937 = vmatpush1.msra.mxu0 %v857
  %938 = vmatprep.subr.mxu0 0.0
  %939 = vmatpush1.msra.mxu0 0.0
  %940 = vmatprep.subr.mxu0 0.0
  %941 = vmatpush1.msra.mxu0 0.0
  %942 = vmatprep.subr.mxu0 0.0
  %943 = vmatpush1.msra.mxu0 0.0
  %944 = vmatprep.subr.mxu0 0.0
  %945 = vmatpush1.msra.mxu0 0.0
  %946 = vmatprep.subr.mxu0 0.0
  %947 = vmatpush1.msra.mxu0 0.0
  %948 = vmatprep.subr.mxu0 0.0
  %949 = vmatpush1.msra.mxu0 0.0
  %950 = vmatprep.subr.mxu0 0.0
  %951 = vmatpush1.msra.mxu0 0.0
  %952 = vmatprep.subr.mxu0 0.0
  %953 = vmatpush1.msra.mxu0 0.0
  %954 = vmatprep.subr.mxu0 0.0
  %955 = vmatpush1.msra.mxu0 0.0
  %956 = vmatprep.subr.mxu0 0.0
  %957 = vmatpush1.msra.mxu0 0.0
  %958 = vmatprep.subr.mxu0 0.0
  %959 = vmatpush1.msra.mxu0 0.0
  %960 = vmatprep.subr.mxu0 0.0
  %961 = vmatpush1.msra.mxu0 0.0
  %962 = vmatprep.subr.mxu0 0.0
  %963 = vmatpush1.msra.mxu0 0.0
  %964 = vmatprep.subr.mxu0 0.0
  %965 = vmatpush1.msra.mxu0 0.0
  %966 = vmatprep.subr.mxu0 0.0
  %967 = vmatpush1.msra.mxu0 0.0
  %968 = vmatprep.subr.mxu0 0.0
  %969 = vmatpush1.msra.mxu0 0.0
  %970 = vmatprep.subr.mxu0 0.0
  %971 = vmatpush1.msra.mxu0 0.0
  %972 = vmatprep.subr.mxu0 0.0
  %973 = vmatpush1.msra.mxu0 0.0
  %974 = vmatprep.subr.mxu0 0.0
  %975 = vmatpush1.msra.mxu0 0.0
  %976 = vmatprep.subr.mxu0 0.0
  %977 = vmatpush1.msra.mxu0 0.0
  %978 = vmatprep.subr.mxu0 0.0
  %979 = vmatpush1.msra.mxu0 0.0
  %980 = vmatprep.subr.mxu0 0.0
  %981 = vmatpush1.msra.mxu0 0.0
  %982 = vmatprep.subr.mxu0 0.0
  %983 = vmatpush1.msra.mxu0 0.0
  %984 = vmatprep.subr.mxu0 0.0
  %985 = vmatpush1.msra.mxu0 0.0
  %986 = vmatprep.subr.mxu0 0.0
  %987 = vmatpush1.msra.mxu0 0.0
  %988 = vmatprep.subr.mxu0 0.0
  %989 = vmatpush1.msra.mxu0 0.0
  %990 = vmatprep.subr.mxu0 0.0
  %991 = vmatpush1.msra.mxu0 0.0
  %992 = vmatprep.subr.mxu0 0.0
  %993 = vmatpush1.msra.mxu0 0.0
  %994 = vmatprep.subr.mxu0 0.0
  %995 = vmatpush1.msra.mxu0 0.0
  %996 = vmatprep.subr.mxu0 0.0
  %997 = vmatpush1.msra.mxu0 0.0
  %998 = vmatprep.subr.mxu0 0.0
  %999 = vmatpush1.msra.mxu0 0.0
  %1000 = vmatprep.mubr.f32.mxu0 0.0
  %1001 = vmatmul.mubr.f32.gmra.mrb[0].mxu0 %v851
  %v1002 = vpop.f32.mrb[0].mxu0
  %v1003 = vadd.f32 0.0, %v1002
  %v1004 = vpop.f32.mrb[0].mxu0
  %v1005 = vadd.f32 0.0, %v1004
  %1006 = vdwg.mxu0
  %1007 = vmatprep.subr.mxu0 %v863
  %1008 = vmatpush1.msra.mxu0 %v861
  %1009 = vmatprep.subr.mxu0 0.0
  %1010 = vmatpush1.msra.mxu0 0.0
  %1011 = vmatprep.subr.mxu0 0.0
  %1012 = vmatpush1.msra.mxu0 0.0
  %1013 = vmatprep.subr.mxu0 0.0
  %1014 = vmatpush1.msra.mxu0 0.0
  %1015 = vmatprep.subr.mxu0 0.0
  %1016 = vmatpush1.msra.mxu0 0.0
  %1017 = vmatprep.subr.mxu0 0.0
  %1018 = vmatpush1.msra.mxu0 0.0
  %1019 = vmatprep.subr.mxu0 0.0
  %1020 = vmatpush1.msra.mxu0 0.0
  %1021 = vmatprep.subr.mxu0 0.0
  %1022 = vmatpush1.msra.mxu0 0.0
  %1023 = vmatprep.subr.mxu0 0.0
  %1024 = vmatpush1.msra.mxu0 0.0
  %1025 = vmatprep.subr.mxu0 0.0
  %1026 = vmatpush1.msra.mxu0 0.0
  %1027 = vmatprep.subr.mxu0 0.0
  %1028 = vmatpush1.msra.mxu0 0.0
  %1029 = vmatprep.subr.mxu0 0.0
  %1030 = vmatpush1.msra.mxu0 0.0
  %1031 = vmatprep.subr.mxu0 0.0
  %1032 = vmatpush1.msra.mxu0 0.0
  %1033 = vmatprep.subr.mxu0 0.0
  %1034 = vmatpush1.msra.mxu0 0.0
  %1035 = vmatprep.subr.mxu0 0.0
  %1036 = vmatpush1.msra.mxu0 0.0
  %1037 = vmatprep.subr.mxu0 0.0
  %1038 = vmatpush1.msra.mxu0 0.0
  %1039 = vmatprep.subr.mxu0 0.0
  %1040 = vmatpush1.msra.mxu0 0.0
  %1041 = vmatprep.subr.mxu0 0.0
  %1042 = vmatpush1.msra.mxu0 0.0
  %1043 = vmatprep.subr.mxu0 0.0
  %1044 = vmatpush1.msra.mxu0 0.0
  %1045 = vmatprep.subr.mxu0 0.0
  %1046 = vmatpush1.msra.mxu0 0.0
  %1047 = vmatprep.subr.mxu0 0.0
  %1048 = vmatpush1.msra.mxu0 0.0
  %1049 = vmatprep.subr.mxu0 0.0
  %1050 = vmatpush1.msra.mxu0 0.0
  %1051 = vmatprep.subr.mxu0 0.0
  %1052 = vmatpush1.msra.mxu0 0.0
  %1053 = vmatprep.subr.mxu0 0.0
  %1054 = vmatpush1.msra.mxu0 0.0
  %1055 = vmatprep.subr.mxu0 0.0
  %1056 = vmatpush1.msra.mxu0 0.0
  %1057 = vmatprep.subr.mxu0 0.0
  %1058 = vmatpush1.msra.mxu0 0.0
  %1059 = vmatprep.subr.mxu0 0.0
  %1060 = vmatpush1.msra.mxu0 0.0
  %1061 = vmatprep.subr.mxu0 0.0
  %1062 = vmatpush1.msra.mxu0 0.0
  %1063 = vmatprep.subr.mxu0 0.0
  %1064 = vmatpush1.msra.mxu0 0.0
  %1065 = vmatprep.subr.mxu0 0.0
  %1066 = vmatpush1.msra.mxu0 0.0
  %1067 = vmatprep.subr.mxu0 0.0
  %1068 = vmatpush1.msra.mxu0 0.0
  %1069 = vmatprep.subr.mxu0 0.0
  %1070 = vmatpush1.msra.mxu0 0.0
  %1071 = vmatprep.mubr.f32.mxu0 0.0
  %1072 = vmatmul.mubr.f32.gmra.mrb[0].mxu0 %v851
  %v1073 = vpop.f32.mrb[0].mxu0
  %v1074 = vadd.f32 0.0, %v1073
  %v1075 = vpop.f32.mrb[0].mxu0
  %v1076 = vadd.f32 0.0, %v1075
  %1077 = vdwg.mxu0
  %v1078 = vadd.f32 %v824, %v932
  %v1079 = vadd.f32 %v825, %v934
  %v1080 = vadd.f32 %v826, %v1003
  %v1081 = vadd.f32 %v827, %v1005
  %v1082 = vadd.f32 %v828, %v1074
  %v1083 = vadd.f32 %v829, %v1076
  %s1084 = scalar_lea.vmem %s3, 32
  %v1085 = vld [vmem:[%s1084] sm:$0x1f]
  %1086 = vrot.lane.b32.xlu0 %v85, 109
  %v1087 = vpop.permute.xlu0 %1086
  %1088 = vrot.lane.b32.xlu0 %v86, 109
  %v1089 = vpop.permute.xlu0 %1088
  %1090 = vrot.lane.b32.xlu0 %v87, 109
  %v1091 = vpop.permute.xlu0 %1090
  %1092 = vrot.lane.b32.xlu0 %v88, 109
  %v1093 = vpop.permute.xlu0 %1092
  %1094 = vrot.lane.b32.xlu0 %v89, 109
  %v1095 = vpop.permute.xlu0 %1094
  %1096 = vrot.lane.b32.xlu0 %v90, 109
  %v1097 = vpop.permute.xlu0 %1096
  %vm1098 = vcmask 891904
  %v1099 = vsel %vm1098, %v1087, %v1089
  %v1100 = vsel %vm1098, %v1089, %v1091
  %v1101 = vsel %vm1098, %v1091, %v1093
  %v1102 = vsel %vm1098, %v1093, %v1095
  %v1103 = vsel %vm1098, %v1095, %v1097
  %v1105 = vsel %vm118, %v1085, 0
  %v1107 = vsel %vm122, %v1099, 0
  %v1109 = vsel %vm122, %v1100, 0
  %v1111 = vsel %vm122, %v1101, 0
  %v1113 = vsel %vm122, %v1102, 0
  %v1115 = vsel %vm122, %v1103, 0
  %v1117 = vsel %vm122, %v1097, 0
  %1119 = vmatprep.subr.mxu0 %v1109
  %1120 = vmatpush1.msra.mxu0 %v1107
  %1121 = vmatprep.subr.mxu0 0.0
  %1122 = vmatpush1.msra.mxu0 0.0
  %1123 = vmatprep.subr.mxu0 0.0
  %1124 = vmatpush1.msra.mxu0 0.0
  %1125 = vmatprep.subr.mxu0 0.0
  %1126 = vmatpush1.msra.mxu0 0.0
  %1127 = vmatprep.subr.mxu0 0.0
  %1128 = vmatpush1.msra.mxu0 0.0
  %1129 = vmatprep.subr.mxu0 0.0
  %1130 = vmatpush1.msra.mxu0 0.0
  %1131 = vmatprep.subr.mxu0 0.0
  %1132 = vmatpush1.msra.mxu0 0.0
  %1133 = vmatprep.subr.mxu0 0.0
  %1134 = vmatpush1.msra.mxu0 0.0
  %1135 = vmatprep.subr.mxu0 0.0
  %1136 = vmatpush1.msra.mxu0 0.0
  %1137 = vmatprep.subr.mxu0 0.0
  %1138 = vmatpush1.msra.mxu0 0.0
  %1139 = vmatprep.subr.mxu0 0.0
  %1140 = vmatpush1.msra.mxu0 0.0
  %1141 = vmatprep.subr.mxu0 0.0
  %1142 = vmatpush1.msra.mxu0 0.0
  %1143 = vmatprep.subr.mxu0 0.0
  %1144 = vmatpush1.msra.mxu0 0.0
  %1145 = vmatprep.subr.mxu0 0.0
  %1146 = vmatpush1.msra.mxu0 0.0
  %1147 = vmatprep.subr.mxu0 0.0
  %1148 = vmatpush1.msra.mxu0 0.0
  %1149 = vmatprep.subr.mxu0 0.0
  %1150 = vmatpush1.msra.mxu0 0.0
  %1151 = vmatprep.subr.mxu0 0.0
  %1152 = vmatpush1.msra.mxu0 0.0
  %1153 = vmatprep.subr.mxu0 0.0
  %1154 = vmatpush1.msra.mxu0 0.0
  %1155 = vmatprep.subr.mxu0 0.0
  %1156 = vmatpush1.msra.mxu0 0.0
  %1157 = vmatprep.subr.mxu0 0.0
  %1158 = vmatpush1.msra.mxu0 0.0
  %1159 = vmatprep.subr.mxu0 0.0
  %1160 = vmatpush1.msra.mxu0 0.0
  %1161 = vmatprep.subr.mxu0 0.0
  %1162 = vmatpush1.msra.mxu0 0.0
  %1163 = vmatprep.subr.mxu0 0.0
  %1164 = vmatpush1.msra.mxu0 0.0
  %1165 = vmatprep.subr.mxu0 0.0
  %1166 = vmatpush1.msra.mxu0 0.0
  %1167 = vmatprep.subr.mxu0 0.0
  %1168 = vmatpush1.msra.mxu0 0.0
  %1169 = vmatprep.subr.mxu0 0.0
  %1170 = vmatpush1.msra.mxu0 0.0
  %1171 = vmatprep.subr.mxu0 0.0
  %1172 = vmatpush1.msra.mxu0 0.0
  %1173 = vmatprep.subr.mxu0 0.0
  %1174 = vmatpush1.msra.mxu0 0.0
  %1175 = vmatprep.subr.mxu0 0.0
  %1176 = vmatpush1.msra.mxu0 0.0
  %1177 = vmatprep.subr.mxu0 0.0
  %1178 = vmatpush1.msra.mxu0 0.0
  %1179 = vmatprep.subr.mxu0 0.0
  %1180 = vmatpush1.msra.mxu0 0.0
  %1181 = vmatprep.subr.mxu0 0.0
  %1182 = vmatpush1.msra.mxu0 0.0
  %1183 = vmatprep.mubr.f32.mxu0 0.0
  %1184 = vmatmul.mubr.f32.gmra.mrb[0].mxu0 %v1105
  %v1185 = vpop.f32.mrb[0].mxu0
  %v1186 = vadd.f32 0.0, %v1185
  %v1187 = vpop.f32.mrb[0].mxu0
  %v1188 = vadd.f32 0.0, %v1187
  %1189 = vdwg.mxu0
  %1190 = vmatprep.subr.mxu0 %v1113
  %1191 = vmatpush1.msra.mxu0 %v1111
  %1192 = vmatprep.subr.mxu0 0.0
  %1193 = vmatpush1.msra.mxu0 0.0
  %1194 = vmatprep.subr.mxu0 0.0
  %1195 = vmatpush1.msra.mxu0 0.0
  %1196 = vmatprep.subr.mxu0 0.0
  %1197 = vmatpush1.msra.mxu0 0.0
  %1198 = vmatprep.subr.mxu0 0.0
  %1199 = vmatpush1.msra.mxu0 0.0
  %1200 = vmatprep.subr.mxu0 0.0
  %1201 = vmatpush1.msra.mxu0 0.0
  %1202 = vmatprep.subr.mxu0 0.0
  %1203 = vmatpush1.msra.mxu0 0.0
  %1204 = vmatprep.subr.mxu0 0.0
  %1205 = vmatpush1.msra.mxu0 0.0
  %1206 = vmatprep.subr.mxu0 0.0
  %1207 = vmatpush1.msra.mxu0 0.0
  %1208 = vmatprep.subr.mxu0 0.0
  %1209 = vmatpush1.msra.mxu0 0.0
  %1210 = vmatprep.subr.mxu0 0.0
  %1211 = vmatpush1.msra.mxu0 0.0
  %1212 = vmatprep.subr.mxu0 0.0
  %1213 = vmatpush1.msra.mxu0 0.0
  %1214 = vmatprep.subr.mxu0 0.0
  %1215 = vmatpush1.msra.mxu0 0.0
  %1216 = vmatprep.subr.mxu0 0.0
  %1217 = vmatpush1.msra.mxu0 0.0
  %1218 = vmatprep.subr.mxu0 0.0
  %1219 = vmatpush1.msra.mxu0 0.0
  %1220 = vmatprep.subr.mxu0 0.0
  %1221 = vmatpush1.msra.mxu0 0.0
  %1222 = vmatprep.subr.mxu0 0.0
  %1223 = vmatpush1.msra.mxu0 0.0
  %1224 = vmatprep.subr.mxu0 0.0
  %1225 = vmatpush1.msra.mxu0 0.0
  %1226 = vmatprep.subr.mxu0 0.0
  %1227 = vmatpush1.msra.mxu0 0.0
  %1228 = vmatprep.subr.mxu0 0.0
  %1229 = vmatpush1.msra.mxu0 0.0
  %1230 = vmatprep.subr.mxu0 0.0
  %1231 = vmatpush1.msra.mxu0 0.0
  %1232 = vmatprep.subr.mxu0 0.0
  %1233 = vmatpush1.msra.mxu0 0.0
  %1234 = vmatprep.subr.mxu0 0.0
  %1235 = vmatpush1.msra.mxu0 0.0
  %1236 = vmatprep.subr.mxu0 0.0
  %1237 = vmatpush1.msra.mxu0 0.0
  %1238 = vmatprep.subr.mxu0 0.0
  %1239 = vmatpush1.msra.mxu0 0.0
  %1240 = vmatprep.subr.mxu0 0.0
  %1241 = vmatpush1.msra.mxu0 0.0
  %1242 = vmatprep.subr.mxu0 0.0
  %1243 = vmatpush1.msra.mxu0 0.0
  %1244 = vmatprep.subr.mxu0 0.0
  %1245 = vmatpush1.msra.mxu0 0.0
  %1246 = vmatprep.subr.mxu0 0.0
  %1247 = vmatpush1.msra.mxu0 0.0
  %1248 = vmatprep.subr.mxu0 0.0
  %1249 = vmatpush1.msra.mxu0 0.0
  %1250 = vmatprep.subr.mxu0 0.0
  %1251 = vmatpush1.msra.mxu0 0.0
  %1252 = vmatprep.subr.mxu0 0.0
  %1253 = vmatpush1.msra.mxu0 0.0
  %1254 = vmatprep.mubr.f32.mxu0 0.0
  %1255 = vmatmul.mubr.f32.gmra.mrb[0].mxu0 %v1105
  %v1256 = vpop.f32.mrb[0].mxu0
  %v1257 = vadd.f32 0.0, %v1256
  %v1258 = vpop.f32.mrb[0].mxu0
  %v1259 = vadd.f32 0.0, %v1258
  %1260 = vdwg.mxu0
  %1261 = vmatprep.subr.mxu0 %v1117
  %1262 = vmatpush1.msra.mxu0 %v1115
  %1263 = vmatprep.subr.mxu0 0.0
  %1264 = vmatpush1.msra.mxu0 0.0
  %1265 = vmatprep.subr.mxu0 0.0
  %1266 = vmatpush1.msra.mxu0 0.0
  %1267 = vmatprep.subr.mxu0 0.0
  %1268 = vmatpush1.msra.mxu0 0.0
  %1269 = vmatprep.subr.mxu0 0.0
  %1270 = vmatpush1.msra.mxu0 0.0
  %1271 = vmatprep.subr.mxu0 0.0
  %1272 = vmatpush1.msra.mxu0 0.0
  %1273 = vmatprep.subr.mxu0 0.0
  %1274 = vmatpush1.msra.mxu0 0.0
  %1275 = vmatprep.subr.mxu0 0.0
  %1276 = vmatpush1.msra.mxu0 0.0
  %1277 = vmatprep.subr.mxu0 0.0
  %1278 = vmatpush1.msra.mxu0 0.0
  %1279 = vmatprep.subr.mxu0 0.0
  %1280 = vmatpush1.msra.mxu0 0.0
  %1281 = vmatprep.subr.mxu0 0.0
  %1282 = vmatpush1.msra.mxu0 0.0
  %1283 = vmatprep.subr.mxu0 0.0
  %1284 = vmatpush1.msra.mxu0 0.0
  %1285 = vmatprep.subr.mxu0 0.0
  %1286 = vmatpush1.msra.mxu0 0.0
  %1287 = vmatprep.subr.mxu0 0.0
  %1288 = vmatpush1.msra.mxu0 0.0
  %1289 = vmatprep.subr.mxu0 0.0
  %1290 = vmatpush1.msra.mxu0 0.0
  %1291 = vmatprep.subr.mxu0 0.0
  %1292 = vmatpush1.msra.mxu0 0.0
  %1293 = vmatprep.subr.mxu0 0.0
  %1294 = vmatpush1.msra.mxu0 0.0
  %1295 = vmatprep.subr.mxu0 0.0
  %1296 = vmatpush1.msra.mxu0 0.0
  %1297 = vmatprep.subr.mxu0 0.0
  %1298 = vmatpush1.msra.mxu0 0.0
  %1299 = vmatprep.subr.mxu0 0.0
  %1300 = vmatpush1.msra.mxu0 0.0
  %1301 = vmatprep.subr.mxu0 0.0
  %1302 = vmatpush1.msra.mxu0 0.0
  %1303 = vmatprep.subr.mxu0 0.0
  %1304 = vmatpush1.msra.mxu0 0.0
  %1305 = vmatprep.subr.mxu0 0.0
  %1306 = vmatpush1.msra.mxu0 0.0
  %1307 = vmatprep.subr.mxu0 0.0
  %1308 = vmatpush1.msra.mxu0 0.0
  %1309 = vmatprep.subr.mxu0 0.0
  %1310 = vmatpush1.msra.mxu0 0.0
  %1311 = vmatprep.subr.mxu0 0.0
  %1312 = vmatpush1.msra.mxu0 0.0
  %1313 = vmatprep.subr.mxu0 0.0
  %1314 = vmatpush1.msra.mxu0 0.0
  %1315 = vmatprep.subr.mxu0 0.0
  %1316 = vmatpush1.msra.mxu0 0.0
  %1317 = vmatprep.subr.mxu0 0.0
  %1318 = vmatpush1.msra.mxu0 0.0
  %1319 = vmatprep.subr.mxu0 0.0
  %1320 = vmatpush1.msra.mxu0 0.0
  %1321 = vmatprep.subr.mxu0 0.0
  %1322 = vmatpush1.msra.mxu0 0.0
  %1323 = vmatprep.subr.mxu0 0.0
  %1324 = vmatpush1.msra.mxu0 0.0
  %1325 = vmatprep.mubr.f32.mxu0 0.0
  %1326 = vmatmul.mubr.f32.gmra.mrb[0].mxu0 %v1105
  %v1327 = vpop.f32.mrb[0].mxu0
  %v1328 = vadd.f32 0.0, %v1327
  %v1329 = vpop.f32.mrb[0].mxu0
  %v1330 = vadd.f32 0.0, %v1329
  %1331 = vdwg.mxu0
  %v1332 = vadd.f32 %v1078, %v1186
  %v1333 = vadd.f32 %v1079, %v1188
  %v1334 = vadd.f32 %v1080, %v1257
  %v1335 = vadd.f32 %v1081, %v1259
  %v1336 = vadd.f32 %v1082, %v1328
  %v1337 = vadd.f32 %v1083, %v1330
  %s1338 = scalar_lea.vmem %s3, 40
  %v1339 = vld [vmem:[%s1338] sm:$0x1f]
  %1340 = vrot.lane.b32.xlu0 %v85, 108
  %v1341 = vpop.permute.xlu0 %1340
  %1342 = vrot.lane.b32.xlu0 %v86, 108
  %v1343 = vpop.permute.xlu0 %1342
  %1344 = vrot.lane.b32.xlu0 %v87, 108
  %v1345 = vpop.permute.xlu0 %1344
  %1346 = vrot.lane.b32.xlu0 %v88, 108
  %v1347 = vpop.permute.xlu0 %1346
  %1348 = vrot.lane.b32.xlu0 %v89, 108
  %v1349 = vpop.permute.xlu0 %1348
  %1350 = vrot.lane.b32.xlu0 %v90, 108
  %v1351 = vpop.permute.xlu0 %1350
  %vm1352 = vcmask 883712
  %v1353 = vsel %vm1352, %v1341, %v1343
  %v1354 = vsel %vm1352, %v1343, %v1345
  %v1355 = vsel %vm1352, %v1345, %v1347
  %v1356 = vsel %vm1352, %v1347, %v1349
  %v1357 = vsel %vm1352, %v1349, %v1351
  %v1359 = vsel %vm118, %v1339, 0
  %v1361 = vsel %vm122, %v1353, 0
  %v1363 = vsel %vm122, %v1354, 0
  %v1365 = vsel %vm122, %v1355, 0
  %v1367 = vsel %vm122, %v1356, 0
  %v1369 = vsel %vm122, %v1357, 0
  %v1371 = vsel %vm122, %v1351, 0
  %1373 = vmatprep.subr.mxu0 %v1363
  %1374 = vmatpush1.msra.mxu0 %v1361
  %1375 = vmatprep.subr.mxu0 0.0
  %1376 = vmatpush1.msra.mxu0 0.0
  %1377 = vmatprep.subr.mxu0 0.0
  %1378 = vmatpush1.msra.mxu0 0.0
  %1379 = vmatprep.subr.mxu0 0.0
  %1380 = vmatpush1.msra.mxu0 0.0
  %1381 = vmatprep.subr.mxu0 0.0
  %1382 = vmatpush1.msra.mxu0 0.0
  %1383 = vmatprep.subr.mxu0 0.0
  %1384 = vmatpush1.msra.mxu0 0.0
  %1385 = vmatprep.subr.mxu0 0.0
  %1386 = vmatpush1.msra.mxu0 0.0
  %1387 = vmatprep.subr.mxu0 0.0
  %1388 = vmatpush1.msra.mxu0 0.0
  %1389 = vmatprep.subr.mxu0 0.0
  %1390 = vmatpush1.msra.mxu0 0.0
  %1391 = vmatprep.subr.mxu0 0.0
  %1392 = vmatpush1.msra.mxu0 0.0
  %1393 = vmatprep.subr.mxu0 0.0
  %1394 = vmatpush1.msra.mxu0 0.0
  %1395 = vmatprep.subr.mxu0 0.0
  %1396 = vmatpush1.msra.mxu0 0.0
  %1397 = vmatprep.subr.mxu0 0.0
  %1398 = vmatpush1.msra.mxu0 0.0
  %1399 = vmatprep.subr.mxu0 0.0
  %1400 = vmatpush1.msra.mxu0 0.0
  %1401 = vmatprep.subr.mxu0 0.0
  %1402 = vmatpush1.msra.mxu0 0.0
  %1403 = vmatprep.subr.mxu0 0.0
  %1404 = vmatpush1.msra.mxu0 0.0
  %1405 = vmatprep.subr.mxu0 0.0
  %1406 = vmatpush1.msra.mxu0 0.0
  %1407 = vmatprep.subr.mxu0 0.0
  %1408 = vmatpush1.msra.mxu0 0.0
  %1409 = vmatprep.subr.mxu0 0.0
  %1410 = vmatpush1.msra.mxu0 0.0
  %1411 = vmatprep.subr.mxu0 0.0
  %1412 = vmatpush1.msra.mxu0 0.0
  %1413 = vmatprep.subr.mxu0 0.0
  %1414 = vmatpush1.msra.mxu0 0.0
  %1415 = vmatprep.subr.mxu0 0.0
  %1416 = vmatpush1.msra.mxu0 0.0
  %1417 = vmatprep.subr.mxu0 0.0
  %1418 = vmatpush1.msra.mxu0 0.0
  %1419 = vmatprep.subr.mxu0 0.0
  %1420 = vmatpush1.msra.mxu0 0.0
  %1421 = vmatprep.subr.mxu0 0.0
  %1422 = vmatpush1.msra.mxu0 0.0
  %1423 = vmatprep.subr.mxu0 0.0
  %1424 = vmatpush1.msra.mxu0 0.0
  %1425 = vmatprep.subr.mxu0 0.0
  %1426 = vmatpush1.msra.mxu0 0.0
  %1427 = vmatprep.subr.mxu0 0.0
  %1428 = vmatpush1.msra.mxu0 0.0
  %1429 = vmatprep.subr.mxu0 0.0
  %1430 = vmatpush1.msra.mxu0 0.0
  %1431 = vmatprep.subr.mxu0 0.0
  %1432 = vmatpush1.msra.mxu0 0.0
  %1433 = vmatprep.subr.mxu0 0.0
  %1434 = vmatpush1.msra.mxu0 0.0
  %1435 = vmatprep.subr.mxu0 0.0
  %1436 = vmatpush1.msra.mxu0 0.0
  %1437 = vmatprep.mubr.f32.mxu0 0.0
  %1438 = vmatmul.mubr.f32.gmra.mrb[0].mxu0 %v1359
  %v1439 = vpop.f32.mrb[0].mxu0
  %v1440 = vadd.f32 0.0, %v1439
  %v1441 = vpop.f32.mrb[0].mxu0
  %v1442 = vadd.f32 0.0, %v1441
  %1443 = vdwg.mxu0
  %1444 = vmatprep.subr.mxu0 %v1367
  %1445 = vmatpush1.msra.mxu0 %v1365
  %1446 = vmatprep.subr.mxu0 0.0
  %1447 = vmatpush1.msra.mxu0 0.0
  %1448 = vmatprep.subr.mxu0 0.0
  %1449 = vmatpush1.msra.mxu0 0.0
  %1450 = vmatprep.subr.mxu0 0.0
  %1451 = vmatpush1.msra.mxu0 0.0
  %1452 = vmatprep.subr.mxu0 0.0
  %1453 = vmatpush1.msra.mxu0 0.0
  %1454 = vmatprep.subr.mxu0 0.0
  %1455 = vmatpush1.msra.mxu0 0.0
  %1456 = vmatprep.subr.mxu0 0.0
  %1457 = vmatpush1.msra.mxu0 0.0
  %1458 = vmatprep.subr.mxu0 0.0
  %1459 = vmatpush1.msra.mxu0 0.0
  %1460 = vmatprep.subr.mxu0 0.0
  %1461 = vmatpush1.msra.mxu0 0.0
  %1462 = vmatprep.subr.mxu0 0.0
  %1463 = vmatpush1.msra.mxu0 0.0
  %1464 = vmatprep.subr.mxu0 0.0
  %1465 = vmatpush1.msra.mxu0 0.0
  %1466 = vmatprep.subr.mxu0 0.0
  %1467 = vmatpush1.msra.mxu0 0.0
  %1468 = vmatprep.subr.mxu0 0.0
  %1469 = vmatpush1.msra.mxu0 0.0
  %1470 = vmatprep.subr.mxu0 0.0
  %1471 = vmatpush1.msra.mxu0 0.0
  %1472 = vmatprep.subr.mxu0 0.0
  %1473 = vmatpush1.msra.mxu0 0.0
  %1474 = vmatprep.subr.mxu0 0.0
  %1475 = vmatpush1.msra.mxu0 0.0
  %1476 = vmatprep.subr.mxu0 0.0
  %1477 = vmatpush1.msra.mxu0 0.0
  %1478 = vmatprep.subr.mxu0 0.0
  %1479 = vmatpush1.msra.mxu0 0.0
  %1480 = vmatprep.subr.mxu0 0.0
  %1481 = vmatpush1.msra.mxu0 0.0
  %1482 = vmatprep.subr.mxu0 0.0
  %1483 = vmatpush1.msra.mxu0 0.0
  %1484 = vmatprep.subr.mxu0 0.0
  %1485 = vmatpush1.msra.mxu0 0.0
  %1486 = vmatprep.subr.mxu0 0.0
  %1487 = vmatpush1.msra.mxu0 0.0
  %1488 = vmatprep.subr.mxu0 0.0
  %1489 = vmatpush1.msra.mxu0 0.0
  %1490 = vmatprep.subr.mxu0 0.0
  %1491 = vmatpush1.msra.mxu0 0.0
  %1492 = vmatprep.subr.mxu0 0.0
  %1493 = vmatpush1.msra.mxu0 0.0
  %1494 = vmatprep.subr.mxu0 0.0
  %1495 = vmatpush1.msra.mxu0 0.0
  %1496 = vmatprep.subr.mxu0 0.0
  %1497 = vmatpush1.msra.mxu0 0.0
  %1498 = vmatprep.subr.mxu0 0.0
  %1499 = vmatpush1.msra.mxu0 0.0
  %1500 = vmatprep.subr.mxu0 0.0
  %1501 = vmatpush1.msra.mxu0 0.0
  %1502 = vmatprep.subr.mxu0 0.0
  %1503 = vmatpush1.msra.mxu0 0.0
  %1504 = vmatprep.subr.mxu0 0.0
  %1505 = vmatpush1.msra.mxu0 0.0
  %1506 = vmatprep.subr.mxu0 0.0
  %1507 = vmatpush1.msra.mxu0 0.0
  %1508 = vmatprep.mubr.f32.mxu0 0.0
  %1509 = vmatmul.mubr.f32.gmra.mrb[0].mxu0 %v1359
  %v1510 = vpop.f32.mrb[0].mxu0
  %v1511 = vadd.f32 0.0, %v1510
  %v1512 = vpop.f32.mrb[0].mxu0
  %v1513 = vadd.f32 0.0, %v1512
  %1514 = vdwg.mxu0
  %1515 = vmatprep.subr.mxu0 %v1371
  %1516 = vmatpush1.msra.mxu0 %v1369
  %1517 = vmatprep.subr.mxu0 0.0
  %1518 = vmatpush1.msra.mxu0 0.0
  %1519 = vmatprep.subr.mxu0 0.0
  %1520 = vmatpush1.msra.mxu0 0.0
  %1521 = vmatprep.subr.mxu0 0.0
  %1522 = vmatpush1.msra.mxu0 0.0
  %1523 = vmatprep.subr.mxu0 0.0
  %1524 = vmatpush1.msra.mxu0 0.0
  %1525 = vmatprep.subr.mxu0 0.0
  %1526 = vmatpush1.msra.mxu0 0.0
  %1527 = vmatprep.subr.mxu0 0.0
  %1528 = vmatpush1.msra.mxu0 0.0
  %1529 = vmatprep.subr.mxu0 0.0
  %1530 = vmatpush1.msra.mxu0 0.0
  %1531 = vmatprep.subr.mxu0 0.0
  %1532 = vmatpush1.msra.mxu0 0.0
  %1533 = vmatprep.subr.mxu0 0.0
  %1534 = vmatpush1.msra.mxu0 0.0
  %1535 = vmatprep.subr.mxu0 0.0
  %1536 = vmatpush1.msra.mxu0 0.0
  %1537 = vmatprep.subr.mxu0 0.0
  %1538 = vmatpush1.msra.mxu0 0.0
  %1539 = vmatprep.subr.mxu0 0.0
  %1540 = vmatpush1.msra.mxu0 0.0
  %1541 = vmatprep.subr.mxu0 0.0
  %1542 = vmatpush1.msra.mxu0 0.0
  %1543 = vmatprep.subr.mxu0 0.0
  %1544 = vmatpush1.msra.mxu0 0.0
  %1545 = vmatprep.subr.mxu0 0.0
  %1546 = vmatpush1.msra.mxu0 0.0
  %1547 = vmatprep.subr.mxu0 0.0
  %1548 = vmatpush1.msra.mxu0 0.0
  %1549 = vmatprep.subr.mxu0 0.0
  %1550 = vmatpush1.msra.mxu0 0.0
  %1551 = vmatprep.subr.mxu0 0.0
  %1552 = vmatpush1.msra.mxu0 0.0
  %1553 = vmatprep.subr.mxu0 0.0
  %1554 = vmatpush1.msra.mxu0 0.0
  %1555 = vmatprep.subr.mxu0 0.0
  %1556 = vmatpush1.msra.mxu0 0.0
  %1557 = vmatprep.subr.mxu0 0.0
  %1558 = vmatpush1.msra.mxu0 0.0
  %1559 = vmatprep.subr.mxu0 0.0
  %1560 = vmatpush1.msra.mxu0 0.0
  %1561 = vmatprep.subr.mxu0 0.0
  %1562 = vmatpush1.msra.mxu0 0.0
  %1563 = vmatprep.subr.mxu0 0.0
  %1564 = vmatpush1.msra.mxu0 0.0
  %1565 = vmatprep.subr.mxu0 0.0
  %1566 = vmatpush1.msra.mxu0 0.0
  %1567 = vmatprep.subr.mxu0 0.0
  %1568 = vmatpush1.msra.mxu0 0.0
  %1569 = vmatprep.subr.mxu0 0.0
  %1570 = vmatpush1.msra.mxu0 0.0
  %1571 = vmatprep.subr.mxu0 0.0
  %1572 = vmatpush1.msra.mxu0 0.0
  %1573 = vmatprep.subr.mxu0 0.0
  %1574 = vmatpush1.msra.mxu0 0.0
  %1575 = vmatprep.subr.mxu0 0.0
  %1576 = vmatpush1.msra.mxu0 0.0
  %1577 = vmatprep.subr.mxu0 0.0
  %1578 = vmatpush1.msra.mxu0 0.0
  %1579 = vmatprep.mubr.f32.mxu0 0.0
  %1580 = vmatmul.mubr.f32.gmra.mrb[0].mxu0 %v1359
  %v1581 = vpop.f32.mrb[0].mxu0
  %v1582 = vadd.f32 0.0, %v1581
  %v1583 = vpop.f32.mrb[0].mxu0
  %v1584 = vadd.f32 0.0, %v1583
  %1585 = vdwg.mxu0
  %v1586 = vadd.f32 %v1332, %v1440
  %v1587 = vadd.f32 %v1333, %v1442
  %v1588 = vadd.f32 %v1334, %v1511
  %v1589 = vadd.f32 %v1335, %v1513
  %v1590 = vadd.f32 %v1336, %v1582
  %v1591 = vadd.f32 %v1337, %v1584
  %s1592 = scalar_lea.vmem %s3, 48
  %v1593 = vld [vmem:[%s1592] sm:$0x1f]
  %1594 = vrot.lane.b32.xlu0 %v85, 92
  %v1595 = vpop.permute.xlu0 %1594
  %1596 = vrot.lane.b32.xlu0 %v86, 92
  %v1597 = vpop.permute.xlu0 %1596
  %1598 = vrot.lane.b32.xlu0 %v87, 92
  %v1599 = vpop.permute.xlu0 %1598
  %1600 = vrot.lane.b32.xlu0 %v88, 92
  %v1601 = vpop.permute.xlu0 %1600
  %1602 = vrot.lane.b32.xlu0 %v89, 92
  %v1603 = vpop.permute.xlu0 %1602
  %1604 = vrot.lane.b32.xlu0 %v90, 92
  %v1605 = vpop.permute.xlu0 %1604
  %vm1606 = vcmask 752640
  %v1607 = vsel %vm1606, %v1595, %v1597
  %v1608 = vsel %vm1606, %v1597, %v1599
  %v1609 = vsel %vm1606, %v1599, %v1601
  %v1610 = vsel %vm1606, %v1601, %v1603
  %v1611 = vsel %vm1606, %v1603, %v1605
  %v1613 = vsel %vm118, %v1593, 0
  %v1615 = vsel %vm122, %v1607, 0
  %v1617 = vsel %vm122, %v1608, 0
  %v1619 = vsel %vm122, %v1609, 0
  %v1621 = vsel %vm122, %v1610, 0
  %v1623 = vsel %vm122, %v1611, 0
  %v1625 = vsel %vm122, %v1605, 0
  %1627 = vmatprep.subr.mxu0 %v1617
  %1628 = vmatpush1.msra.mxu0 %v1615
  %1629 = vmatprep.subr.mxu0 0.0
  %1630 = vmatpush1.msra.mxu0 0.0
  %1631 = vmatprep.subr.mxu0 0.0
  %1632 = vmatpush1.msra.mxu0 0.0
  %1633 = vmatprep.subr.mxu0 0.0
  %1634 = vmatpush1.msra.mxu0 0.0
  %1635 = vmatprep.subr.mxu0 0.0
  %1636 = vmatpush1.msra.mxu0 0.0
  %1637 = vmatprep.subr.mxu0 0.0
  %1638 = vmatpush1.msra.mxu0 0.0
  %1639 = vmatprep.subr.mxu0 0.0
  %1640 = vmatpush1.msra.mxu0 0.0
  %1641 = vmatprep.subr.mxu0 0.0
  %1642 = vmatpush1.msra.mxu0 0.0
  %1643 = vmatprep.subr.mxu0 0.0
  %1644 = vmatpush1.msra.mxu0 0.0
  %1645 = vmatprep.subr.mxu0 0.0
  %1646 = vmatpush1.msra.mxu0 0.0
  %1647 = vmatprep.subr.mxu0 0.0
  %1648 = vmatpush1.msra.mxu0 0.0
  %1649 = vmatprep.subr.mxu0 0.0
  %1650 = vmatpush1.msra.mxu0 0.0
  %1651 = vmatprep.subr.mxu0 0.0
  %1652 = vmatpush1.msra.mxu0 0.0
  %1653 = vmatprep.subr.mxu0 0.0
  %1654 = vmatpush1.msra.mxu0 0.0
  %1655 = vmatprep.subr.mxu0 0.0
  %1656 = vmatpush1.msra.mxu0 0.0
  %1657 = vmatprep.subr.mxu0 0.0
  %1658 = vmatpush1.msra.mxu0 0.0
  %1659 = vmatprep.subr.mxu0 0.0
  %1660 = vmatpush1.msra.mxu0 0.0
  %1661 = vmatprep.subr.mxu0 0.0
  %1662 = vmatpush1.msra.mxu0 0.0
  %1663 = vmatprep.subr.mxu0 0.0
  %1664 = vmatpush1.msra.mxu0 0.0
  %1665 = vmatprep.subr.mxu0 0.0
  %1666 = vmatpush1.msra.mxu0 0.0
  %1667 = vmatprep.subr.mxu0 0.0
  %1668 = vmatpush1.msra.mxu0 0.0
  %1669 = vmatprep.subr.mxu0 0.0
  %1670 = vmatpush1.msra.mxu0 0.0
  %1671 = vmatprep.subr.mxu0 0.0
  %1672 = vmatpush1.msra.mxu0 0.0
  %1673 = vmatprep.subr.mxu0 0.0
  %1674 = vmatpush1.msra.mxu0 0.0
  %1675 = vmatprep.subr.mxu0 0.0
  %1676 = vmatpush1.msra.mxu0 0.0
  %1677 = vmatprep.subr.mxu0 0.0
  %1678 = vmatpush1.msra.mxu0 0.0
  %1679 = vmatprep.subr.mxu0 0.0
  %1680 = vmatpush1.msra.mxu0 0.0
  %1681 = vmatprep.subr.mxu0 0.0
  %1682 = vmatpush1.msra.mxu0 0.0
  %1683 = vmatprep.subr.mxu0 0.0
  %1684 = vmatpush1.msra.mxu0 0.0
  %1685 = vmatprep.subr.mxu0 0.0
  %1686 = vmatpush1.msra.mxu0 0.0
  %1687 = vmatprep.subr.mxu0 0.0
  %1688 = vmatpush1.msra.mxu0 0.0
  %1689 = vmatprep.subr.mxu0 0.0
  %1690 = vmatpush1.msra.mxu0 0.0
  %1691 = vmatprep.mubr.f32.mxu0 0.0
  %1692 = vmatmul.mubr.f32.gmra.mrb[0].mxu0 %v1613
  %v1693 = vpop.f32.mrb[0].mxu0
  %v1694 = vadd.f32 0.0, %v1693
  %v1695 = vpop.f32.mrb[0].mxu0
  %v1696 = vadd.f32 0.0, %v1695
  %1697 = vdwg.mxu0
  %1698 = vmatprep.subr.mxu0 %v1621
  %1699 = vmatpush1.msra.mxu0 %v1619
  %1700 = vmatprep.subr.mxu0 0.0
  %1701 = vmatpush1.msra.mxu0 0.0
  %1702 = vmatprep.subr.mxu0 0.0
  %1703 = vmatpush1.msra.mxu0 0.0
  %1704 = vmatprep.subr.mxu0 0.0
  %1705 = vmatpush1.msra.mxu0 0.0
  %1706 = vmatprep.subr.mxu0 0.0
  %1707 = vmatpush1.msra.mxu0 0.0
  %1708 = vmatprep.subr.mxu0 0.0
  %1709 = vmatpush1.msra.mxu0 0.0
  %1710 = vmatprep.subr.mxu0 0.0
  %1711 = vmatpush1.msra.mxu0 0.0
  %1712 = vmatprep.subr.mxu0 0.0
  %1713 = vmatpush1.msra.mxu0 0.0
  %1714 = vmatprep.subr.mxu0 0.0
  %1715 = vmatpush1.msra.mxu0 0.0
  %1716 = vmatprep.subr.mxu0 0.0
  %1717 = vmatpush1.msra.mxu0 0.0
  %1718 = vmatprep.subr.mxu0 0.0
  %1719 = vmatpush1.msra.mxu0 0.0
  %1720 = vmatprep.subr.mxu0 0.0
  %1721 = vmatpush1.msra.mxu0 0.0
  %1722 = vmatprep.subr.mxu0 0.0
  %1723 = vmatpush1.msra.mxu0 0.0
  %1724 = vmatprep.subr.mxu0 0.0
  %1725 = vmatpush1.msra.mxu0 0.0
  %1726 = vmatprep.subr.mxu0 0.0
  %1727 = vmatpush1.msra.mxu0 0.0
  %1728 = vmatprep.subr.mxu0 0.0
  %1729 = vmatpush1.msra.mxu0 0.0
  %1730 = vmatprep.subr.mxu0 0.0
  %1731 = vmatpush1.msra.mxu0 0.0
  %1732 = vmatprep.subr.mxu0 0.0
  %1733 = vmatpush1.msra.mxu0 0.0
  %1734 = vmatprep.subr.mxu0 0.0
  %1735 = vmatpush1.msra.mxu0 0.0
  %1736 = vmatprep.subr.mxu0 0.0
  %1737 = vmatpush1.msra.mxu0 0.0
  %1738 = vmatprep.subr.mxu0 0.0
  %1739 = vmatpush1.msra.mxu0 0.0
  %1740 = vmatprep.subr.mxu0 0.0
  %1741 = vmatpush1.msra.mxu0 0.0
  %1742 = vmatprep.subr.mxu0 0.0
  %1743 = vmatpush1.msra.mxu0 0.0
  %1744 = vmatprep.subr.mxu0 0.0
  %1745 = vmatpush1.msra.mxu0 0.0
  %1746 = vmatprep.subr.mxu0 0.0
  %1747 = vmatpush1.msra.mxu0 0.0
  %1748 = vmatprep.subr.mxu0 0.0
  %1749 = vmatpush1.msra.mxu0 0.0
  %1750 = vmatprep.subr.mxu0 0.0
  %1751 = vmatpush1.msra.mxu0 0.0
  %1752 = vmatprep.subr.mxu0 0.0
  %1753 = vmatpush1.msra.mxu0 0.0
  %1754 = vmatprep.subr.mxu0 0.0
  %1755 = vmatpush1.msra.mxu0 0.0
  %1756 = vmatprep.subr.mxu0 0.0
  %1757 = vmatpush1.msra.mxu0 0.0
  %1758 = vmatprep.subr.mxu0 0.0
  %1759 = vmatpush1.msra.mxu0 0.0
  %1760 = vmatprep.subr.mxu0 0.0
  %1761 = vmatpush1.msra.mxu0 0.0
  %1762 = vmatprep.mubr.f32.mxu0 0.0
  %1763 = vmatmul.mubr.f32.gmra.mrb[0].mxu0 %v1613
  %v1764 = vpop.f32.mrb[0].mxu0
  %v1765 = vadd.f32 0.0, %v1764
  %v1766 = vpop.f32.mrb[0].mxu0
  %v1767 = vadd.f32 0.0, %v1766
  %1768 = vdwg.mxu0
  %1769 = vmatprep.subr.mxu0 %v1625
  %1770 = vmatpush1.msra.mxu0 %v1623
  %1771 = vmatprep.subr.mxu0 0.0
  %1772 = vmatpush1.msra.mxu0 0.0
  %1773 = vmatprep.subr.mxu0 0.0
  %1774 = vmatpush1.msra.mxu0 0.0
  %1775 = vmatprep.subr.mxu0 0.0
  %1776 = vmatpush1.msra.mxu0 0.0
  %1777 = vmatprep.subr.mxu0 0.0
  %1778 = vmatpush1.msra.mxu0 0.0
  %1779 = vmatprep.subr.mxu0 0.0
  %1780 = vmatpush1.msra.mxu0 0.0
  %1781 = vmatprep.subr.mxu0 0.0
  %1782 = vmatpush1.msra.mxu0 0.0
  %1783 = vmatprep.subr.mxu0 0.0
  %1784 = vmatpush1.msra.mxu0 0.0
  %1785 = vmatprep.subr.mxu0 0.0
  %1786 = vmatpush1.msra.mxu0 0.0
  %1787 = vmatprep.subr.mxu0 0.0
  %1788 = vmatpush1.msra.mxu0 0.0
  %1789 = vmatprep.subr.mxu0 0.0
  %1790 = vmatpush1.msra.mxu0 0.0
  %1791 = vmatprep.subr.mxu0 0.0
  %1792 = vmatpush1.msra.mxu0 0.0
  %1793 = vmatprep.subr.mxu0 0.0
  %1794 = vmatpush1.msra.mxu0 0.0
  %1795 = vmatprep.subr.mxu0 0.0
  %1796 = vmatpush1.msra.mxu0 0.0
  %1797 = vmatprep.subr.mxu0 0.0
  %1798 = vmatpush1.msra.mxu0 0.0
  %1799 = vmatprep.subr.mxu0 0.0
  %1800 = vmatpush1.msra.mxu0 0.0
  %1801 = vmatprep.subr.mxu0 0.0
  %1802 = vmatpush1.msra.mxu0 0.0
  %1803 = vmatprep.subr.mxu0 0.0
  %1804 = vmatpush1.msra.mxu0 0.0
  %1805 = vmatprep.subr.mxu0 0.0
  %1806 = vmatpush1.msra.mxu0 0.0
  %1807 = vmatprep.subr.mxu0 0.0
  %1808 = vmatpush1.msra.mxu0 0.0
  %1809 = vmatprep.subr.mxu0 0.0
  %1810 = vmatpush1.msra.mxu0 0.0
  %1811 = vmatprep.subr.mxu0 0.0
  %1812 = vmatpush1.msra.mxu0 0.0
  %1813 = vmatprep.subr.mxu0 0.0
  %1814 = vmatpush1.msra.mxu0 0.0
  %1815 = vmatprep.subr.mxu0 0.0
  %1816 = vmatpush1.msra.mxu0 0.0
  %1817 = vmatprep.subr.mxu0 0.0
  %1818 = vmatpush1.msra.mxu0 0.0
  %1819 = vmatprep.subr.mxu0 0.0
  %1820 = vmatpush1.msra.mxu0 0.0
  %1821 = vmatprep.subr.mxu0 0.0
  %1822 = vmatpush1.msra.mxu0 0.0
  %1823 = vmatprep.subr.mxu0 0.0
  %1824 = vmatpush1.msra.mxu0 0.0
  %1825 = vmatprep.subr.mxu0 0.0
  %1826 = vmatpush1.msra.mxu0 0.0
  %1827 = vmatprep.subr.mxu0 0.0
  %1828 = vmatpush1.msra.mxu0 0.0
  %1829 = vmatprep.subr.mxu0 0.0
  %1830 = vmatpush1.msra.mxu0 0.0
  %1831 = vmatprep.subr.mxu0 0.0
  %1832 = vmatpush1.msra.mxu0 0.0
  %1833 = vmatprep.mubr.f32.mxu0 0.0
  %1834 = vmatmul.mubr.f32.gmra.mrb[0].mxu0 %v1613
  %v1835 = vpop.f32.mrb[0].mxu0
  %v1836 = vadd.f32 0.0, %v1835
  %v1837 = vpop.f32.mrb[0].mxu0
  %v1838 = vadd.f32 0.0, %v1837
  %1839 = vdwg.mxu0
  %v1840 = vadd.f32 %v1586, %v1694
  %v1841 = vadd.f32 %v1587, %v1696
  %v1842 = vadd.f32 %v1588, %v1765
  %v1843 = vadd.f32 %v1589, %v1767
  %v1844 = vadd.f32 %v1590, %v1836
  %v1845 = vadd.f32 %v1591, %v1838
  %s1846 = scalar_lea.vmem %s3, 56
  %v1847 = vld [vmem:[%s1846] sm:$0x1f]
  %1848 = vrot.lane.b32.xlu0 %v85, 91
  %v1849 = vpop.permute.xlu0 %1848
  %1850 = vrot.lane.b32.xlu0 %v86, 91
  %v1851 = vpop.permute.xlu0 %1850
  %1852 = vrot.lane.b32.xlu0 %v87, 91
  %v1853 = vpop.permute.xlu0 %1852
  %1854 = vrot.lane.b32.xlu0 %v88, 91
  %v1855 = vpop.permute.xlu0 %1854
  %1856 = vrot.lane.b32.xlu0 %v89, 91
  %v1857 = vpop.permute.xlu0 %1856
  %1858 = vrot.lane.b32.xlu0 %v90, 91
  %v1859 = vpop.permute.xlu0 %1858
  %vm1860 = vcmask 744448
  %v1861 = vsel %vm1860, %v1849, %v1851
  %v1862 = vsel %vm1860, %v1851, %v1853
  %v1863 = vsel %vm1860, %v1853, %v1855
  %v1864 = vsel %vm1860, %v1855, %v1857
  %v1865 = vsel %vm1860, %v1857, %v1859
  %v1867 = vsel %vm118, %v1847, 0
  %v1869 = vsel %vm122, %v1861, 0
  %v1871 = vsel %vm122, %v1862, 0
  %v1873 = vsel %vm122, %v1863, 0
  %v1875 = vsel %vm122, %v1864, 0
  %v1877 = vsel %vm122, %v1865, 0
  %v1879 = vsel %vm122, %v1859, 0
  %1881 = vmatprep.subr.mxu0 %v1871
  %1882 = vmatpush1.msra.mxu0 %v1869
  %1883 = vmatprep.subr.mxu0 0.0
  %1884 = vmatpush1.msra.mxu0 0.0
  %1885 = vmatprep.subr.mxu0 0.0
  %1886 = vmatpush1.msra.mxu0 0.0
  %1887 = vmatprep.subr.mxu0 0.0
  %1888 = vmatpush1.msra.mxu0 0.0
  %1889 = vmatprep.subr.mxu0 0.0
  %1890 = vmatpush1.msra.mxu0 0.0
  %1891 = vmatprep.subr.mxu0 0.0
  %1892 = vmatpush1.msra.mxu0 0.0
  %1893 = vmatprep.subr.mxu0 0.0
  %1894 = vmatpush1.msra.mxu0 0.0
  %1895 = vmatprep.subr.mxu0 0.0
  %1896 = vmatpush1.msra.mxu0 0.0
  %1897 = vmatprep.subr.mxu0 0.0
  %1898 = vmatpush1.msra.mxu0 0.0
  %1899 = vmatprep.subr.mxu0 0.0
  %1900 = vmatpush1.msra.mxu0 0.0
  %1901 = vmatprep.subr.mxu0 0.0
  %1902 = vmatpush1.msra.mxu0 0.0
  %1903 = vmatprep.subr.mxu0 0.0
  %1904 = vmatpush1.msra.mxu0 0.0
  %1905 = vmatprep.subr.mxu0 0.0
  %1906 = vmatpush1.msra.mxu0 0.0
  %1907 = vmatprep.subr.mxu0 0.0
  %1908 = vmatpush1.msra.mxu0 0.0
  %1909 = vmatprep.subr.mxu0 0.0
  %1910 = vmatpush1.msra.mxu0 0.0
  %1911 = vmatprep.subr.mxu0 0.0
  %1912 = vmatpush1.msra.mxu0 0.0
  %1913 = vmatprep.subr.mxu0 0.0
  %1914 = vmatpush1.msra.mxu0 0.0
  %1915 = vmatprep.subr.mxu0 0.0
  %1916 = vmatpush1.msra.mxu0 0.0
  %1917 = vmatprep.subr.mxu0 0.0
  %1918 = vmatpush1.msra.mxu0 0.0
  %1919 = vmatprep.subr.mxu0 0.0
  %1920 = vmatpush1.msra.mxu0 0.0
  %1921 = vmatprep.subr.mxu0 0.0
  %1922 = vmatpush1.msra.mxu0 0.0
  %1923 = vmatprep.subr.mxu0 0.0
  %1924 = vmatpush1.msra.mxu0 0.0
  %1925 = vmatprep.subr.mxu0 0.0
  %1926 = vmatpush1.msra.mxu0 0.0
  %1927 = vmatprep.subr.mxu0 0.0
  %1928 = vmatpush1.msra.mxu0 0.0
  %1929 = vmatprep.subr.mxu0 0.0
  %1930 = vmatpush1.msra.mxu0 0.0
  %1931 = vmatprep.subr.mxu0 0.0
  %1932 = vmatpush1.msra.mxu0 0.0
  %1933 = vmatprep.subr.mxu0 0.0
  %1934 = vmatpush1.msra.mxu0 0.0
  %1935 = vmatprep.subr.mxu0 0.0
  %1936 = vmatpush1.msra.mxu0 0.0
  %1937 = vmatprep.subr.mxu0 0.0
  %1938 = vmatpush1.msra.mxu0 0.0
  %1939 = vmatprep.subr.mxu0 0.0
  %1940 = vmatpush1.msra.mxu0 0.0
  %1941 = vmatprep.subr.mxu0 0.0
  %1942 = vmatpush1.msra.mxu0 0.0
  %1943 = vmatprep.subr.mxu0 0.0
  %1944 = vmatpush1.msra.mxu0 0.0
  %1945 = vmatprep.mubr.f32.mxu0 0.0
  %1946 = vmatmul.mubr.f32.gmra.mrb[0].mxu0 %v1867
  %v1947 = vpop.f32.mrb[0].mxu0
  %v1948 = vadd.f32 0.0, %v1947
  %v1949 = vpop.f32.mrb[0].mxu0
  %v1950 = vadd.f32 0.0, %v1949
  %1951 = vdwg.mxu0
  %1952 = vmatprep.subr.mxu0 %v1875
  %1953 = vmatpush1.msra.mxu0 %v1873
  %1954 = vmatprep.subr.mxu0 0.0
  %1955 = vmatpush1.msra.mxu0 0.0
  %1956 = vmatprep.subr.mxu0 0.0
  %1957 = vmatpush1.msra.mxu0 0.0
  %1958 = vmatprep.subr.mxu0 0.0
  %1959 = vmatpush1.msra.mxu0 0.0
  %1960 = vmatprep.subr.mxu0 0.0
  %1961 = vmatpush1.msra.mxu0 0.0
  %1962 = vmatprep.subr.mxu0 0.0
  %1963 = vmatpush1.msra.mxu0 0.0
  %1964 = vmatprep.subr.mxu0 0.0
  %1965 = vmatpush1.msra.mxu0 0.0
  %1966 = vmatprep.subr.mxu0 0.0
  %1967 = vmatpush1.msra.mxu0 0.0
  %1968 = vmatprep.subr.mxu0 0.0
  %1969 = vmatpush1.msra.mxu0 0.0
  %1970 = vmatprep.subr.mxu0 0.0
  %1971 = vmatpush1.msra.mxu0 0.0
  %1972 = vmatprep.subr.mxu0 0.0
  %1973 = vmatpush1.msra.mxu0 0.0
  %1974 = vmatprep.subr.mxu0 0.0
  %1975 = vmatpush1.msra.mxu0 0.0
  %1976 = vmatprep.subr.mxu0 0.0
  %1977 = vmatpush1.msra.mxu0 0.0
  %1978 = vmatprep.subr.mxu0 0.0
  %1979 = vmatpush1.msra.mxu0 0.0
  %1980 = vmatprep.subr.mxu0 0.0
  %1981 = vmatpush1.msra.mxu0 0.0
  %1982 = vmatprep.subr.mxu0 0.0
  %1983 = vmatpush1.msra.mxu0 0.0
  %1984 = vmatprep.subr.mxu0 0.0
  %1985 = vmatpush1.msra.mxu0 0.0
  %1986 = vmatprep.subr.mxu0 0.0
  %1987 = vmatpush1.msra.mxu0 0.0
  %1988 = vmatprep.subr.mxu0 0.0
  %1989 = vmatpush1.msra.mxu0 0.0
  %1990 = vmatprep.subr.mxu0 0.0
  %1991 = vmatpush1.msra.mxu0 0.0
  %1992 = vmatprep.subr.mxu0 0.0
  %1993 = vmatpush1.msra.mxu0 0.0
  %1994 = vmatprep.subr.mxu0 0.0
  %1995 = vmatpush1.msra.mxu0 0.0
  %1996 = vmatprep.subr.mxu0 0.0
  %1997 = vmatpush1.msra.mxu0 0.0
  %1998 = vmatprep.subr.mxu0 0.0
  %1999 = vmatpush1.msra.mxu0 0.0
  %2000 = vmatprep.subr.mxu0 0.0
  %2001 = vmatpush1.msra.mxu0 0.0
  %2002 = vmatprep.subr.mxu0 0.0
  %2003 = vmatpush1.msra.mxu0 0.0
  %2004 = vmatprep.subr.mxu0 0.0
  %2005 = vmatpush1.msra.mxu0 0.0
  %2006 = vmatprep.subr.mxu0 0.0
  %2007 = vmatpush1.msra.mxu0 0.0
  %2008 = vmatprep.subr.mxu0 0.0
  %2009 = vmatpush1.msra.mxu0 0.0
  %2010 = vmatprep.subr.mxu0 0.0
  %2011 = vmatpush1.msra.mxu0 0.0
  %2012 = vmatprep.subr.mxu0 0.0
  %2013 = vmatpush1.msra.mxu0 0.0
  %2014 = vmatprep.subr.mxu0 0.0
  %2015 = vmatpush1.msra.mxu0 0.0
  %2016 = vmatprep.mubr.f32.mxu0 0.0
  %2017 = vmatmul.mubr.f32.gmra.mrb[0].mxu0 %v1867
  %v2018 = vpop.f32.mrb[0].mxu0
  %v2019 = vadd.f32 0.0, %v2018
  %v2020 = vpop.f32.mrb[0].mxu0
  %v2021 = vadd.f32 0.0, %v2020
  %2022 = vdwg.mxu0
  %2023 = vmatprep.subr.mxu0 %v1879
  %2024 = vmatpush1.msra.mxu0 %v1877
  %2025 = vmatprep.subr.mxu0 0.0
  %2026 = vmatpush1.msra.mxu0 0.0
  %2027 = vmatprep.subr.mxu0 0.0
  %2028 = vmatpush1.msra.mxu0 0.0
  %2029 = vmatprep.subr.mxu0 0.0
  %2030 = vmatpush1.msra.mxu0 0.0
  %2031 = vmatprep.subr.mxu0 0.0
  %2032 = vmatpush1.msra.mxu0 0.0
  %2033 = vmatprep.subr.mxu0 0.0
  %2034 = vmatpush1.msra.mxu0 0.0
  %2035 = vmatprep.subr.mxu0 0.0
  %2036 = vmatpush1.msra.mxu0 0.0
  %2037 = vmatprep.subr.mxu0 0.0
  %2038 = vmatpush1.msra.mxu0 0.0
  %2039 = vmatprep.subr.mxu0 0.0
  %2040 = vmatpush1.msra.mxu0 0.0
  %2041 = vmatprep.subr.mxu0 0.0
  %2042 = vmatpush1.msra.mxu0 0.0
  %2043 = vmatprep.subr.mxu0 0.0
  %2044 = vmatpush1.msra.mxu0 0.0
  %2045 = vmatprep.subr.mxu0 0.0
  %2046 = vmatpush1.msra.mxu0 0.0
  %2047 = vmatprep.subr.mxu0 0.0
  %2048 = vmatpush1.msra.mxu0 0.0
  %2049 = vmatprep.subr.mxu0 0.0
  %2050 = vmatpush1.msra.mxu0 0.0
  %2051 = vmatprep.subr.mxu0 0.0
  %2052 = vmatpush1.msra.mxu0 0.0
  %2053 = vmatprep.subr.mxu0 0.0
  %2054 = vmatpush1.msra.mxu0 0.0
  %2055 = vmatprep.subr.mxu0 0.0
  %2056 = vmatpush1.msra.mxu0 0.0
  %2057 = vmatprep.subr.mxu0 0.0
  %2058 = vmatpush1.msra.mxu0 0.0
  %2059 = vmatprep.subr.mxu0 0.0
  %2060 = vmatpush1.msra.mxu0 0.0
  %2061 = vmatprep.subr.mxu0 0.0
  %2062 = vmatpush1.msra.mxu0 0.0
  %2063 = vmatprep.subr.mxu0 0.0
  %2064 = vmatpush1.msra.mxu0 0.0
  %2065 = vmatprep.subr.mxu0 0.0
  %2066 = vmatpush1.msra.mxu0 0.0
  %2067 = vmatprep.subr.mxu0 0.0
  %2068 = vmatpush1.msra.mxu0 0.0
  %2069 = vmatprep.subr.mxu0 0.0
  %2070 = vmatpush1.msra.mxu0 0.0
  %2071 = vmatprep.subr.mxu0 0.0
  %2072 = vmatpush1.msra.mxu0 0.0
  %2073 = vmatprep.subr.mxu0 0.0
  %2074 = vmatpush1.msra.mxu0 0.0
  %2075 = vmatprep.subr.mxu0 0.0
  %2076 = vmatpush1.msra.mxu0 0.0
  %2077 = vmatprep.subr.mxu0 0.0
  %2078 = vmatpush1.msra.mxu0 0.0
  %2079 = vmatprep.subr.mxu0 0.0
  %2080 = vmatpush1.msra.mxu0 0.0
  %2081 = vmatprep.subr.mxu0 0.0
  %2082 = vmatpush1.msra.mxu0 0.0
  %2083 = vmatprep.subr.mxu0 0.0
  %2084 = vmatpush1.msra.mxu0 0.0
  %2085 = vmatprep.subr.mxu0 0.0
  %2086 = vmatpush1.msra.mxu0 0.0
  %2087 = vmatprep.mubr.f32.mxu0 0.0
  %2088 = vmatmul.mubr.f32.gmra.mrb[0].mxu0 %v1867
  %v2089 = vpop.f32.mrb[0].mxu0
  %v2090 = vadd.f32 0.0, %v2089
  %v2091 = vpop.f32.mrb[0].mxu0
  %v2092 = vadd.f32 0.0, %v2091
  %2093 = vdwg.mxu0
  %v2094 = vadd.f32 %v1840, %v1948
  %v2095 = vadd.f32 %v1841, %v1950
  %v2096 = vadd.f32 %v1842, %v2019
  %v2097 = vadd.f32 %v1843, %v2021
  %v2098 = vadd.f32 %v1844, %v2090
  %v2099 = vadd.f32 %v1845, %v2092
  %s2100 = scalar_lea.vmem %s3, 64
  %v2101 = vld [vmem:[%s2100] sm:$0x1f]
  %2102 = vrot.lane.b32.xlu0 %v85, 90
  %v2103 = vpop.permute.xlu0 %2102
  %2104 = vrot.lane.b32.xlu0 %v86, 90
  %v2105 = vpop.permute.xlu0 %2104
  %2106 = vrot.lane.b32.xlu0 %v87, 90
  %v2107 = vpop.permute.xlu0 %2106
  %2108 = vrot.lane.b32.xlu0 %v88, 90
  %v2109 = vpop.permute.xlu0 %2108
  %2110 = vrot.lane.b32.xlu0 %v89, 90
  %v2111 = vpop.permute.xlu0 %2110
  %2112 = vrot.lane.b32.xlu0 %v90, 90
  %v2113 = vpop.permute.xlu0 %2112
  %vm2114 = vcmask 736256
  %v2115 = vsel %vm2114, %v2103, %v2105
  %v2116 = vsel %vm2114, %v2105, %v2107
  %v2117 = vsel %vm2114, %v2107, %v2109
  %v2118 = vsel %vm2114, %v2109, %v2111
  %v2119 = vsel %vm2114, %v2111, %v2113
  %v2121 = vsel %vm118, %v2101, 0
  %v2123 = vsel %vm122, %v2115, 0
  %v2125 = vsel %vm122, %v2116, 0
  %v2127 = vsel %vm122, %v2117, 0
  %v2129 = vsel %vm122, %v2118, 0
  %v2131 = vsel %vm122, %v2119, 0
  %v2133 = vsel %vm122, %v2113, 0
  %2135 = vmatprep.subr.mxu0 %v2125
  %2136 = vmatpush1.msra.mxu0 %v2123
  %2137 = vmatprep.subr.mxu0 0.0
  %2138 = vmatpush1.msra.mxu0 0.0
  %2139 = vmatprep.subr.mxu0 0.0
  %2140 = vmatpush1.msra.mxu0 0.0
  %2141 = vmatprep.subr.mxu0 0.0
  %2142 = vmatpush1.msra.mxu0 0.0
  %2143 = vmatprep.subr.mxu0 0.0
  %2144 = vmatpush1.msra.mxu0 0.0
  %2145 = vmatprep.subr.mxu0 0.0
  %2146 = vmatpush1.msra.mxu0 0.0
  %2147 = vmatprep.subr.mxu0 0.0
  %2148 = vmatpush1.msra.mxu0 0.0
  %2149 = vmatprep.subr.mxu0 0.0
  %2150 = vmatpush1.msra.mxu0 0.0
  %2151 = vmatprep.subr.mxu0 0.0
  %2152 = vmatpush1.msra.mxu0 0.0
  %2153 = vmatprep.subr.mxu0 0.0
  %2154 = vmatpush1.msra.mxu0 0.0
  %2155 = vmatprep.subr.mxu0 0.0
  %2156 = vmatpush1.msra.mxu0 0.0
  %2157 = vmatprep.subr.mxu0 0.0
  %2158 = vmatpush1.msra.mxu0 0.0
  %2159 = vmatprep.subr.mxu0 0.0
  %2160 = vmatpush1.msra.mxu0 0.0
  %2161 = vmatprep.subr.mxu0 0.0
  %2162 = vmatpush1.msra.mxu0 0.0
  %2163 = vmatprep.subr.mxu0 0.0
  %2164 = vmatpush1.msra.mxu0 0.0
  %2165 = vmatprep.subr.mxu0 0.0
  %2166 = vmatpush1.msra.mxu0 0.0
  %2167 = vmatprep.subr.mxu0 0.0
  %2168 = vmatpush1.msra.mxu0 0.0
  %2169 = vmatprep.subr.mxu0 0.0
  %2170 = vmatpush1.msra.mxu0 0.0
  %2171 = vmatprep.subr.mxu0 0.0
  %2172 = vmatpush1.msra.mxu0 0.0
  %2173 = vmatprep.subr.mxu0 0.0
  %2174 = vmatpush1.msra.mxu0 0.0
  %2175 = vmatprep.subr.mxu0 0.0
  %2176 = vmatpush1.msra.mxu0 0.0
  %2177 = vmatprep.subr.mxu0 0.0
  %2178 = vmatpush1.msra.mxu0 0.0
  %2179 = vmatprep.subr.mxu0 0.0
  %2180 = vmatpush1.msra.mxu0 0.0
  %2181 = vmatprep.subr.mxu0 0.0
  %2182 = vmatpush1.msra.mxu0 0.0
  %2183 = vmatprep.subr.mxu0 0.0
  %2184 = vmatpush1.msra.mxu0 0.0
  %2185 = vmatprep.subr.mxu0 0.0
  %2186 = vmatpush1.msra.mxu0 0.0
  %2187 = vmatprep.subr.mxu0 0.0
  %2188 = vmatpush1.msra.mxu0 0.0
  %2189 = vmatprep.subr.mxu0 0.0
  %2190 = vmatpush1.msra.mxu0 0.0
  %2191 = vmatprep.subr.mxu0 0.0
  %2192 = vmatpush1.msra.mxu0 0.0
  %2193 = vmatprep.subr.mxu0 0.0
  %2194 = vmatpush1.msra.mxu0 0.0
  %2195 = vmatprep.subr.mxu0 0.0
  %2196 = vmatpush1.msra.mxu0 0.0
  %2197 = vmatprep.subr.mxu0 0.0
  %2198 = vmatpush1.msra.mxu0 0.0
  %2199 = vmatprep.mubr.f32.mxu0 0.0
  %2200 = vmatmul.mubr.f32.gmra.mrb[0].mxu0 %v2121
  %v2201 = vpop.f32.mrb[0].mxu0
  %v2202 = vadd.f32 0.0, %v2201
  %v2203 = vpop.f32.mrb[0].mxu0
  %v2204 = vadd.f32 0.0, %v2203
  %2205 = vdwg.mxu0
  %2206 = vmatprep.subr.mxu0 %v2129
  %2207 = vmatpush1.msra.mxu0 %v2127
  %2208 = vmatprep.subr.mxu0 0.0
  %2209 = vmatpush1.msra.mxu0 0.0
  %2210 = vmatprep.subr.mxu0 0.0
  %2211 = vmatpush1.msra.mxu0 0.0
  %2212 = vmatprep.subr.mxu0 0.0
  %2213 = vmatpush1.msra.mxu0 0.0
  %2214 = vmatprep.subr.mxu0 0.0
  %2215 = vmatpush1.msra.mxu0 0.0
  %2216 = vmatprep.subr.mxu0 0.0
  %2217 = vmatpush1.msra.mxu0 0.0
  %2218 = vmatprep.subr.mxu0 0.0
  %2219 = vmatpush1.msra.mxu0 0.0
  %2220 = vmatprep.subr.mxu0 0.0
  %2221 = vmatpush1.msra.mxu0 0.0
  %2222 = vmatprep.subr.mxu0 0.0
  %2223 = vmatpush1.msra.mxu0 0.0
  %2224 = vmatprep.subr.mxu0 0.0
  %2225 = vmatpush1.msra.mxu0 0.0
  %2226 = vmatprep.subr.mxu0 0.0
  %2227 = vmatpush1.msra.mxu0 0.0
  %2228 = vmatprep.subr.mxu0 0.0
  %2229 = vmatpush1.msra.mxu0 0.0
  %2230 = vmatprep.subr.mxu0 0.0
  %2231 = vmatpush1.msra.mxu0 0.0
  %2232 = vmatprep.subr.mxu0 0.0
  %2233 = vmatpush1.msra.mxu0 0.0
  %2234 = vmatprep.subr.mxu0 0.0
  %2235 = vmatpush1.msra.mxu0 0.0
  %2236 = vmatprep.subr.mxu0 0.0
  %2237 = vmatpush1.msra.mxu0 0.0
  %2238 = vmatprep.subr.mxu0 0.0
  %2239 = vmatpush1.msra.mxu0 0.0
  %2240 = vmatprep.subr.mxu0 0.0
  %2241 = vmatpush1.msra.mxu0 0.0
  %2242 = vmatprep.subr.mxu0 0.0
  %2243 = vmatpush1.msra.mxu0 0.0
  %2244 = vmatprep.subr.mxu0 0.0
  %2245 = vmatpush1.msra.mxu0 0.0
  %2246 = vmatprep.subr.mxu0 0.0
  %2247 = vmatpush1.msra.mxu0 0.0
  %2248 = vmatprep.subr.mxu0 0.0
  %2249 = vmatpush1.msra.mxu0 0.0
  %2250 = vmatprep.subr.mxu0 0.0
  %2251 = vmatpush1.msra.mxu0 0.0
  %2252 = vmatprep.subr.mxu0 0.0
  %2253 = vmatpush1.msra.mxu0 0.0
  %2254 = vmatprep.subr.mxu0 0.0
  %2255 = vmatpush1.msra.mxu0 0.0
  %2256 = vmatprep.subr.mxu0 0.0
  %2257 = vmatpush1.msra.mxu0 0.0
  %2258 = vmatprep.subr.mxu0 0.0
  %2259 = vmatpush1.msra.mxu0 0.0
  %2260 = vmatprep.subr.mxu0 0.0
  %2261 = vmatpush1.msra.mxu0 0.0
  %2262 = vmatprep.subr.mxu0 0.0
  %2263 = vmatpush1.msra.mxu0 0.0
  %2264 = vmatprep.subr.mxu0 0.0
  %2265 = vmatpush1.msra.mxu0 0.0
  %2266 = vmatprep.subr.mxu0 0.0
  %2267 = vmatpush1.msra.mxu0 0.0
  %2268 = vmatprep.subr.mxu0 0.0
  %2269 = vmatpush1.msra.mxu0 0.0
  %2270 = vmatprep.mubr.f32.mxu0 0.0
  %2271 = vmatmul.mubr.f32.gmra.mrb[0].mxu0 %v2121
  %v2272 = vpop.f32.mrb[0].mxu0
  %v2273 = vadd.f32 0.0, %v2272
  %v2274 = vpop.f32.mrb[0].mxu0
  %v2275 = vadd.f32 0.0, %v2274
  %2276 = vdwg.mxu0
  %2277 = vmatprep.subr.mxu0 %v2133
  %2278 = vmatpush1.msra.mxu0 %v2131
  %2279 = vmatprep.subr.mxu0 0.0
  %2280 = vmatpush1.msra.mxu0 0.0
  %2281 = vmatprep.subr.mxu0 0.0
  %2282 = vmatpush1.msra.mxu0 0.0
  %2283 = vmatprep.subr.mxu0 0.0
  %2284 = vmatpush1.msra.mxu0 0.0
  %2285 = vmatprep.subr.mxu0 0.0
  %2286 = vmatpush1.msra.mxu0 0.0
  %2287 = vmatprep.subr.mxu0 0.0
  %2288 = vmatpush1.msra.mxu0 0.0
  %2289 = vmatprep.subr.mxu0 0.0
  %2290 = vmatpush1.msra.mxu0 0.0
  %2291 = vmatprep.subr.mxu0 0.0
  %2292 = vmatpush1.msra.mxu0 0.0
  %2293 = vmatprep.subr.mxu0 0.0
  %2294 = vmatpush1.msra.mxu0 0.0
  %2295 = vmatprep.subr.mxu0 0.0
  %2296 = vmatpush1.msra.mxu0 0.0
  %2297 = vmatprep.subr.mxu0 0.0
  %2298 = vmatpush1.msra.mxu0 0.0
  %2299 = vmatprep.subr.mxu0 0.0
  %2300 = vmatpush1.msra.mxu0 0.0
  %2301 = vmatprep.subr.mxu0 0.0
  %2302 = vmatpush1.msra.mxu0 0.0
  %2303 = vmatprep.subr.mxu0 0.0
  %2304 = vmatpush1.msra.mxu0 0.0
  %2305 = vmatprep.subr.mxu0 0.0
  %2306 = vmatpush1.msra.mxu0 0.0
  %2307 = vmatprep.subr.mxu0 0.0
  %2308 = vmatpush1.msra.mxu0 0.0
  %2309 = vmatprep.subr.mxu0 0.0
  %2310 = vmatpush1.msra.mxu0 0.0
  %2311 = vmatprep.subr.mxu0 0.0
  %2312 = vmatpush1.msra.mxu0 0.0
  %2313 = vmatprep.subr.mxu0 0.0
  %2314 = vmatpush1.msra.mxu0 0.0
  %2315 = vmatprep.subr.mxu0 0.0
  %2316 = vmatpush1.msra.mxu0 0.0
  %2317 = vmatprep.subr.mxu0 0.0
  %2318 = vmatpush1.msra.mxu0 0.0
  %2319 = vmatprep.subr.mxu0 0.0
  %2320 = vmatpush1.msra.mxu0 0.0
  %2321 = vmatprep.subr.mxu0 0.0
  %2322 = vmatpush1.msra.mxu0 0.0
  %2323 = vmatprep.subr.mxu0 0.0
  %2324 = vmatpush1.msra.mxu0 0.0
  %2325 = vmatprep.subr.mxu0 0.0
  %2326 = vmatpush1.msra.mxu0 0.0
  %2327 = vmatprep.subr.mxu0 0.0
  %2328 = vmatpush1.msra.mxu0 0.0
  %2329 = vmatprep.subr.mxu0 0.0
  %2330 = vmatpush1.msra.mxu0 0.0
  %2331 = vmatprep.subr.mxu0 0.0
  %2332 = vmatpush1.msra.mxu0 0.0
  %2333 = vmatprep.subr.mxu0 0.0
  %2334 = vmatpush1.msra.mxu0 0.0
  %2335 = vmatprep.subr.mxu0 0.0
  %2336 = vmatpush1.msra.mxu0 0.0
  %2337 = vmatprep.subr.mxu0 0.0
  %2338 = vmatpush1.msra.mxu0 0.0
  %2339 = vmatprep.subr.mxu0 0.0
  %2340 = vmatpush1.msra.mxu0 0.0
  %2341 = vmatprep.mubr.f32.mxu0 0.0
  %2342 = vmatmul.mubr.f32.gmra.mrb[0].mxu0 %v2121
  %v2343 = vpop.f32.mrb[0].mxu0
  %v2344 = vadd.f32 0.0, %v2343
  %v2345 = vpop.f32.mrb[0].mxu0
  %v2346 = vadd.f32 0.0, %v2345
  %2347 = vdwg.mxu0
  %v2348 = vadd.f32 %v2094, %v2202
  %v2349 = vadd.f32 %v2095, %v2204
  %v2350 = vadd.f32 %v2096, %v2273
  %v2351 = vadd.f32 %v2097, %v2275
  %v2352 = vadd.f32 %v2098, %v2344
  %v2353 = vadd.f32 %v2099, %v2346
  %v2354 = vmax.f32 %v2348, 0.0
  %v2355 = vmax.f32 %v2349, 0.0
  %v2356 = vmax.f32 %v2350, 0.0
  %v2357 = vmax.f32 %v2351, 0.0
  %v2358 = vmax.f32 %v2352, 0.0
  %v2359 = vmax.f32 %v2353, 0.0
  %v2361 = vlaneseq
  %v2362 = vshrl.u32 %v2361, 7
  %v2363 = vsub.s32 0, %v2362
  %v2364 = vrot.slane %v34, %v2363
  %v2365 = vlaneseq
  %v2366 = vshrl.u32 %v2365, 7
  %v2367 = vsub.s32 1, %v2366
  %v2368 = vrot.slane %v34, %v2367
  %v2369 = vlaneseq
  %v2370 = vshrl.u32 %v2369, 7
  %v2371 = vsub.s32 2, %v2370
  %v2372 = vrot.slane %v34, %v2371
  %v2373 = vlaneseq
  %v2374 = vshrl.u32 %v2373, 7
  %v2375 = vsub.s32 3, %v2374
  %v2376 = vrot.slane %v34, %v2375
  %v2377 = vlaneseq
  %v2378 = vshrl.u32 %v2377, 7
  %v2379 = vsub.s32 4, %v2378
  %v2380 = vrot.slane %v34, %v2379
  %v2381 = vlaneseq
  %v2382 = vshrl.u32 %v2381, 7
  %v2383 = vsub.s32 5, %v2382
  %v2384 = vrot.slane %v34, %v2383
  %2391 = vrot.lane.b32.xlu0 %v2364, 109
  %v2392 = vpop.permute.xlu0 %2391
  %2393 = vrot.lane.b32.xlu0 %v2368, 109
  %v2394 = vpop.permute.xlu0 %2393
  %2395 = vrot.lane.b32.xlu0 %v2372, 109
  %v2396 = vpop.permute.xlu0 %2395
  %2397 = vrot.lane.b32.xlu0 %v2376, 109
  %v2398 = vpop.permute.xlu0 %2397
  %2399 = vrot.lane.b32.xlu0 %v2380, 109
  %v2400 = vpop.permute.xlu0 %2399
  %2401 = vrot.lane.b32.xlu0 %v2384, 109
  %v2402 = vpop.permute.xlu0 %2401
  %v2403 = vsel %vm1098, %v2392, %v2394
  %v2404 = vsel %vm1098, %v2394, %v2396
  %v2405 = vsel %vm1098, %v2396, %v2398
  %v2406 = vsel %vm1098, %v2398, %v2400
  %v2407 = vsel %vm1098, %v2400, %v2402
  %v2414 = vmul.f32 %v2354, %v2403
  %v2415 = vmul.f32 %v2355, %v2404
  %v2416 = vmul.f32 %v2356, %v2405
  %v2417 = vmul.f32 %v2357, %v2406
  %v2418 = vmul.f32 %v2358, %v2407
  %v2419 = vmul.f32 %v2359, %v2402
  %v2420 = vsel %vm122, %v2414, 0.0
  %v2421 = vsel %vm122, %v2415, 0.0
  %v2422 = vadd.f32 %v2420, %v2421
  %v2423 = vsel %vm122, %v2416, 0.0
  %v2424 = vadd.f32 %v2422, %v2423
  %v2425 = vsel %vm122, %v2417, 0.0
  %v2426 = vadd.f32 %v2424, %v2425
  %v2427 = vsel %vm122, %v2418, 0.0
  %v2428 = vadd.f32 %v2426, %v2427
  %vm2429 = vcmask 372736
  %v2430 = vsel %vm2429, %v2419, 0.0
  %v2431 = vadd.f32 %v2428, %v2430
  %2432 = vadd.xlane.f32.xlu0 %v2431
  %v2433 = vpop.xlane.xlu0 %2432
  %v2434 = vmul.f32 %v2414, %v2414
  %v2435 = vmul.f32 %v2415, %v2415
  %v2436 = vmul.f32 %v2416, %v2416
  %v2437 = vmul.f32 %v2417, %v2417
  %v2438 = vmul.f32 %v2418, %v2418
  %v2439 = vmul.f32 %v2419, %v2419
  %v2440 = vsel %vm122, %v2434, 0.0
  %v2441 = vsel %vm122, %v2435, 0.0
  %v2442 = vadd.f32 %v2440, %v2441
  %v2443 = vsel %vm122, %v2436, 0.0
  %v2444 = vadd.f32 %v2442, %v2443
  %v2445 = vsel %vm122, %v2437, 0.0
  %v2446 = vadd.f32 %v2444, %v2445
  %v2447 = vsel %vm122, %v2438, 0.0
  %v2448 = vadd.f32 %v2446, %v2447
  %v2449 = vsel %vm2429, %v2439, 0.0
  %v2450 = vadd.f32 %v2448, %v2449
  %2451 = vadd.xlane.f32.xlu0 %v2450
  %v2452 = vpop.xlane.xlu0 %2451
  %v2453 = vmul.f32 %v2433, 0.001953125
  %v2454 = vmul.f32 %v2452, 0.001953125
  %v2455 = vmul.f32 %v2453, %v2453
  %v2456 = vsub.f32 %v2454, %v2455
  %v2457 = vld [vmem:[%s5] sm:$0x1f]
  %v2458 = vadd.f32 %v2456, 1e-05
  %v2459 = vrsqrt.pop %v2458
  %v2460 = vmul.f32 %v2457, %v2459
  %v2461 = vld [vmem:[%s6] sm:$0x1f]
  %v2462 = vmul.f32 %v2453, %v2460
  %v2463 = vsub.f32 %v2461, %v2462
  %2465 = vset.pattern.permute.xlu0 0
  %2466 = vperm.xlu0 %2465, %v2460
  %v2467 = vpop.permute.xlu0 %2466
  %v2469 = vmul.f32 %v2414, %v2467
  %v2470 = vmul.f32 %v2415, %v2467
  %v2471 = vmul.f32 %v2416, %v2467
  %v2472 = vmul.f32 %v2417, %v2467
  %v2473 = vmul.f32 %v2418, %v2467
  %v2474 = vmul.f32 %v2419, %v2467
  %2476 = vset.pattern.permute.xlu0 0
  %2477 = vperm.xlu0 %2476, %v2463
  %v2478 = vpop.permute.xlu0 %2477
  %v2480 = vmul.f32 %v2478, %v2364
  %v2481 = vmul.f32 %v2478, %v2368
  %v2482 = vmul.f32 %v2478, %v2372
  %v2483 = vmul.f32 %v2478, %v2376
  %v2484 = vmul.f32 %v2478, %v2380
  %v2485 = vmul.f32 %v2478, %v2384
  %2492 = vrot.lane.b32.xlu0 %v2480, 109
  %v2493 = vpop.permute.xlu0 %2492
  %2494 = vrot.lane.b32.xlu0 %v2481, 109
  %v2495 = vpop.permute.xlu0 %2494
  %2496 = vrot.lane.b32.xlu0 %v2482, 109
  %v2497 = vpop.permute.xlu0 %2496
  %2498 = vrot.lane.b32.xlu0 %v2483, 109
  %v2499 = vpop.permute.xlu0 %2498
  %2500 = vrot.lane.b32.xlu0 %v2484, 109
  %v2501 = vpop.permute.xlu0 %2500
  %2502 = vrot.lane.b32.xlu0 %v2485, 109
  %v2503 = vpop.permute.xlu0 %2502
  %v2504 = vsel %vm1098, %v2493, %v2495
  %v2505 = vsel %vm1098, %v2495, %v2497
  %v2506 = vsel %vm1098, %v2497, %v2499
  %v2507 = vsel %vm1098, %v2499, %v2501
  %v2508 = vsel %vm1098, %v2501, %v2503
  %v2515 = vadd.f32 %v2469, %v2504
  %v2516 = vadd.f32 %v2470, %v2505
  %v2517 = vadd.f32 %v2471, %v2506
  %v2518 = vadd.f32 %v2472, %v2507
  %v2519 = vadd.f32 %v2473, %v2508
  %v2520 = vadd.f32 %v2474, %v2503
  %2527 = vrot.lane.b32.xlu0 %v79, 109
  %v2528 = vpop.permute.xlu0 %2527
  %2529 = vrot.lane.b32.xlu0 %v80, 109
  %v2530 = vpop.permute.xlu0 %2529
  %2531 = vrot.lane.b32.xlu0 %v81, 109
  %v2532 = vpop.permute.xlu0 %2531
  %2533 = vrot.lane.b32.xlu0 %v82, 109
  %v2534 = vpop.permute.xlu0 %2533
  %2535 = vrot.lane.b32.xlu0 %v83, 109
  %v2536 = vpop.permute.xlu0 %2535
  %2537 = vrot.lane.b32.xlu0 %v84, 109
  %v2538 = vpop.permute.xlu0 %2537
  %v2539 = vsel %vm1098, %v2528, %v2530
  %v2540 = vsel %vm1098, %v2530, %v2532
  %v2541 = vsel %vm1098, %v2532, %v2534
  %v2542 = vsel %vm1098, %v2534, %v2536
  %v2543 = vsel %vm1098, %v2536, %v2538
  %v2550 = vadd.f32 %v2515, %v2539
  %v2551 = vadd.f32 %v2516, %v2540
  %v2552 = vadd.f32 %v2517, %v2541
  %v2553 = vadd.f32 %v2518, %v2542
  %v2554 = vadd.f32 %v2519, %v2543
  %v2555 = vadd.f32 %v2520, %v2538
  %v2556 = vld [vmem:[%s4] sm:$0xf]
  %s2557 = scalar_lea.vmem %s4, 4
  %v2558 = vld [vmem:[%s2557] sm:$0xf]
  %2565 = vrot.lane.b32.xlu0 %v2550, 127
  %v2566 = vpop.permute.xlu0 %2565
  %2567 = vrot.lane.b32.xlu0 %v2551, 127
  %v2568 = vpop.permute.xlu0 %2567
  %2569 = vrot.lane.b32.xlu0 %v2552, 127
  %v2570 = vpop.permute.xlu0 %2569
  %2571 = vrot.lane.b32.xlu0 %v2553, 127
  %v2572 = vpop.permute.xlu0 %2571
  %2573 = vrot.lane.b32.xlu0 %v2554, 127
  %v2574 = vpop.permute.xlu0 %2573
  %2575 = vrot.lane.b32.xlu0 %v2555, 127
  %v2576 = vpop.permute.xlu0 %2575
  %v2577 = vsel %vm112, %v2566, %v2568
  %v2578 = vsel %vm112, %v2568, %v2570
  %v2579 = vsel %vm112, %v2570, %v2572
  %v2580 = vsel %vm112, %v2572, %v2574
  %v2581 = vsel %vm112, %v2574, %v2576
  %v2583 = vsel %vm118, %v2558, 0
  %v2585 = vsel %vm122, %v2577, 0
  %v2587 = vsel %vm122, %v2578, 0
  %v2589 = vsel %vm122, %v2579, 0
  %v2591 = vsel %vm122, %v2580, 0
  %v2593 = vsel %vm122, %v2581, 0
  %v2595 = vsel %vm122, %v2576, 0
  %2597 = vmatprep.subr.mxu0 %v2587
  %2598 = vmatpush1.msra.mxu0 %v2585
  %2599 = vmatprep.subr.mxu0 0.0
  %2600 = vmatpush1.msra.mxu0 0.0
  %2601 = vmatprep.subr.mxu0 0.0
  %2602 = vmatpush1.msra.mxu0 0.0
  %2603 = vmatprep.subr.mxu0 0.0
  %2604 = vmatpush1.msra.mxu0 0.0
  %2605 = vmatprep.subr.mxu0 0.0
  %2606 = vmatpush1.msra.mxu0 0.0
  %2607 = vmatprep.subr.mxu0 0.0
  %2608 = vmatpush1.msra.mxu0 0.0
  %2609 = vmatprep.subr.mxu0 0.0
  %2610 = vmatpush1.msra.mxu0 0.0
  %2611 = vmatprep.subr.mxu0 0.0
  %2612 = vmatpush1.msra.mxu0 0.0
  %2613 = vmatprep.subr.mxu0 0.0
  %2614 = vmatpush1.msra.mxu0 0.0
  %2615 = vmatprep.subr.mxu0 0.0
  %2616 = vmatpush1.msra.mxu0 0.0
  %2617 = vmatprep.subr.mxu0 0.0
  %2618 = vmatpush1.msra.mxu0 0.0
  %2619 = vmatprep.subr.mxu0 0.0
  %2620 = vmatpush1.msra.mxu0 0.0
  %2621 = vmatprep.subr.mxu0 0.0
  %2622 = vmatpush1.msra.mxu0 0.0
  %2623 = vmatprep.subr.mxu0 0.0
  %2624 = vmatpush1.msra.mxu0 0.0
  %2625 = vmatprep.subr.mxu0 0.0
  %2626 = vmatpush1.msra.mxu0 0.0
  %2627 = vmatprep.subr.mxu0 0.0
  %2628 = vmatpush1.msra.mxu0 0.0
  %2629 = vmatprep.subr.mxu0 0.0
  %2630 = vmatpush1.msra.mxu0 0.0
  %2631 = vmatprep.subr.mxu0 0.0
  %2632 = vmatpush1.msra.mxu0 0.0
  %2633 = vmatprep.subr.mxu0 0.0
  %2634 = vmatpush1.msra.mxu0 0.0
  %2635 = vmatprep.subr.mxu0 0.0
  %2636 = vmatpush1.msra.mxu0 0.0
  %2637 = vmatprep.subr.mxu0 0.0
  %2638 = vmatpush1.msra.mxu0 0.0
  %2639 = vmatprep.subr.mxu0 0.0
  %2640 = vmatpush1.msra.mxu0 0.0
  %2641 = vmatprep.subr.mxu0 0.0
  %2642 = vmatpush1.msra.mxu0 0.0
  %2643 = vmatprep.subr.mxu0 0.0
  %2644 = vmatpush1.msra.mxu0 0.0
  %2645 = vmatprep.subr.mxu0 0.0
  %2646 = vmatpush1.msra.mxu0 0.0
  %2647 = vmatprep.subr.mxu0 0.0
  %2648 = vmatpush1.msra.mxu0 0.0
  %2649 = vmatprep.subr.mxu0 0.0
  %2650 = vmatpush1.msra.mxu0 0.0
  %2651 = vmatprep.subr.mxu0 0.0
  %2652 = vmatpush1.msra.mxu0 0.0
  %2653 = vmatprep.subr.mxu0 0.0
  %2654 = vmatpush1.msra.mxu0 0.0
  %2655 = vmatprep.subr.mxu0 0.0
  %2656 = vmatpush1.msra.mxu0 0.0
  %2657 = vmatprep.subr.mxu0 0.0
  %2658 = vmatpush1.msra.mxu0 0.0
  %2659 = vmatprep.subr.mxu0 0.0
  %2660 = vmatpush1.msra.mxu0 0.0
  %2661 = vmatprep.mubr.f32.mxu0 0.0
  %2662 = vmatmul.mubr.f32.gmra.mrb[0].mxu0 %v2583
  %v2663 = vpop.f32.mrb[0].mxu0
  %v2664 = vadd.f32 0.0, %v2663
  %v2665 = vpop.f32.mrb[0].mxu0
  %v2666 = vadd.f32 0.0, %v2665
  %2667 = vdwg.mxu0
  %2668 = vmatprep.subr.mxu0 %v2591
  %2669 = vmatpush1.msra.mxu0 %v2589
  %2670 = vmatprep.subr.mxu0 0.0
  %2671 = vmatpush1.msra.mxu0 0.0
  %2672 = vmatprep.subr.mxu0 0.0
  %2673 = vmatpush1.msra.mxu0 0.0
  %2674 = vmatprep.subr.mxu0 0.0
  %2675 = vmatpush1.msra.mxu0 0.0
  %2676 = vmatprep.subr.mxu0 0.0
  %2677 = vmatpush1.msra.mxu0 0.0
  %2678 = vmatprep.subr.mxu0 0.0
  %2679 = vmatpush1.msra.mxu0 0.0
  %2680 = vmatprep.subr.mxu0 0.0
  %2681 = vmatpush1.msra.mxu0 0.0
  %2682 = vmatprep.subr.mxu0 0.0
  %2683 = vmatpush1.msra.mxu0 0.0
  %2684 = vmatprep.subr.mxu0 0.0
  %2685 = vmatpush1.msra.mxu0 0.0
  %2686 = vmatprep.subr.mxu0 0.0
  %2687 = vmatpush1.msra.mxu0 0.0
  %2688 = vmatprep.subr.mxu0 0.0
  %2689 = vmatpush1.msra.mxu0 0.0
  %2690 = vmatprep.subr.mxu0 0.0
  %2691 = vmatpush1.msra.mxu0 0.0
  %2692 = vmatprep.subr.mxu0 0.0
  %2693 = vmatpush1.msra.mxu0 0.0
  %2694 = vmatprep.subr.mxu0 0.0
  %2695 = vmatpush1.msra.mxu0 0.0
  %2696 = vmatprep.subr.mxu0 0.0
  %2697 = vmatpush1.msra.mxu0 0.0
  %2698 = vmatprep.subr.mxu0 0.0
  %2699 = vmatpush1.msra.mxu0 0.0
  %2700 = vmatprep.subr.mxu0 0.0
  %2701 = vmatpush1.msra.mxu0 0.0
  %2702 = vmatprep.subr.mxu0 0.0
  %2703 = vmatpush1.msra.mxu0 0.0
  %2704 = vmatprep.subr.mxu0 0.0
  %2705 = vmatpush1.msra.mxu0 0.0
  %2706 = vmatprep.subr.mxu0 0.0
  %2707 = vmatpush1.msra.mxu0 0.0
  %2708 = vmatprep.subr.mxu0 0.0
  %2709 = vmatpush1.msra.mxu0 0.0
  %2710 = vmatprep.subr.mxu0 0.0
  %2711 = vmatpush1.msra.mxu0 0.0
  %2712 = vmatprep.subr.mxu0 0.0
  %2713 = vmatpush1.msra.mxu0 0.0
  %2714 = vmatprep.subr.mxu0 0.0
  %2715 = vmatpush1.msra.mxu0 0.0
  %2716 = vmatprep.subr.mxu0 0.0
  %2717 = vmatpush1.msra.mxu0 0.0
  %2718 = vmatprep.subr.mxu0 0.0
  %2719 = vmatpush1.msra.mxu0 0.0
  %2720 = vmatprep.subr.mxu0 0.0
  %2721 = vmatpush1.msra.mxu0 0.0
  %2722 = vmatprep.subr.mxu0 0.0
  %2723 = vmatpush1.msra.mxu0 0.0
  %2724 = vmatprep.subr.mxu0 0.0
  %2725 = vmatpush1.msra.mxu0 0.0
  %2726 = vmatprep.subr.mxu0 0.0
  %2727 = vmatpush1.msra.mxu0 0.0
  %2728 = vmatprep.subr.mxu0 0.0
  %2729 = vmatpush1.msra.mxu0 0.0
  %2730 = vmatprep.subr.mxu0 0.0
  %2731 = vmatpush1.msra.mxu0 0.0
  %2732 = vmatprep.mubr.f32.mxu0 0.0
  %2733 = vmatmul.mubr.f32.gmra.mrb[0].mxu0 %v2583
  %v2734 = vpop.f32.mrb[0].mxu0
  %v2735 = vadd.f32 0.0, %v2734
  %v2736 = vpop.f32.mrb[0].mxu0
  %v2737 = vadd.f32 0.0, %v2736
  %2738 = vdwg.mxu0
  %2739 = vmatprep.subr.mxu0 %v2595
  %2740 = vmatpush1.msra.mxu0 %v2593
  %2741 = vmatprep.subr.mxu0 0.0
  %2742 = vmatpush1.msra.mxu0 0.0
  %2743 = vmatprep.subr.mxu0 0.0
  %2744 = vmatpush1.msra.mxu0 0.0
  %2745 = vmatprep.subr.mxu0 0.0
  %2746 = vmatpush1.msra.mxu0 0.0
  %2747 = vmatprep.subr.mxu0 0.0
  %2748 = vmatpush1.msra.mxu0 0.0
  %2749 = vmatprep.subr.mxu0 0.0
  %2750 = vmatpush1.msra.mxu0 0.0
  %2751 = vmatprep.subr.mxu0 0.0
  %2752 = vmatpush1.msra.mxu0 0.0
  %2753 = vmatprep.subr.mxu0 0.0
  %2754 = vmatpush1.msra.mxu0 0.0
  %2755 = vmatprep.subr.mxu0 0.0
  %2756 = vmatpush1.msra.mxu0 0.0
  %2757 = vmatprep.subr.mxu0 0.0
  %2758 = vmatpush1.msra.mxu0 0.0
  %2759 = vmatprep.subr.mxu0 0.0
  %2760 = vmatpush1.msra.mxu0 0.0
  %2761 = vmatprep.subr.mxu0 0.0
  %2762 = vmatpush1.msra.mxu0 0.0
  %2763 = vmatprep.subr.mxu0 0.0
  %2764 = vmatpush1.msra.mxu0 0.0
  %2765 = vmatprep.subr.mxu0 0.0
  %2766 = vmatpush1.msra.mxu0 0.0
  %2767 = vmatprep.subr.mxu0 0.0
  %2768 = vmatpush1.msra.mxu0 0.0
  %2769 = vmatprep.subr.mxu0 0.0
  %2770 = vmatpush1.msra.mxu0 0.0
  %2771 = vmatprep.subr.mxu0 0.0
  %2772 = vmatpush1.msra.mxu0 0.0
  %2773 = vmatprep.subr.mxu0 0.0
  %2774 = vmatpush1.msra.mxu0 0.0
  %2775 = vmatprep.subr.mxu0 0.0
  %2776 = vmatpush1.msra.mxu0 0.0
  %2777 = vmatprep.subr.mxu0 0.0
  %2778 = vmatpush1.msra.mxu0 0.0
  %2779 = vmatprep.subr.mxu0 0.0
  %2780 = vmatpush1.msra.mxu0 0.0
  %2781 = vmatprep.subr.mxu0 0.0
  %2782 = vmatpush1.msra.mxu0 0.0
  %2783 = vmatprep.subr.mxu0 0.0
  %2784 = vmatpush1.msra.mxu0 0.0
  %2785 = vmatprep.subr.mxu0 0.0
  %2786 = vmatpush1.msra.mxu0 0.0
  %2787 = vmatprep.subr.mxu0 0.0
  %2788 = vmatpush1.msra.mxu0 0.0
  %2789 = vmatprep.subr.mxu0 0.0
  %2790 = vmatpush1.msra.mxu0 0.0
  %2791 = vmatprep.subr.mxu0 0.0
  %2792 = vmatpush1.msra.mxu0 0.0
  %2793 = vmatprep.subr.mxu0 0.0
  %2794 = vmatpush1.msra.mxu0 0.0
  %2795 = vmatprep.subr.mxu0 0.0
  %2796 = vmatpush1.msra.mxu0 0.0
  %2797 = vmatprep.subr.mxu0 0.0
  %2798 = vmatpush1.msra.mxu0 0.0
  %2799 = vmatprep.subr.mxu0 0.0
  %2800 = vmatpush1.msra.mxu0 0.0
  %2801 = vmatprep.subr.mxu0 0.0
  %2802 = vmatpush1.msra.mxu0 0.0
  %2803 = vmatprep.mubr.f32.mxu0 0.0
  %2804 = vmatmul.mubr.f32.gmra.mrb[0].mxu0 %v2583
  %v2805 = vpop.f32.mrb[0].mxu0
  %v2806 = vadd.f32 0.0, %v2805
  %v2807 = vpop.f32.mrb[0].mxu0
  %v2808 = vadd.f32 0.0, %v2807
  %2809 = vdwg.mxu0
  %v2811 = vsel %vm118, %v2556, 0
  %v2813 = vsel %vm122, %v2550, 0
  %v2815 = vsel %vm122, %v2551, 0
  %v2817 = vsel %vm122, %v2552, 0
  %v2819 = vsel %vm122, %v2553, 0
  %v2821 = vsel %vm122, %v2554, 0
  %v2823 = vsel %vm122, %v2555, 0
  %2825 = vmatprep.subr.mxu0 %v2815
  %2826 = vmatpush1.msra.mxu0 %v2813
  %2827 = vmatprep.subr.mxu0 0.0
  %2828 = vmatpush1.msra.mxu0 0.0
  %2829 = vmatprep.subr.mxu0 0.0
  %2830 = vmatpush1.msra.mxu0 0.0
  %2831 = vmatprep.subr.mxu0 0.0
  %2832 = vmatpush1.msra.mxu0 0.0
  %2833 = vmatprep.subr.mxu0 0.0
  %2834 = vmatpush1.msra.mxu0 0.0
  %2835 = vmatprep.subr.mxu0 0.0
  %2836 = vmatpush1.msra.mxu0 0.0
  %2837 = vmatprep.subr.mxu0 0.0
  %2838 = vmatpush1.msra.mxu0 0.0
  %2839 = vmatprep.subr.mxu0 0.0
  %2840 = vmatpush1.msra.mxu0 0.0
  %2841 = vmatprep.subr.mxu0 0.0
  %2842 = vmatpush1.msra.mxu0 0.0
  %2843 = vmatprep.subr.mxu0 0.0
  %2844 = vmatpush1.msra.mxu0 0.0
  %2845 = vmatprep.subr.mxu0 0.0
  %2846 = vmatpush1.msra.mxu0 0.0
  %2847 = vmatprep.subr.mxu0 0.0
  %2848 = vmatpush1.msra.mxu0 0.0
  %2849 = vmatprep.subr.mxu0 0.0
  %2850 = vmatpush1.msra.mxu0 0.0
  %2851 = vmatprep.subr.mxu0 0.0
  %2852 = vmatpush1.msra.mxu0 0.0
  %2853 = vmatprep.subr.mxu0 0.0
  %2854 = vmatpush1.msra.mxu0 0.0
  %2855 = vmatprep.subr.mxu0 0.0
  %2856 = vmatpush1.msra.mxu0 0.0
  %2857 = vmatprep.subr.mxu0 0.0
  %2858 = vmatpush1.msra.mxu0 0.0
  %2859 = vmatprep.subr.mxu0 0.0
  %2860 = vmatpush1.msra.mxu0 0.0
  %2861 = vmatprep.subr.mxu0 0.0
  %2862 = vmatpush1.msra.mxu0 0.0
  %2863 = vmatprep.subr.mxu0 0.0
  %2864 = vmatpush1.msra.mxu0 0.0
  %2865 = vmatprep.subr.mxu0 0.0
  %2866 = vmatpush1.msra.mxu0 0.0
  %2867 = vmatprep.subr.mxu0 0.0
  %2868 = vmatpush1.msra.mxu0 0.0
  %2869 = vmatprep.subr.mxu0 0.0
  %2870 = vmatpush1.msra.mxu0 0.0
  %2871 = vmatprep.subr.mxu0 0.0
  %2872 = vmatpush1.msra.mxu0 0.0
  %2873 = vmatprep.subr.mxu0 0.0
  %2874 = vmatpush1.msra.mxu0 0.0
  %2875 = vmatprep.subr.mxu0 0.0
  %2876 = vmatpush1.msra.mxu0 0.0
  %2877 = vmatprep.subr.mxu0 0.0
  %2878 = vmatpush1.msra.mxu0 0.0
  %2879 = vmatprep.subr.mxu0 0.0
  %2880 = vmatpush1.msra.mxu0 0.0
  %2881 = vmatprep.subr.mxu0 0.0
  %2882 = vmatpush1.msra.mxu0 0.0
  %2883 = vmatprep.subr.mxu0 0.0
  %2884 = vmatpush1.msra.mxu0 0.0
  %2885 = vmatprep.subr.mxu0 0.0
  %2886 = vmatpush1.msra.mxu0 0.0
  %2887 = vmatprep.subr.mxu0 0.0
  %2888 = vmatpush1.msra.mxu0 0.0
  %2889 = vmatprep.mubr.f32.mxu0 0.0
  %2890 = vmatmul.mubr.f32.gmra.mrb[0].mxu0 %v2811
  %v2891 = vpop.f32.mrb[0].mxu0
  %v2892 = vadd.f32 %v2664, %v2891
  %v2893 = vpop.f32.mrb[0].mxu0
  %v2894 = vadd.f32 %v2666, %v2893
  %2895 = vdwg.mxu0
  %2896 = vmatprep.subr.mxu0 %v2819
  %2897 = vmatpush1.msra.mxu0 %v2817
  %2898 = vmatprep.subr.mxu0 0.0
  %2899 = vmatpush1.msra.mxu0 0.0
  %2900 = vmatprep.subr.mxu0 0.0
  %2901 = vmatpush1.msra.mxu0 0.0
  %2902 = vmatprep.subr.mxu0 0.0
  %2903 = vmatpush1.msra.mxu0 0.0
  %2904 = vmatprep.subr.mxu0 0.0
  %2905 = vmatpush1.msra.mxu0 0.0
  %2906 = vmatprep.subr.mxu0 0.0
  %2907 = vmatpush1.msra.mxu0 0.0
  %2908 = vmatprep.subr.mxu0 0.0
  %2909 = vmatpush1.msra.mxu0 0.0
  %2910 = vmatprep.subr.mxu0 0.0
  %2911 = vmatpush1.msra.mxu0 0.0
  %2912 = vmatprep.subr.mxu0 0.0
  %2913 = vmatpush1.msra.mxu0 0.0
  %2914 = vmatprep.subr.mxu0 0.0
  %2915 = vmatpush1.msra.mxu0 0.0
  %2916 = vmatprep.subr.mxu0 0.0
  %2917 = vmatpush1.msra.mxu0 0.0
  %2918 = vmatprep.subr.mxu0 0.0
  %2919 = vmatpush1.msra.mxu0 0.0
  %2920 = vmatprep.subr.mxu0 0.0
  %2921 = vmatpush1.msra.mxu0 0.0
  %2922 = vmatprep.subr.mxu0 0.0
  %2923 = vmatpush1.msra.mxu0 0.0
  %2924 = vmatprep.subr.mxu0 0.0
  %2925 = vmatpush1.msra.mxu0 0.0
  %2926 = vmatprep.subr.mxu0 0.0
  %2927 = vmatpush1.msra.mxu0 0.0
  %2928 = vmatprep.subr.mxu0 0.0
  %2929 = vmatpush1.msra.mxu0 0.0
  %2930 = vmatprep.subr.mxu0 0.0
  %2931 = vmatpush1.msra.mxu0 0.0
  %2932 = vmatprep.subr.mxu0 0.0
  %2933 = vmatpush1.msra.mxu0 0.0
  %2934 = vmatprep.subr.mxu0 0.0
  %2935 = vmatpush1.msra.mxu0 0.0
  %2936 = vmatprep.subr.mxu0 0.0
  %2937 = vmatpush1.msra.mxu0 0.0
  %2938 = vmatprep.subr.mxu0 0.0
  %2939 = vmatpush1.msra.mxu0 0.0
  %2940 = vmatprep.subr.mxu0 0.0
  %2941 = vmatpush1.msra.mxu0 0.0
  %2942 = vmatprep.subr.mxu0 0.0
  %2943 = vmatpush1.msra.mxu0 0.0
  %2944 = vmatprep.subr.mxu0 0.0
  %2945 = vmatpush1.msra.mxu0 0.0
  %2946 = vmatprep.subr.mxu0 0.0
  %2947 = vmatpush1.msra.mxu0 0.0
  %2948 = vmatprep.subr.mxu0 0.0
  %2949 = vmatpush1.msra.mxu0 0.0
  %2950 = vmatprep.subr.mxu0 0.0
  %2951 = vmatpush1.msra.mxu0 0.0
  %2952 = vmatprep.subr.mxu0 0.0
  %2953 = vmatpush1.msra.mxu0 0.0
  %2954 = vmatprep.subr.mxu0 0.0
  %2955 = vmatpush1.msra.mxu0 0.0
  %2956 = vmatprep.subr.mxu0 0.0
  %2957 = vmatpush1.msra.mxu0 0.0
  %2958 = vmatprep.subr.mxu0 0.0
  %2959 = vmatpush1.msra.mxu0 0.0
  %2960 = vmatprep.mubr.f32.mxu0 0.0
  %2961 = vmatmul.mubr.f32.gmra.mrb[0].mxu0 %v2811
  %v2962 = vpop.f32.mrb[0].mxu0
  %v2963 = vadd.f32 %v2735, %v2962
  %v2964 = vpop.f32.mrb[0].mxu0
  %v2965 = vadd.f32 %v2737, %v2964
  %2966 = vdwg.mxu0
  %2967 = vmatprep.subr.mxu0 %v2823
  %2968 = vmatpush1.msra.mxu0 %v2821
  %2969 = vmatprep.subr.mxu0 0.0
  %2970 = vmatpush1.msra.mxu0 0.0
  %2971 = vmatprep.subr.mxu0 0.0
  %2972 = vmatpush1.msra.mxu0 0.0
  %2973 = vmatprep.subr.mxu0 0.0
  %2974 = vmatpush1.msra.mxu0 0.0
  %2975 = vmatprep.subr.mxu0 0.0
  %2976 = vmatpush1.msra.mxu0 0.0
  %2977 = vmatprep.subr.mxu0 0.0
  %2978 = vmatpush1.msra.mxu0 0.0
  %2979 = vmatprep.subr.mxu0 0.0
  %2980 = vmatpush1.msra.mxu0 0.0
  %2981 = vmatprep.subr.mxu0 0.0
  %2982 = vmatpush1.msra.mxu0 0.0
  %2983 = vmatprep.subr.mxu0 0.0
  %2984 = vmatpush1.msra.mxu0 0.0
  %2985 = vmatprep.subr.mxu0 0.0
  %2986 = vmatpush1.msra.mxu0 0.0
  %2987 = vmatprep.subr.mxu0 0.0
  %2988 = vmatpush1.msra.mxu0 0.0
  %2989 = vmatprep.subr.mxu0 0.0
  %2990 = vmatpush1.msra.mxu0 0.0
  %2991 = vmatprep.subr.mxu0 0.0
  %2992 = vmatpush1.msra.mxu0 0.0
  %2993 = vmatprep.subr.mxu0 0.0
  %2994 = vmatpush1.msra.mxu0 0.0
  %2995 = vmatprep.subr.mxu0 0.0
  %2996 = vmatpush1.msra.mxu0 0.0
  %2997 = vmatprep.subr.mxu0 0.0
  %2998 = vmatpush1.msra.mxu0 0.0
  %2999 = vmatprep.subr.mxu0 0.0
  %3000 = vmatpush1.msra.mxu0 0.0
  %3001 = vmatprep.subr.mxu0 0.0
  %3002 = vmatpush1.msra.mxu0 0.0
  %3003 = vmatprep.subr.mxu0 0.0
  %3004 = vmatpush1.msra.mxu0 0.0
  %3005 = vmatprep.subr.mxu0 0.0
  %3006 = vmatpush1.msra.mxu0 0.0
  %3007 = vmatprep.subr.mxu0 0.0
  %3008 = vmatpush1.msra.mxu0 0.0
  %3009 = vmatprep.subr.mxu0 0.0
  %3010 = vmatpush1.msra.mxu0 0.0
  %3011 = vmatprep.subr.mxu0 0.0
  %3012 = vmatpush1.msra.mxu0 0.0
  %3013 = vmatprep.subr.mxu0 0.0
  %3014 = vmatpush1.msra.mxu0 0.0
  %3015 = vmatprep.subr.mxu0 0.0
  %3016 = vmatpush1.msra.mxu0 0.0
  %3017 = vmatprep.subr.mxu0 0.0
  %3018 = vmatpush1.msra.mxu0 0.0
  %3019 = vmatprep.subr.mxu0 0.0
  %3020 = vmatpush1.msra.mxu0 0.0
  %3021 = vmatprep.subr.mxu0 0.0
  %3022 = vmatpush1.msra.mxu0 0.0
  %3023 = vmatprep.subr.mxu0 0.0
  %3024 = vmatpush1.msra.mxu0 0.0
  %3025 = vmatprep.subr.mxu0 0.0
  %3026 = vmatpush1.msra.mxu0 0.0
  %3027 = vmatprep.subr.mxu0 0.0
  %3028 = vmatpush1.msra.mxu0 0.0
  %3029 = vmatprep.subr.mxu0 0.0
  %3030 = vmatpush1.msra.mxu0 0.0
  %3031 = vmatprep.mubr.f32.mxu0 0.0
  %3032 = vmatmul.mubr.f32.gmra.mrb[0].mxu0 %v2811
  %v3033 = vpop.f32.mrb[0].mxu0
  %v3034 = vadd.f32 %v2806, %v3033
  %v3035 = vpop.f32.mrb[0].mxu0
  %v3036 = vadd.f32 %v2808, %v3035
  %3037 = vdwg.mxu0
  %s3038 = scalar_lea.vmem %s4, 8
  %v3039 = vld [vmem:[%s3038] sm:$0xf]
  %3040 = vrot.lane.b32.xlu0 %v2550, 126
  %v3041 = vpop.permute.xlu0 %3040
  %3042 = vrot.lane.b32.xlu0 %v2551, 126
  %v3043 = vpop.permute.xlu0 %3042
  %3044 = vrot.lane.b32.xlu0 %v2552, 126
  %v3045 = vpop.permute.xlu0 %3044
  %3046 = vrot.lane.b32.xlu0 %v2553, 126
  %v3047 = vpop.permute.xlu0 %3046
  %3048 = vrot.lane.b32.xlu0 %v2554, 126
  %v3049 = vpop.permute.xlu0 %3048
  %3050 = vrot.lane.b32.xlu0 %v2555, 126
  %v3051 = vpop.permute.xlu0 %3050
  %v3052 = vsel %vm590, %v3041, %v3043
  %v3053 = vsel %vm590, %v3043, %v3045
  %v3054 = vsel %vm590, %v3045, %v3047
  %v3055 = vsel %vm590, %v3047, %v3049
  %v3056 = vsel %vm590, %v3049, %v3051
  %v3058 = vsel %vm118, %v3039, 0
  %v3060 = vsel %vm122, %v3052, 0
  %v3062 = vsel %vm122, %v3053, 0
  %v3064 = vsel %vm122, %v3054, 0
  %v3066 = vsel %vm122, %v3055, 0
  %v3068 = vsel %vm122, %v3056, 0
  %v3070 = vsel %vm122, %v3051, 0
  %3072 = vmatprep.subr.mxu0 %v3062
  %3073 = vmatpush1.msra.mxu0 %v3060
  %3074 = vmatprep.subr.mxu0 0.0
  %3075 = vmatpush1.msra.mxu0 0.0
  %3076 = vmatprep.subr.mxu0 0.0
  %3077 = vmatpush1.msra.mxu0 0.0
  %3078 = vmatprep.subr.mxu0 0.0
  %3079 = vmatpush1.msra.mxu0 0.0
  %3080 = vmatprep.subr.mxu0 0.0
  %3081 = vmatpush1.msra.mxu0 0.0
  %3082 = vmatprep.subr.mxu0 0.0
  %3083 = vmatpush1.msra.mxu0 0.0
  %3084 = vmatprep.subr.mxu0 0.0
  %3085 = vmatpush1.msra.mxu0 0.0
  %3086 = vmatprep.subr.mxu0 0.0
  %3087 = vmatpush1.msra.mxu0 0.0
  %3088 = vmatprep.subr.mxu0 0.0
  %3089 = vmatpush1.msra.mxu0 0.0
  %3090 = vmatprep.subr.mxu0 0.0
  %3091 = vmatpush1.msra.mxu0 0.0
  %3092 = vmatprep.subr.mxu0 0.0
  %3093 = vmatpush1.msra.mxu0 0.0
  %3094 = vmatprep.subr.mxu0 0.0
  %3095 = vmatpush1.msra.mxu0 0.0
  %3096 = vmatprep.subr.mxu0 0.0
  %3097 = vmatpush1.msra.mxu0 0.0
  %3098 = vmatprep.subr.mxu0 0.0
  %3099 = vmatpush1.msra.mxu0 0.0
  %3100 = vmatprep.subr.mxu0 0.0
  %3101 = vmatpush1.msra.mxu0 0.0
  %3102 = vmatprep.subr.mxu0 0.0
  %3103 = vmatpush1.msra.mxu0 0.0
  %3104 = vmatprep.subr.mxu0 0.0
  %3105 = vmatpush1.msra.mxu0 0.0
  %3106 = vmatprep.subr.mxu0 0.0
  %3107 = vmatpush1.msra.mxu0 0.0
  %3108 = vmatprep.subr.mxu0 0.0
  %3109 = vmatpush1.msra.mxu0 0.0
  %3110 = vmatprep.subr.mxu0 0.0
  %3111 = vmatpush1.msra.mxu0 0.0
  %3112 = vmatprep.subr.mxu0 0.0
  %3113 = vmatpush1.msra.mxu0 0.0
  %3114 = vmatprep.subr.mxu0 0.0
  %3115 = vmatpush1.msra.mxu0 0.0
  %3116 = vmatprep.subr.mxu0 0.0
  %3117 = vmatpush1.msra.mxu0 0.0
  %3118 = vmatprep.subr.mxu0 0.0
  %3119 = vmatpush1.msra.mxu0 0.0
  %3120 = vmatprep.subr.mxu0 0.0
  %3121 = vmatpush1.msra.mxu0 0.0
  %3122 = vmatprep.subr.mxu0 0.0
  %3123 = vmatpush1.msra.mxu0 0.0
  %3124 = vmatprep.subr.mxu0 0.0
  %3125 = vmatpush1.msra.mxu0 0.0
  %3126 = vmatprep.subr.mxu0 0.0
  %3127 = vmatpush1.msra.mxu0 0.0
  %3128 = vmatprep.subr.mxu0 0.0
  %3129 = vmatpush1.msra.mxu0 0.0
  %3130 = vmatprep.subr.mxu0 0.0
  %3131 = vmatpush1.msra.mxu0 0.0
  %3132 = vmatprep.subr.mxu0 0.0
  %3133 = vmatpush1.msra.mxu0 0.0
  %3134 = vmatprep.subr.mxu0 0.0
  %3135 = vmatpush1.msra.mxu0 0.0
  %3136 = vmatprep.mubr.f32.mxu0 0.0
  %3137 = vmatmul.mubr.f32.gmra.mrb[0].mxu0 %v3058
  %v3138 = vpop.f32.mrb[0].mxu0
  %v3139 = vadd.f32 0.0, %v3138
  %v3140 = vpop.f32.mrb[0].mxu0
  %v3141 = vadd.f32 0.0, %v3140
  %3142 = vdwg.mxu0
  %3143 = vmatprep.subr.mxu0 %v3066
  %3144 = vmatpush1.msra.mxu0 %v3064
  %3145 = vmatprep.subr.mxu0 0.0
  %3146 = vmatpush1.msra.mxu0 0.0
  %3147 = vmatprep.subr.mxu0 0.0
  %3148 = vmatpush1.msra.mxu0 0.0
  %3149 = vmatprep.subr.mxu0 0.0
  %3150 = vmatpush1.msra.mxu0 0.0
  %3151 = vmatprep.subr.mxu0 0.0
  %3152 = vmatpush1.msra.mxu0 0.0
  %3153 = vmatprep.subr.mxu0 0.0
  %3154 = vmatpush1.msra.mxu0 0.0
  %3155 = vmatprep.subr.mxu0 0.0
  %3156 = vmatpush1.msra.mxu0 0.0
  %3157 = vmatprep.subr.mxu0 0.0
  %3158 = vmatpush1.msra.mxu0 0.0
  %3159 = vmatprep.subr.mxu0 0.0
  %3160 = vmatpush1.msra.mxu0 0.0
  %3161 = vmatprep.subr.mxu0 0.0
  %3162 = vmatpush1.msra.mxu0 0.0
  %3163 = vmatprep.subr.mxu0 0.0
  %3164 = vmatpush1.msra.mxu0 0.0
  %3165 = vmatprep.subr.mxu0 0.0
  %3166 = vmatpush1.msra.mxu0 0.0
  %3167 = vmatprep.subr.mxu0 0.0
  %3168 = vmatpush1.msra.mxu0 0.0
  %3169 = vmatprep.subr.mxu0 0.0
  %3170 = vmatpush1.msra.mxu0 0.0
  %3171 = vmatprep.subr.mxu0 0.0
  %3172 = vmatpush1.msra.mxu0 0.0
  %3173 = vmatprep.subr.mxu0 0.0
  %3174 = vmatpush1.msra.mxu0 0.0
  %3175 = vmatprep.subr.mxu0 0.0
  %3176 = vmatpush1.msra.mxu0 0.0
  %3177 = vmatprep.subr.mxu0 0.0
  %3178 = vmatpush1.msra.mxu0 0.0
  %3179 = vmatprep.subr.mxu0 0.0
  %3180 = vmatpush1.msra.mxu0 0.0
  %3181 = vmatprep.subr.mxu0 0.0
  %3182 = vmatpush1.msra.mxu0 0.0
  %3183 = vmatprep.subr.mxu0 0.0
  %3184 = vmatpush1.msra.mxu0 0.0
  %3185 = vmatprep.subr.mxu0 0.0
  %3186 = vmatpush1.msra.mxu0 0.0
  %3187 = vmatprep.subr.mxu0 0.0
  %3188 = vmatpush1.msra.mxu0 0.0
  %3189 = vmatprep.subr.mxu0 0.0
  %3190 = vmatpush1.msra.mxu0 0.0
  %3191 = vmatprep.subr.mxu0 0.0
  %3192 = vmatpush1.msra.mxu0 0.0
  %3193 = vmatprep.subr.mxu0 0.0
  %3194 = vmatpush1.msra.mxu0 0.0
  %3195 = vmatprep.subr.mxu0 0.0
  %3196 = vmatpush1.msra.mxu0 0.0
  %3197 = vmatprep.subr.mxu0 0.0
  %3198 = vmatpush1.msra.mxu0 0.0
  %3199 = vmatprep.subr.mxu0 0.0
  %3200 = vmatpush1.msra.mxu0 0.0
  %3201 = vmatprep.subr.mxu0 0.0
  %3202 = vmatpush1.msra.mxu0 0.0
  %3203 = vmatprep.subr.mxu0 0.0
  %3204 = vmatpush1.msra.mxu0 0.0
  %3205 = vmatprep.subr.mxu0 0.0
  %3206 = vmatpush1.msra.mxu0 0.0
  %3207 = vmatprep.mubr.f32.mxu0 0.0
  %3208 = vmatmul.mubr.f32.gmra.mrb[0].mxu0 %v3058
  %v3209 = vpop.f32.mrb[0].mxu0
  %v3210 = vadd.f32 0.0, %v3209
  %v3211 = vpop.f32.mrb[0].mxu0
  %v3212 = vadd.f32 0.0, %v3211
  %3213 = vdwg.mxu0
  %3214 = vmatprep.subr.mxu0 %v3070
  %3215 = vmatpush1.msra.mxu0 %v3068
  %3216 = vmatprep.subr.mxu0 0.0
  %3217 = vmatpush1.msra.mxu0 0.0
  %3218 = vmatprep.subr.mxu0 0.0
  %3219 = vmatpush1.msra.mxu0 0.0
  %3220 = vmatprep.subr.mxu0 0.0
  %3221 = vmatpush1.msra.mxu0 0.0
  %3222 = vmatprep.subr.mxu0 0.0
  %3223 = vmatpush1.msra.mxu0 0.0
  %3224 = vmatprep.subr.mxu0 0.0
  %3225 = vmatpush1.msra.mxu0 0.0
  %3226 = vmatprep.subr.mxu0 0.0
  %3227 = vmatpush1.msra.mxu0 0.0
  %3228 = vmatprep.subr.mxu0 0.0
  %3229 = vmatpush1.msra.mxu0 0.0
  %3230 = vmatprep.subr.mxu0 0.0
  %3231 = vmatpush1.msra.mxu0 0.0
  %3232 = vmatprep.subr.mxu0 0.0
  %3233 = vmatpush1.msra.mxu0 0.0
  %3234 = vmatprep.subr.mxu0 0.0
  %3235 = vmatpush1.msra.mxu0 0.0
  %3236 = vmatprep.subr.mxu0 0.0
  %3237 = vmatpush1.msra.mxu0 0.0
  %3238 = vmatprep.subr.mxu0 0.0
  %3239 = vmatpush1.msra.mxu0 0.0
  %3240 = vmatprep.subr.mxu0 0.0
  %3241 = vmatpush1.msra.mxu0 0.0
  %3242 = vmatprep.subr.mxu0 0.0
  %3243 = vmatpush1.msra.mxu0 0.0
  %3244 = vmatprep.subr.mxu0 0.0
  %3245 = vmatpush1.msra.mxu0 0.0
  %3246 = vmatprep.subr.mxu0 0.0
  %3247 = vmatpush1.msra.mxu0 0.0
  %3248 = vmatprep.subr.mxu0 0.0
  %3249 = vmatpush1.msra.mxu0 0.0
  %3250 = vmatprep.subr.mxu0 0.0
  %3251 = vmatpush1.msra.mxu0 0.0
  %3252 = vmatprep.subr.mxu0 0.0
  %3253 = vmatpush1.msra.mxu0 0.0
  %3254 = vmatprep.subr.mxu0 0.0
  %3255 = vmatpush1.msra.mxu0 0.0
  %3256 = vmatprep.subr.mxu0 0.0
  %3257 = vmatpush1.msra.mxu0 0.0
  %3258 = vmatprep.subr.mxu0 0.0
  %3259 = vmatpush1.msra.mxu0 0.0
  %3260 = vmatprep.subr.mxu0 0.0
  %3261 = vmatpush1.msra.mxu0 0.0
  %3262 = vmatprep.subr.mxu0 0.0
  %3263 = vmatpush1.msra.mxu0 0.0
  %3264 = vmatprep.subr.mxu0 0.0
  %3265 = vmatpush1.msra.mxu0 0.0
  %3266 = vmatprep.subr.mxu0 0.0
  %3267 = vmatpush1.msra.mxu0 0.0
  %3268 = vmatprep.subr.mxu0 0.0
  %3269 = vmatpush1.msra.mxu0 0.0
  %3270 = vmatprep.subr.mxu0 0.0
  %3271 = vmatpush1.msra.mxu0 0.0
  %3272 = vmatprep.subr.mxu0 0.0
  %3273 = vmatpush1.msra.mxu0 0.0
  %3274 = vmatprep.subr.mxu0 0.0
  %3275 = vmatpush1.msra.mxu0 0.0
  %3276 = vmatprep.subr.mxu0 0.0
  %3277 = vmatpush1.msra.mxu0 0.0
  %3278 = vmatprep.mubr.f32.mxu0 0.0
  %3279 = vmatmul.mubr.f32.gmra.mrb[0].mxu0 %v3058
  %v3280 = vpop.f32.mrb[0].mxu0
  %v3281 = vadd.f32 0.0, %v3280
  %v3282 = vpop.f32.mrb[0].mxu0
  %v3283 = vadd.f32 0.0, %v3282
  %3284 = vdwg.mxu0
  %v3285 = vadd.f32 %v2892, %v3139
  %v3286 = vadd.f32 %v2894, %v3141
  %v3287 = vadd.f32 %v2963, %v3210
  %v3288 = vadd.f32 %v2965, %v3212
  %v3289 = vadd.f32 %v3034, %v3281
  %v3290 = vadd.f32 %v3036, %v3283
  %s3291 = scalar_lea.vmem %s4, 12
  %v3292 = vld [vmem:[%s3291] sm:$0xf]
  %3293 = vrot.lane.b32.xlu0 %v2550, 110
  %v3294 = vpop.permute.xlu0 %3293
  %3295 = vrot.lane.b32.xlu0 %v2551, 110
  %v3296 = vpop.permute.xlu0 %3295
  %3297 = vrot.lane.b32.xlu0 %v2552, 110
  %v3298 = vpop.permute.xlu0 %3297
  %3299 = vrot.lane.b32.xlu0 %v2553, 110
  %v3300 = vpop.permute.xlu0 %3299
  %3301 = vrot.lane.b32.xlu0 %v2554, 110
  %v3302 = vpop.permute.xlu0 %3301
  %3303 = vrot.lane.b32.xlu0 %v2555, 110
  %v3304 = vpop.permute.xlu0 %3303
  %v3305 = vsel %vm844, %v3294, %v3296
  %v3306 = vsel %vm844, %v3296, %v3298
  %v3307 = vsel %vm844, %v3298, %v3300
  %v3308 = vsel %vm844, %v3300, %v3302
  %v3309 = vsel %vm844, %v3302, %v3304
  %v3311 = vsel %vm118, %v3292, 0
  %v3313 = vsel %vm122, %v3305, 0
  %v3315 = vsel %vm122, %v3306, 0
  %v3317 = vsel %vm122, %v3307, 0
  %v3319 = vsel %vm122, %v3308, 0
  %v3321 = vsel %vm122, %v3309, 0
  %v3323 = vsel %vm122, %v3304, 0
  %3325 = vmatprep.subr.mxu0 %v3315
  %3326 = vmatpush1.msra.mxu0 %v3313
  %3327 = vmatprep.subr.mxu0 0.0
  %3328 = vmatpush1.msra.mxu0 0.0
  %3329 = vmatprep.subr.mxu0 0.0
  %3330 = vmatpush1.msra.mxu0 0.0
  %3331 = vmatprep.subr.mxu0 0.0
  %3332 = vmatpush1.msra.mxu0 0.0
  %3333 = vmatprep.subr.mxu0 0.0
  %3334 = vmatpush1.msra.mxu0 0.0
  %3335 = vmatprep.subr.mxu0 0.0
  %3336 = vmatpush1.msra.mxu0 0.0
  %3337 = vmatprep.subr.mxu0 0.0
  %3338 = vmatpush1.msra.mxu0 0.0
  %3339 = vmatprep.subr.mxu0 0.0
  %3340 = vmatpush1.msra.mxu0 0.0
  %3341 = vmatprep.subr.mxu0 0.0
  %3342 = vmatpush1.msra.mxu0 0.0
  %3343 = vmatprep.subr.mxu0 0.0
  %3344 = vmatpush1.msra.mxu0 0.0
  %3345 = vmatprep.subr.mxu0 0.0
  %3346 = vmatpush1.msra.mxu0 0.0
  %3347 = vmatprep.subr.mxu0 0.0
  %3348 = vmatpush1.msra.mxu0 0.0
  %3349 = vmatprep.subr.mxu0 0.0
  %3350 = vmatpush1.msra.mxu0 0.0
  %3351 = vmatprep.subr.mxu0 0.0
  %3352 = vmatpush1.msra.mxu0 0.0
  %3353 = vmatprep.subr.mxu0 0.0
  %3354 = vmatpush1.msra.mxu0 0.0
  %3355 = vmatprep.subr.mxu0 0.0
  %3356 = vmatpush1.msra.mxu0 0.0
  %3357 = vmatprep.subr.mxu0 0.0
  %3358 = vmatpush1.msra.mxu0 0.0
  %3359 = vmatprep.subr.mxu0 0.0
  %3360 = vmatpush1.msra.mxu0 0.0
  %3361 = vmatprep.subr.mxu0 0.0
  %3362 = vmatpush1.msra.mxu0 0.0
  %3363 = vmatprep.subr.mxu0 0.0
  %3364 = vmatpush1.msra.mxu0 0.0
  %3365 = vmatprep.subr.mxu0 0.0
  %3366 = vmatpush1.msra.mxu0 0.0
  %3367 = vmatprep.subr.mxu0 0.0
  %3368 = vmatpush1.msra.mxu0 0.0
  %3369 = vmatprep.subr.mxu0 0.0
  %3370 = vmatpush1.msra.mxu0 0.0
  %3371 = vmatprep.subr.mxu0 0.0
  %3372 = vmatpush1.msra.mxu0 0.0
  %3373 = vmatprep.subr.mxu0 0.0
  %3374 = vmatpush1.msra.mxu0 0.0
  %3375 = vmatprep.subr.mxu0 0.0
  %3376 = vmatpush1.msra.mxu0 0.0
  %3377 = vmatprep.subr.mxu0 0.0
  %3378 = vmatpush1.msra.mxu0 0.0
  %3379 = vmatprep.subr.mxu0 0.0
  %3380 = vmatpush1.msra.mxu0 0.0
  %3381 = vmatprep.subr.mxu0 0.0
  %3382 = vmatpush1.msra.mxu0 0.0
  %3383 = vmatprep.subr.mxu0 0.0
  %3384 = vmatpush1.msra.mxu0 0.0
  %3385 = vmatprep.subr.mxu0 0.0
  %3386 = vmatpush1.msra.mxu0 0.0
  %3387 = vmatprep.subr.mxu0 0.0
  %3388 = vmatpush1.msra.mxu0 0.0
  %3389 = vmatprep.mubr.f32.mxu0 0.0
  %3390 = vmatmul.mubr.f32.gmra.mrb[0].mxu0 %v3311
  %v3391 = vpop.f32.mrb[0].mxu0
  %v3392 = vadd.f32 0.0, %v3391
  %v3393 = vpop.f32.mrb[0].mxu0
  %v3394 = vadd.f32 0.0, %v3393
  %3395 = vdwg.mxu0
  %3396 = vmatprep.subr.mxu0 %v3319
  %3397 = vmatpush1.msra.mxu0 %v3317
  %3398 = vmatprep.subr.mxu0 0.0
  %3399 = vmatpush1.msra.mxu0 0.0
  %3400 = vmatprep.subr.mxu0 0.0
  %3401 = vmatpush1.msra.mxu0 0.0
  %3402 = vmatprep.subr.mxu0 0.0
  %3403 = vmatpush1.msra.mxu0 0.0
  %3404 = vmatprep.subr.mxu0 0.0
  %3405 = vmatpush1.msra.mxu0 0.0
  %3406 = vmatprep.subr.mxu0 0.0
  %3407 = vmatpush1.msra.mxu0 0.0
  %3408 = vmatprep.subr.mxu0 0.0
  %3409 = vmatpush1.msra.mxu0 0.0
  %3410 = vmatprep.subr.mxu0 0.0
  %3411 = vmatpush1.msra.mxu0 0.0
  %3412 = vmatprep.subr.mxu0 0.0
  %3413 = vmatpush1.msra.mxu0 0.0
  %3414 = vmatprep.subr.mxu0 0.0
  %3415 = vmatpush1.msra.mxu0 0.0
  %3416 = vmatprep.subr.mxu0 0.0
  %3417 = vmatpush1.msra.mxu0 0.0
  %3418 = vmatprep.subr.mxu0 0.0
  %3419 = vmatpush1.msra.mxu0 0.0
  %3420 = vmatprep.subr.mxu0 0.0
  %3421 = vmatpush1.msra.mxu0 0.0
  %3422 = vmatprep.subr.mxu0 0.0
  %3423 = vmatpush1.msra.mxu0 0.0
  %3424 = vmatprep.subr.mxu0 0.0
  %3425 = vmatpush1.msra.mxu0 0.0
  %3426 = vmatprep.subr.mxu0 0.0
  %3427 = vmatpush1.msra.mxu0 0.0
  %3428 = vmatprep.subr.mxu0 0.0
  %3429 = vmatpush1.msra.mxu0 0.0
  %3430 = vmatprep.subr.mxu0 0.0
  %3431 = vmatpush1.msra.mxu0 0.0
  %3432 = vmatprep.subr.mxu0 0.0
  %3433 = vmatpush1.msra.mxu0 0.0
  %3434 = vmatprep.subr.mxu0 0.0
  %3435 = vmatpush1.msra.mxu0 0.0
  %3436 = vmatprep.subr.mxu0 0.0
  %3437 = vmatpush1.msra.mxu0 0.0
  %3438 = vmatprep.subr.mxu0 0.0
  %3439 = vmatpush1.msra.mxu0 0.0
  %3440 = vmatprep.subr.mxu0 0.0
  %3441 = vmatpush1.msra.mxu0 0.0
  %3442 = vmatprep.subr.mxu0 0.0
  %3443 = vmatpush1.msra.mxu0 0.0
  %3444 = vmatprep.subr.mxu0 0.0
  %3445 = vmatpush1.msra.mxu0 0.0
  %3446 = vmatprep.subr.mxu0 0.0
  %3447 = vmatpush1.msra.mxu0 0.0
  %3448 = vmatprep.subr.mxu0 0.0
  %3449 = vmatpush1.msra.mxu0 0.0
  %3450 = vmatprep.subr.mxu0 0.0
  %3451 = vmatpush1.msra.mxu0 0.0
  %3452 = vmatprep.subr.mxu0 0.0
  %3453 = vmatpush1.msra.mxu0 0.0
  %3454 = vmatprep.subr.mxu0 0.0
  %3455 = vmatpush1.msra.mxu0 0.0
  %3456 = vmatprep.subr.mxu0 0.0
  %3457 = vmatpush1.msra.mxu0 0.0
  %3458 = vmatprep.subr.mxu0 0.0
  %3459 = vmatpush1.msra.mxu0 0.0
  %3460 = vmatprep.mubr.f32.mxu0 0.0
  %3461 = vmatmul.mubr.f32.gmra.mrb[0].mxu0 %v3311
  %v3462 = vpop.f32.mrb[0].mxu0
  %v3463 = vadd.f32 0.0, %v3462
  %v3464 = vpop.f32.mrb[0].mxu0
  %v3465 = vadd.f32 0.0, %v3464
  %3466 = vdwg.mxu0
  %3467 = vmatprep.subr.mxu0 %v3323
  %3468 = vmatpush1.msra.mxu0 %v3321
  %3469 = vmatprep.subr.mxu0 0.0
  %3470 = vmatpush1.msra.mxu0 0.0
  %3471 = vmatprep.subr.mxu0 0.0
  %3472 = vmatpush1.msra.mxu0 0.0
  %3473 = vmatprep.subr.mxu0 0.0
  %3474 = vmatpush1.msra.mxu0 0.0
  %3475 = vmatprep.subr.mxu0 0.0
  %3476 = vmatpush1.msra.mxu0 0.0
  %3477 = vmatprep.subr.mxu0 0.0
  %3478 = vmatpush1.msra.mxu0 0.0
  %3479 = vmatprep.subr.mxu0 0.0
  %3480 = vmatpush1.msra.mxu0 0.0
  %3481 = vmatprep.subr.mxu0 0.0
  %3482 = vmatpush1.msra.mxu0 0.0
  %3483 = vmatprep.subr.mxu0 0.0
  %3484 = vmatpush1.msra.mxu0 0.0
  %3485 = vmatprep.subr.mxu0 0.0
  %3486 = vmatpush1.msra.mxu0 0.0
  %3487 = vmatprep.subr.mxu0 0.0
  %3488 = vmatpush1.msra.mxu0 0.0
  %3489 = vmatprep.subr.mxu0 0.0
  %3490 = vmatpush1.msra.mxu0 0.0
  %3491 = vmatprep.subr.mxu0 0.0
  %3492 = vmatpush1.msra.mxu0 0.0
  %3493 = vmatprep.subr.mxu0 0.0
  %3494 = vmatpush1.msra.mxu0 0.0
  %3495 = vmatprep.subr.mxu0 0.0
  %3496 = vmatpush1.msra.mxu0 0.0
  %3497 = vmatprep.subr.mxu0 0.0
  %3498 = vmatpush1.msra.mxu0 0.0
  %3499 = vmatprep.subr.mxu0 0.0
  %3500 = vmatpush1.msra.mxu0 0.0
  %3501 = vmatprep.subr.mxu0 0.0
  %3502 = vmatpush1.msra.mxu0 0.0
  %3503 = vmatprep.subr.mxu0 0.0
  %3504 = vmatpush1.msra.mxu0 0.0
  %3505 = vmatprep.subr.mxu0 0.0
  %3506 = vmatpush1.msra.mxu0 0.0
  %3507 = vmatprep.subr.mxu0 0.0
  %3508 = vmatpush1.msra.mxu0 0.0
  %3509 = vmatprep.subr.mxu0 0.0
  %3510 = vmatpush1.msra.mxu0 0.0
  %3511 = vmatprep.subr.mxu0 0.0
  %3512 = vmatpush1.msra.mxu0 0.0
  %3513 = vmatprep.subr.mxu0 0.0
  %3514 = vmatpush1.msra.mxu0 0.0
  %3515 = vmatprep.subr.mxu0 0.0
  %3516 = vmatpush1.msra.mxu0 0.0
  %3517 = vmatprep.subr.mxu0 0.0
  %3518 = vmatpush1.msra.mxu0 0.0
  %3519 = vmatprep.subr.mxu0 0.0
  %3520 = vmatpush1.msra.mxu0 0.0
  %3521 = vmatprep.subr.mxu0 0.0
  %3522 = vmatpush1.msra.mxu0 0.0
  %3523 = vmatprep.subr.mxu0 0.0
  %3524 = vmatpush1.msra.mxu0 0.0
  %3525 = vmatprep.subr.mxu0 0.0
  %3526 = vmatpush1.msra.mxu0 0.0
  %3527 = vmatprep.subr.mxu0 0.0
  %3528 = vmatpush1.msra.mxu0 0.0
  %3529 = vmatprep.subr.mxu0 0.0
  %3530 = vmatpush1.msra.mxu0 0.0
  %3531 = vmatprep.mubr.f32.mxu0 0.0
  %3532 = vmatmul.mubr.f32.gmra.mrb[0].mxu0 %v3311
  %v3533 = vpop.f32.mrb[0].mxu0
  %v3534 = vadd.f32 0.0, %v3533
  %v3535 = vpop.f32.mrb[0].mxu0
  %v3536 = vadd.f32 0.0, %v3535
  %3537 = vdwg.mxu0
  %v3538 = vadd.f32 %v3285, %v3392
  %v3539 = vadd.f32 %v3286, %v3394
  %v3540 = vadd.f32 %v3287, %v3463
  %v3541 = vadd.f32 %v3288, %v3465
  %v3542 = vadd.f32 %v3289, %v3534
  %v3543 = vadd.f32 %v3290, %v3536
  %s3544 = scalar_lea.vmem %s4, 16
  %v3545 = vld [vmem:[%s3544] sm:$0xf]
  %3546 = vrot.lane.b32.xlu0 %v2550, 109
  %v3547 = vpop.permute.xlu0 %3546
  %3548 = vrot.lane.b32.xlu0 %v2551, 109
  %v3549 = vpop.permute.xlu0 %3548
  %3550 = vrot.lane.b32.xlu0 %v2552, 109
  %v3551 = vpop.permute.xlu0 %3550
  %3552 = vrot.lane.b32.xlu0 %v2553, 109
  %v3553 = vpop.permute.xlu0 %3552
  %3554 = vrot.lane.b32.xlu0 %v2554, 109
  %v3555 = vpop.permute.xlu0 %3554
  %3556 = vrot.lane.b32.xlu0 %v2555, 109
  %v3557 = vpop.permute.xlu0 %3556
  %v3558 = vsel %vm1098, %v3547, %v3549
  %v3559 = vsel %vm1098, %v3549, %v3551
  %v3560 = vsel %vm1098, %v3551, %v3553
  %v3561 = vsel %vm1098, %v3553, %v3555
  %v3562 = vsel %vm1098, %v3555, %v3557
  %v3564 = vsel %vm118, %v3545, 0
  %v3566 = vsel %vm122, %v3558, 0
  %v3568 = vsel %vm122, %v3559, 0
  %v3570 = vsel %vm122, %v3560, 0
  %v3572 = vsel %vm122, %v3561, 0
  %v3574 = vsel %vm122, %v3562, 0
  %v3576 = vsel %vm122, %v3557, 0
  %3578 = vmatprep.subr.mxu0 %v3568
  %3579 = vmatpush1.msra.mxu0 %v3566
  %3580 = vmatprep.subr.mxu0 0.0
  %3581 = vmatpush1.msra.mxu0 0.0
  %3582 = vmatprep.subr.mxu0 0.0
  %3583 = vmatpush1.msra.mxu0 0.0
  %3584 = vmatprep.subr.mxu0 0.0
  %3585 = vmatpush1.msra.mxu0 0.0
  %3586 = vmatprep.subr.mxu0 0.0
  %3587 = vmatpush1.msra.mxu0 0.0
  %3588 = vmatprep.subr.mxu0 0.0
  %3589 = vmatpush1.msra.mxu0 0.0
  %3590 = vmatprep.subr.mxu0 0.0
  %3591 = vmatpush1.msra.mxu0 0.0
  %3592 = vmatprep.subr.mxu0 0.0
  %3593 = vmatpush1.msra.mxu0 0.0
  %3594 = vmatprep.subr.mxu0 0.0
  %3595 = vmatpush1.msra.mxu0 0.0
  %3596 = vmatprep.subr.mxu0 0.0
  %3597 = vmatpush1.msra.mxu0 0.0
  %3598 = vmatprep.subr.mxu0 0.0
  %3599 = vmatpush1.msra.mxu0 0.0
  %3600 = vmatprep.subr.mxu0 0.0
  %3601 = vmatpush1.msra.mxu0 0.0
  %3602 = vmatprep.subr.mxu0 0.0
  %3603 = vmatpush1.msra.mxu0 0.0
  %3604 = vmatprep.subr.mxu0 0.0
  %3605 = vmatpush1.msra.mxu0 0.0
  %3606 = vmatprep.subr.mxu0 0.0
  %3607 = vmatpush1.msra.mxu0 0.0
  %3608 = vmatprep.subr.mxu0 0.0
  %3609 = vmatpush1.msra.mxu0 0.0
  %3610 = vmatprep.subr.mxu0 0.0
  %3611 = vmatpush1.msra.mxu0 0.0
  %3612 = vmatprep.subr.mxu0 0.0
  %3613 = vmatpush1.msra.mxu0 0.0
  %3614 = vmatprep.subr.mxu0 0.0
  %3615 = vmatpush1.msra.mxu0 0.0
  %3616 = vmatprep.subr.mxu0 0.0
  %3617 = vmatpush1.msra.mxu0 0.0
  %3618 = vmatprep.subr.mxu0 0.0
  %3619 = vmatpush1.msra.mxu0 0.0
  %3620 = vmatprep.subr.mxu0 0.0
  %3621 = vmatpush1.msra.mxu0 0.0
  %3622 = vmatprep.subr.mxu0 0.0
  %3623 = vmatpush1.msra.mxu0 0.0
  %3624 = vmatprep.subr.mxu0 0.0
  %3625 = vmatpush1.msra.mxu0 0.0
  %3626 = vmatprep.subr.mxu0 0.0
  %3627 = vmatpush1.msra.mxu0 0.0
  %3628 = vmatprep.subr.mxu0 0.0
  %3629 = vmatpush1.msra.mxu0 0.0
  %3630 = vmatprep.subr.mxu0 0.0
  %3631 = vmatpush1.msra.mxu0 0.0
  %3632 = vmatprep.subr.mxu0 0.0
  %3633 = vmatpush1.msra.mxu0 0.0
  %3634 = vmatprep.subr.mxu0 0.0
  %3635 = vmatpush1.msra.mxu0 0.0
  %3636 = vmatprep.subr.mxu0 0.0
  %3637 = vmatpush1.msra.mxu0 0.0
  %3638 = vmatprep.subr.mxu0 0.0
  %3639 = vmatpush1.msra.mxu0 0.0
  %3640 = vmatprep.subr.mxu0 0.0
  %3641 = vmatpush1.msra.mxu0 0.0
  %3642 = vmatprep.mubr.f32.mxu0 0.0
  %3643 = vmatmul.mubr.f32.gmra.mrb[0].mxu0 %v3564
  %v3644 = vpop.f32.mrb[0].mxu0
  %v3645 = vadd.f32 0.0, %v3644
  %v3646 = vpop.f32.mrb[0].mxu0
  %v3647 = vadd.f32 0.0, %v3646
  %3648 = vdwg.mxu0
  %3649 = vmatprep.subr.mxu0 %v3572
  %3650 = vmatpush1.msra.mxu0 %v3570
  %3651 = vmatprep.subr.mxu0 0.0
  %3652 = vmatpush1.msra.mxu0 0.0
  %3653 = vmatprep.subr.mxu0 0.0
  %3654 = vmatpush1.msra.mxu0 0.0
  %3655 = vmatprep.subr.mxu0 0.0
  %3656 = vmatpush1.msra.mxu0 0.0
  %3657 = vmatprep.subr.mxu0 0.0
  %3658 = vmatpush1.msra.mxu0 0.0
  %3659 = vmatprep.subr.mxu0 0.0
  %3660 = vmatpush1.msra.mxu0 0.0
  %3661 = vmatprep.subr.mxu0 0.0
  %3662 = vmatpush1.msra.mxu0 0.0
  %3663 = vmatprep.subr.mxu0 0.0
  %3664 = vmatpush1.msra.mxu0 0.0
  %3665 = vmatprep.subr.mxu0 0.0
  %3666 = vmatpush1.msra.mxu0 0.0
  %3667 = vmatprep.subr.mxu0 0.0
  %3668 = vmatpush1.msra.mxu0 0.0
  %3669 = vmatprep.subr.mxu0 0.0
  %3670 = vmatpush1.msra.mxu0 0.0
  %3671 = vmatprep.subr.mxu0 0.0
  %3672 = vmatpush1.msra.mxu0 0.0
  %3673 = vmatprep.subr.mxu0 0.0
  %3674 = vmatpush1.msra.mxu0 0.0
  %3675 = vmatprep.subr.mxu0 0.0
  %3676 = vmatpush1.msra.mxu0 0.0
  %3677 = vmatprep.subr.mxu0 0.0
  %3678 = vmatpush1.msra.mxu0 0.0
  %3679 = vmatprep.subr.mxu0 0.0
  %3680 = vmatpush1.msra.mxu0 0.0
  %3681 = vmatprep.subr.mxu0 0.0
  %3682 = vmatpush1.msra.mxu0 0.0
  %3683 = vmatprep.subr.mxu0 0.0
  %3684 = vmatpush1.msra.mxu0 0.0
  %3685 = vmatprep.subr.mxu0 0.0
  %3686 = vmatpush1.msra.mxu0 0.0
  %3687 = vmatprep.subr.mxu0 0.0
  %3688 = vmatpush1.msra.mxu0 0.0
  %3689 = vmatprep.subr.mxu0 0.0
  %3690 = vmatpush1.msra.mxu0 0.0
  %3691 = vmatprep.subr.mxu0 0.0
  %3692 = vmatpush1.msra.mxu0 0.0
  %3693 = vmatprep.subr.mxu0 0.0
  %3694 = vmatpush1.msra.mxu0 0.0
  %3695 = vmatprep.subr.mxu0 0.0
  %3696 = vmatpush1.msra.mxu0 0.0
  %3697 = vmatprep.subr.mxu0 0.0
  %3698 = vmatpush1.msra.mxu0 0.0
  %3699 = vmatprep.subr.mxu0 0.0
  %3700 = vmatpush1.msra.mxu0 0.0
  %3701 = vmatprep.subr.mxu0 0.0
  %3702 = vmatpush1.msra.mxu0 0.0
  %3703 = vmatprep.subr.mxu0 0.0
  %3704 = vmatpush1.msra.mxu0 0.0
  %3705 = vmatprep.subr.mxu0 0.0
  %3706 = vmatpush1.msra.mxu0 0.0
  %3707 = vmatprep.subr.mxu0 0.0
  %3708 = vmatpush1.msra.mxu0 0.0
  %3709 = vmatprep.subr.mxu0 0.0
  %3710 = vmatpush1.msra.mxu0 0.0
  %3711 = vmatprep.subr.mxu0 0.0
  %3712 = vmatpush1.msra.mxu0 0.0
  %3713 = vmatprep.mubr.f32.mxu0 0.0
  %3714 = vmatmul.mubr.f32.gmra.mrb[0].mxu0 %v3564
  %v3715 = vpop.f32.mrb[0].mxu0
  %v3716 = vadd.f32 0.0, %v3715
  %v3717 = vpop.f32.mrb[0].mxu0
  %v3718 = vadd.f32 0.0, %v3717
  %3719 = vdwg.mxu0
  %3720 = vmatprep.subr.mxu0 %v3576
  %3721 = vmatpush1.msra.mxu0 %v3574
  %3722 = vmatprep.subr.mxu0 0.0
  %3723 = vmatpush1.msra.mxu0 0.0
  %3724 = vmatprep.subr.mxu0 0.0
  %3725 = vmatpush1.msra.mxu0 0.0
  %3726 = vmatprep.subr.mxu0 0.0
  %3727 = vmatpush1.msra.mxu0 0.0
  %3728 = vmatprep.subr.mxu0 0.0
  %3729 = vmatpush1.msra.mxu0 0.0
  %3730 = vmatprep.subr.mxu0 0.0
  %3731 = vmatpush1.msra.mxu0 0.0
  %3732 = vmatprep.subr.mxu0 0.0
  %3733 = vmatpush1.msra.mxu0 0.0
  %3734 = vmatprep.subr.mxu0 0.0
  %3735 = vmatpush1.msra.mxu0 0.0
  %3736 = vmatprep.subr.mxu0 0.0
  %3737 = vmatpush1.msra.mxu0 0.0
  %3738 = vmatprep.subr.mxu0 0.0
  %3739 = vmatpush1.msra.mxu0 0.0
  %3740 = vmatprep.subr.mxu0 0.0
  %3741 = vmatpush1.msra.mxu0 0.0
  %3742 = vmatprep.subr.mxu0 0.0
  %3743 = vmatpush1.msra.mxu0 0.0
  %3744 = vmatprep.subr.mxu0 0.0
  %3745 = vmatpush1.msra.mxu0 0.0
  %3746 = vmatprep.subr.mxu0 0.0
  %3747 = vmatpush1.msra.mxu0 0.0
  %3748 = vmatprep.subr.mxu0 0.0
  %3749 = vmatpush1.msra.mxu0 0.0
  %3750 = vmatprep.subr.mxu0 0.0
  %3751 = vmatpush1.msra.mxu0 0.0
  %3752 = vmatprep.subr.mxu0 0.0
  %3753 = vmatpush1.msra.mxu0 0.0
  %3754 = vmatprep.subr.mxu0 0.0
  %3755 = vmatpush1.msra.mxu0 0.0
  %3756 = vmatprep.subr.mxu0 0.0
  %3757 = vmatpush1.msra.mxu0 0.0
  %3758 = vmatprep.subr.mxu0 0.0
  %3759 = vmatpush1.msra.mxu0 0.0
  %3760 = vmatprep.subr.mxu0 0.0
  %3761 = vmatpush1.msra.mxu0 0.0
  %3762 = vmatprep.subr.mxu0 0.0
  %3763 = vmatpush1.msra.mxu0 0.0
  %3764 = vmatprep.subr.mxu0 0.0
  %3765 = vmatpush1.msra.mxu0 0.0
  %3766 = vmatprep.subr.mxu0 0.0
  %3767 = vmatpush1.msra.mxu0 0.0
  %3768 = vmatprep.subr.mxu0 0.0
  %3769 = vmatpush1.msra.mxu0 0.0
  %3770 = vmatprep.subr.mxu0 0.0
  %3771 = vmatpush1.msra.mxu0 0.0
  %3772 = vmatprep.subr.mxu0 0.0
  %3773 = vmatpush1.msra.mxu0 0.0
  %3774 = vmatprep.subr.mxu0 0.0
  %3775 = vmatpush1.msra.mxu0 0.0
  %3776 = vmatprep.subr.mxu0 0.0
  %3777 = vmatpush1.msra.mxu0 0.0
  %3778 = vmatprep.subr.mxu0 0.0
  %3779 = vmatpush1.msra.mxu0 0.0
  %3780 = vmatprep.subr.mxu0 0.0
  %3781 = vmatpush1.msra.mxu0 0.0
  %3782 = vmatprep.subr.mxu0 0.0
  %3783 = vmatpush1.msra.mxu0 0.0
  %3784 = vmatprep.mubr.f32.mxu0 0.0
  %3785 = vmatmul.mubr.f32.gmra.mrb[0].mxu0 %v3564
  %v3786 = vpop.f32.mrb[0].mxu0
  %v3787 = vadd.f32 0.0, %v3786
  %v3788 = vpop.f32.mrb[0].mxu0
  %v3789 = vadd.f32 0.0, %v3788
  %3790 = vdwg.mxu0
  %v3791 = vadd.f32 %v3538, %v3645
  %v3792 = vadd.f32 %v3539, %v3647
  %v3793 = vadd.f32 %v3540, %v3716
  %v3794 = vadd.f32 %v3541, %v3718
  %v3795 = vadd.f32 %v3542, %v3787
  %v3796 = vadd.f32 %v3543, %v3789
  %s3797 = scalar_lea.vmem %s4, 20
  %v3798 = vld [vmem:[%s3797] sm:$0xf]
  %3799 = vrot.lane.b32.xlu0 %v2550, 108
  %v3800 = vpop.permute.xlu0 %3799
  %3801 = vrot.lane.b32.xlu0 %v2551, 108
  %v3802 = vpop.permute.xlu0 %3801
  %3803 = vrot.lane.b32.xlu0 %v2552, 108
  %v3804 = vpop.permute.xlu0 %3803
  %3805 = vrot.lane.b32.xlu0 %v2553, 108
  %v3806 = vpop.permute.xlu0 %3805
  %3807 = vrot.lane.b32.xlu0 %v2554, 108
  %v3808 = vpop.permute.xlu0 %3807
  %3809 = vrot.lane.b32.xlu0 %v2555, 108
  %v3810 = vpop.permute.xlu0 %3809
  %v3811 = vsel %vm1352, %v3800, %v3802
  %v3812 = vsel %vm1352, %v3802, %v3804
  %v3813 = vsel %vm1352, %v3804, %v3806
  %v3814 = vsel %vm1352, %v3806, %v3808
  %v3815 = vsel %vm1352, %v3808, %v3810
  %v3817 = vsel %vm118, %v3798, 0
  %v3819 = vsel %vm122, %v3811, 0
  %v3821 = vsel %vm122, %v3812, 0
  %v3823 = vsel %vm122, %v3813, 0
  %v3825 = vsel %vm122, %v3814, 0
  %v3827 = vsel %vm122, %v3815, 0
  %v3829 = vsel %vm122, %v3810, 0
  %3831 = vmatprep.subr.mxu0 %v3821
  %3832 = vmatpush1.msra.mxu0 %v3819
  %3833 = vmatprep.subr.mxu0 0.0
  %3834 = vmatpush1.msra.mxu0 0.0
  %3835 = vmatprep.subr.mxu0 0.0
  %3836 = vmatpush1.msra.mxu0 0.0
  %3837 = vmatprep.subr.mxu0 0.0
  %3838 = vmatpush1.msra.mxu0 0.0
  %3839 = vmatprep.subr.mxu0 0.0
  %3840 = vmatpush1.msra.mxu0 0.0
  %3841 = vmatprep.subr.mxu0 0.0
  %3842 = vmatpush1.msra.mxu0 0.0
  %3843 = vmatprep.subr.mxu0 0.0
  %3844 = vmatpush1.msra.mxu0 0.0
  %3845 = vmatprep.subr.mxu0 0.0
  %3846 = vmatpush1.msra.mxu0 0.0
  %3847 = vmatprep.subr.mxu0 0.0
  %3848 = vmatpush1.msra.mxu0 0.0
  %3849 = vmatprep.subr.mxu0 0.0
  %3850 = vmatpush1.msra.mxu0 0.0
  %3851 = vmatprep.subr.mxu0 0.0
  %3852 = vmatpush1.msra.mxu0 0.0
  %3853 = vmatprep.subr.mxu0 0.0
  %3854 = vmatpush1.msra.mxu0 0.0
  %3855 = vmatprep.subr.mxu0 0.0
  %3856 = vmatpush1.msra.mxu0 0.0
  %3857 = vmatprep.subr.mxu0 0.0
  %3858 = vmatpush1.msra.mxu0 0.0
  %3859 = vmatprep.subr.mxu0 0.0
  %3860 = vmatpush1.msra.mxu0 0.0
  %3861 = vmatprep.subr.mxu0 0.0
  %3862 = vmatpush1.msra.mxu0 0.0
  %3863 = vmatprep.subr.mxu0 0.0
  %3864 = vmatpush1.msra.mxu0 0.0
  %3865 = vmatprep.subr.mxu0 0.0
  %3866 = vmatpush1.msra.mxu0 0.0
  %3867 = vmatprep.subr.mxu0 0.0
  %3868 = vmatpush1.msra.mxu0 0.0
  %3869 = vmatprep.subr.mxu0 0.0
  %3870 = vmatpush1.msra.mxu0 0.0
  %3871 = vmatprep.subr.mxu0 0.0
  %3872 = vmatpush1.msra.mxu0 0.0
  %3873 = vmatprep.subr.mxu0 0.0
  %3874 = vmatpush1.msra.mxu0 0.0
  %3875 = vmatprep.subr.mxu0 0.0
  %3876 = vmatpush1.msra.mxu0 0.0
  %3877 = vmatprep.subr.mxu0 0.0
  %3878 = vmatpush1.msra.mxu0 0.0
  %3879 = vmatprep.subr.mxu0 0.0
  %3880 = vmatpush1.msra.mxu0 0.0
  %3881 = vmatprep.subr.mxu0 0.0
  %3882 = vmatpush1.msra.mxu0 0.0
  %3883 = vmatprep.subr.mxu0 0.0
  %3884 = vmatpush1.msra.mxu0 0.0
  %3885 = vmatprep.subr.mxu0 0.0
  %3886 = vmatpush1.msra.mxu0 0.0
  %3887 = vmatprep.subr.mxu0 0.0
  %3888 = vmatpush1.msra.mxu0 0.0
  %3889 = vmatprep.subr.mxu0 0.0
  %3890 = vmatpush1.msra.mxu0 0.0
  %3891 = vmatprep.subr.mxu0 0.0
  %3892 = vmatpush1.msra.mxu0 0.0
  %3893 = vmatprep.subr.mxu0 0.0
  %3894 = vmatpush1.msra.mxu0 0.0
  %3895 = vmatprep.mubr.f32.mxu0 0.0
  %3896 = vmatmul.mubr.f32.gmra.mrb[0].mxu0 %v3817
  %v3897 = vpop.f32.mrb[0].mxu0
  %v3898 = vadd.f32 0.0, %v3897
  %v3899 = vpop.f32.mrb[0].mxu0
  %v3900 = vadd.f32 0.0, %v3899
  %3901 = vdwg.mxu0
  %3902 = vmatprep.subr.mxu0 %v3825
  %3903 = vmatpush1.msra.mxu0 %v3823
  %3904 = vmatprep.subr.mxu0 0.0
  %3905 = vmatpush1.msra.mxu0 0.0
  %3906 = vmatprep.subr.mxu0 0.0
  %3907 = vmatpush1.msra.mxu0 0.0
  %3908 = vmatprep.subr.mxu0 0.0
  %3909 = vmatpush1.msra.mxu0 0.0
  %3910 = vmatprep.subr.mxu0 0.0
  %3911 = vmatpush1.msra.mxu0 0.0
  %3912 = vmatprep.subr.mxu0 0.0
  %3913 = vmatpush1.msra.mxu0 0.0
  %3914 = vmatprep.subr.mxu0 0.0
  %3915 = vmatpush1.msra.mxu0 0.0
  %3916 = vmatprep.subr.mxu0 0.0
  %3917 = vmatpush1.msra.mxu0 0.0
  %3918 = vmatprep.subr.mxu0 0.0
  %3919 = vmatpush1.msra.mxu0 0.0
  %3920 = vmatprep.subr.mxu0 0.0
  %3921 = vmatpush1.msra.mxu0 0.0
  %3922 = vmatprep.subr.mxu0 0.0
  %3923 = vmatpush1.msra.mxu0 0.0
  %3924 = vmatprep.subr.mxu0 0.0
  %3925 = vmatpush1.msra.mxu0 0.0
  %3926 = vmatprep.subr.mxu0 0.0
  %3927 = vmatpush1.msra.mxu0 0.0
  %3928 = vmatprep.subr.mxu0 0.0
  %3929 = vmatpush1.msra.mxu0 0.0
  %3930 = vmatprep.subr.mxu0 0.0
  %3931 = vmatpush1.msra.mxu0 0.0
  %3932 = vmatprep.subr.mxu0 0.0
  %3933 = vmatpush1.msra.mxu0 0.0
  %3934 = vmatprep.subr.mxu0 0.0
  %3935 = vmatpush1.msra.mxu0 0.0
  %3936 = vmatprep.subr.mxu0 0.0
  %3937 = vmatpush1.msra.mxu0 0.0
  %3938 = vmatprep.subr.mxu0 0.0
  %3939 = vmatpush1.msra.mxu0 0.0
  %3940 = vmatprep.subr.mxu0 0.0
  %3941 = vmatpush1.msra.mxu0 0.0
  %3942 = vmatprep.subr.mxu0 0.0
  %3943 = vmatpush1.msra.mxu0 0.0
  %3944 = vmatprep.subr.mxu0 0.0
  %3945 = vmatpush1.msra.mxu0 0.0
  %3946 = vmatprep.subr.mxu0 0.0
  %3947 = vmatpush1.msra.mxu0 0.0
  %3948 = vmatprep.subr.mxu0 0.0
  %3949 = vmatpush1.msra.mxu0 0.0
  %3950 = vmatprep.subr.mxu0 0.0
  %3951 = vmatpush1.msra.mxu0 0.0
  %3952 = vmatprep.subr.mxu0 0.0
  %3953 = vmatpush1.msra.mxu0 0.0
  %3954 = vmatprep.subr.mxu0 0.0
  %3955 = vmatpush1.msra.mxu0 0.0
  %3956 = vmatprep.subr.mxu0 0.0
  %3957 = vmatpush1.msra.mxu0 0.0
  %3958 = vmatprep.subr.mxu0 0.0
  %3959 = vmatpush1.msra.mxu0 0.0
  %3960 = vmatprep.subr.mxu0 0.0
  %3961 = vmatpush1.msra.mxu0 0.0
  %3962 = vmatprep.subr.mxu0 0.0
  %3963 = vmatpush1.msra.mxu0 0.0
  %3964 = vmatprep.subr.mxu0 0.0
  %3965 = vmatpush1.msra.mxu0 0.0
  %3966 = vmatprep.mubr.f32.mxu0 0.0
  %3967 = vmatmul.mubr.f32.gmra.mrb[0].mxu0 %v3817
  %v3968 = vpop.f32.mrb[0].mxu0
  %v3969 = vadd.f32 0.0, %v3968
  %v3970 = vpop.f32.mrb[0].mxu0
  %v3971 = vadd.f32 0.0, %v3970
  %3972 = vdwg.mxu0
  %3973 = vmatprep.subr.mxu0 %v3829
  %3974 = vmatpush1.msra.mxu0 %v3827
  %3975 = vmatprep.subr.mxu0 0.0
  %3976 = vmatpush1.msra.mxu0 0.0
  %3977 = vmatprep.subr.mxu0 0.0
  %3978 = vmatpush1.msra.mxu0 0.0
  %3979 = vmatprep.subr.mxu0 0.0
  %3980 = vmatpush1.msra.mxu0 0.0
  %3981 = vmatprep.subr.mxu0 0.0
  %3982 = vmatpush1.msra.mxu0 0.0
  %3983 = vmatprep.subr.mxu0 0.0
  %3984 = vmatpush1.msra.mxu0 0.0
  %3985 = vmatprep.subr.mxu0 0.0
  %3986 = vmatpush1.msra.mxu0 0.0
  %3987 = vmatprep.subr.mxu0 0.0
  %3988 = vmatpush1.msra.mxu0 0.0
  %3989 = vmatprep.subr.mxu0 0.0
  %3990 = vmatpush1.msra.mxu0 0.0
  %3991 = vmatprep.subr.mxu0 0.0
  %3992 = vmatpush1.msra.mxu0 0.0
  %3993 = vmatprep.subr.mxu0 0.0
  %3994 = vmatpush1.msra.mxu0 0.0
  %3995 = vmatprep.subr.mxu0 0.0
  %3996 = vmatpush1.msra.mxu0 0.0
  %3997 = vmatprep.subr.mxu0 0.0
  %3998 = vmatpush1.msra.mxu0 0.0
  %3999 = vmatprep.subr.mxu0 0.0
  %4000 = vmatpush1.msra.mxu0 0.0
  %4001 = vmatprep.subr.mxu0 0.0
  %4002 = vmatpush1.msra.mxu0 0.0
  %4003 = vmatprep.subr.mxu0 0.0
  %4004 = vmatpush1.msra.mxu0 0.0
  %4005 = vmatprep.subr.mxu0 0.0
  %4006 = vmatpush1.msra.mxu0 0.0
  %4007 = vmatprep.subr.mxu0 0.0
  %4008 = vmatpush1.msra.mxu0 0.0
  %4009 = vmatprep.subr.mxu0 0.0
  %4010 = vmatpush1.msra.mxu0 0.0
  %4011 = vmatprep.subr.mxu0 0.0
  %4012 = vmatpush1.msra.mxu0 0.0
  %4013 = vmatprep.subr.mxu0 0.0
  %4014 = vmatpush1.msra.mxu0 0.0
  %4015 = vmatprep.subr.mxu0 0.0
  %4016 = vmatpush1.msra.mxu0 0.0
  %4017 = vmatprep.subr.mxu0 0.0
  %4018 = vmatpush1.msra.mxu0 0.0
  %4019 = vmatprep.subr.mxu0 0.0
  %4020 = vmatpush1.msra.mxu0 0.0
  %4021 = vmatprep.subr.mxu0 0.0
  %4022 = vmatpush1.msra.mxu0 0.0
  %4023 = vmatprep.subr.mxu0 0.0
  %4024 = vmatpush1.msra.mxu0 0.0
  %4025 = vmatprep.subr.mxu0 0.0
  %4026 = vmatpush1.msra.mxu0 0.0
  %4027 = vmatprep.subr.mxu0 0.0
  %4028 = vmatpush1.msra.mxu0 0.0
  %4029 = vmatprep.subr.mxu0 0.0
  %4030 = vmatpush1.msra.mxu0 0.0
  %4031 = vmatprep.subr.mxu0 0.0
  %4032 = vmatpush1.msra.mxu0 0.0
  %4033 = vmatprep.subr.mxu0 0.0
  %4034 = vmatpush1.msra.mxu0 0.0
  %4035 = vmatprep.subr.mxu0 0.0
  %4036 = vmatpush1.msra.mxu0 0.0
  %4037 = vmatprep.mubr.f32.mxu0 0.0
  %4038 = vmatmul.mubr.f32.gmra.mrb[0].mxu0 %v3817
  %v4039 = vpop.f32.mrb[0].mxu0
  %v4040 = vadd.f32 0.0, %v4039
  %v4041 = vpop.f32.mrb[0].mxu0
  %v4042 = vadd.f32 0.0, %v4041
  %4043 = vdwg.mxu0
  %v4044 = vadd.f32 %v3791, %v3898
  %v4045 = vadd.f32 %v3792, %v3900
  %v4046 = vadd.f32 %v3793, %v3969
  %v4047 = vadd.f32 %v3794, %v3971
  %v4048 = vadd.f32 %v3795, %v4040
  %v4049 = vadd.f32 %v3796, %v4042
  %s4050 = scalar_lea.vmem %s4, 24
  %v4051 = vld [vmem:[%s4050] sm:$0xf]
  %4052 = vrot.lane.b32.xlu0 %v2550, 92
  %v4053 = vpop.permute.xlu0 %4052
  %4054 = vrot.lane.b32.xlu0 %v2551, 92
  %v4055 = vpop.permute.xlu0 %4054
  %4056 = vrot.lane.b32.xlu0 %v2552, 92
  %v4057 = vpop.permute.xlu0 %4056
  %4058 = vrot.lane.b32.xlu0 %v2553, 92
  %v4059 = vpop.permute.xlu0 %4058
  %4060 = vrot.lane.b32.xlu0 %v2554, 92
  %v4061 = vpop.permute.xlu0 %4060
  %4062 = vrot.lane.b32.xlu0 %v2555, 92
  %v4063 = vpop.permute.xlu0 %4062
  %v4064 = vsel %vm1606, %v4053, %v4055
  %v4065 = vsel %vm1606, %v4055, %v4057
  %v4066 = vsel %vm1606, %v4057, %v4059
  %v4067 = vsel %vm1606, %v4059, %v4061
  %v4068 = vsel %vm1606, %v4061, %v4063
  %v4070 = vsel %vm118, %v4051, 0
  %v4072 = vsel %vm122, %v4064, 0
  %v4074 = vsel %vm122, %v4065, 0
  %v4076 = vsel %vm122, %v4066, 0
  %v4078 = vsel %vm122, %v4067, 0
  %v4080 = vsel %vm122, %v4068, 0
  %v4082 = vsel %vm122, %v4063, 0
  %4084 = vmatprep.subr.mxu0 %v4074
  %4085 = vmatpush1.msra.mxu0 %v4072
  %4086 = vmatprep.subr.mxu0 0.0
  %4087 = vmatpush1.msra.mxu0 0.0
  %4088 = vmatprep.subr.mxu0 0.0
  %4089 = vmatpush1.msra.mxu0 0.0
  %4090 = vmatprep.subr.mxu0 0.0
  %4091 = vmatpush1.msra.mxu0 0.0
  %4092 = vmatprep.subr.mxu0 0.0
  %4093 = vmatpush1.msra.mxu0 0.0
  %4094 = vmatprep.subr.mxu0 0.0
  %4095 = vmatpush1.msra.mxu0 0.0
  %4096 = vmatprep.subr.mxu0 0.0
  %4097 = vmatpush1.msra.mxu0 0.0
  %4098 = vmatprep.subr.mxu0 0.0
  %4099 = vmatpush1.msra.mxu0 0.0
  %4100 = vmatprep.subr.mxu0 0.0
  %4101 = vmatpush1.msra.mxu0 0.0
  %4102 = vmatprep.subr.mxu0 0.0
  %4103 = vmatpush1.msra.mxu0 0.0
  %4104 = vmatprep.subr.mxu0 0.0
  %4105 = vmatpush1.msra.mxu0 0.0
  %4106 = vmatprep.subr.mxu0 0.0
  %4107 = vmatpush1.msra.mxu0 0.0
  %4108 = vmatprep.subr.mxu0 0.0
  %4109 = vmatpush1.msra.mxu0 0.0
  %4110 = vmatprep.subr.mxu0 0.0
  %4111 = vmatpush1.msra.mxu0 0.0
  %4112 = vmatprep.subr.mxu0 0.0
  %4113 = vmatpush1.msra.mxu0 0.0
  %4114 = vmatprep.subr.mxu0 0.0
  %4115 = vmatpush1.msra.mxu0 0.0
  %4116 = vmatprep.subr.mxu0 0.0
  %4117 = vmatpush1.msra.mxu0 0.0
  %4118 = vmatprep.subr.mxu0 0.0
  %4119 = vmatpush1.msra.mxu0 0.0
  %4120 = vmatprep.subr.mxu0 0.0
  %4121 = vmatpush1.msra.mxu0 0.0
  %4122 = vmatprep.subr.mxu0 0.0
  %4123 = vmatpush1.msra.mxu0 0.0
  %4124 = vmatprep.subr.mxu0 0.0
  %4125 = vmatpush1.msra.mxu0 0.0
  %4126 = vmatprep.subr.mxu0 0.0
  %4127 = vmatpush1.msra.mxu0 0.0
  %4128 = vmatprep.subr.mxu0 0.0
  %4129 = vmatpush1.msra.mxu0 0.0
  %4130 = vmatprep.subr.mxu0 0.0
  %4131 = vmatpush1.msra.mxu0 0.0
  %4132 = vmatprep.subr.mxu0 0.0
  %4133 = vmatpush1.msra.mxu0 0.0
  %4134 = vmatprep.subr.mxu0 0.0
  %4135 = vmatpush1.msra.mxu0 0.0
  %4136 = vmatprep.subr.mxu0 0.0
  %4137 = vmatpush1.msra.mxu0 0.0
  %4138 = vmatprep.subr.mxu0 0.0
  %4139 = vmatpush1.msra.mxu0 0.0
  %4140 = vmatprep.subr.mxu0 0.0
  %4141 = vmatpush1.msra.mxu0 0.0
  %4142 = vmatprep.subr.mxu0 0.0
  %4143 = vmatpush1.msra.mxu0 0.0
  %4144 = vmatprep.subr.mxu0 0.0
  %4145 = vmatpush1.msra.mxu0 0.0
  %4146 = vmatprep.subr.mxu0 0.0
  %4147 = vmatpush1.msra.mxu0 0.0
  %4148 = vmatprep.mubr.f32.mxu0 0.0
  %4149 = vmatmul.mubr.f32.gmra.mrb[0].mxu0 %v4070
  %v4150 = vpop.f32.mrb[0].mxu0
  %v4151 = vadd.f32 0.0, %v4150
  %v4152 = vpop.f32.mrb[0].mxu0
  %v4153 = vadd.f32 0.0, %v4152
  %4154 = vdwg.mxu0
  %4155 = vmatprep.subr.mxu0 %v4078
  %4156 = vmatpush1.msra.mxu0 %v4076
  %4157 = vmatprep.subr.mxu0 0.0
  %4158 = vmatpush1.msra.mxu0 0.0
  %4159 = vmatprep.subr.mxu0 0.0
  %4160 = vmatpush1.msra.mxu0 0.0
  %4161 = vmatprep.subr.mxu0 0.0
  %4162 = vmatpush1.msra.mxu0 0.0
  %4163 = vmatprep.subr.mxu0 0.0
  %4164 = vmatpush1.msra.mxu0 0.0
  %4165 = vmatprep.subr.mxu0 0.0
  %4166 = vmatpush1.msra.mxu0 0.0
  %4167 = vmatprep.subr.mxu0 0.0
  %4168 = vmatpush1.msra.mxu0 0.0
  %4169 = vmatprep.subr.mxu0 0.0
  %4170 = vmatpush1.msra.mxu0 0.0
  %4171 = vmatprep.subr.mxu0 0.0
  %4172 = vmatpush1.msra.mxu0 0.0
  %4173 = vmatprep.subr.mxu0 0.0
  %4174 = vmatpush1.msra.mxu0 0.0
  %4175 = vmatprep.subr.mxu0 0.0
  %4176 = vmatpush1.msra.mxu0 0.0
  %4177 = vmatprep.subr.mxu0 0.0
  %4178 = vmatpush1.msra.mxu0 0.0
  %4179 = vmatprep.subr.mxu0 0.0
  %4180 = vmatpush1.msra.mxu0 0.0
  %4181 = vmatprep.subr.mxu0 0.0
  %4182 = vmatpush1.msra.mxu0 0.0
  %4183 = vmatprep.subr.mxu0 0.0
  %4184 = vmatpush1.msra.mxu0 0.0
  %4185 = vmatprep.subr.mxu0 0.0
  %4186 = vmatpush1.msra.mxu0 0.0
  %4187 = vmatprep.subr.mxu0 0.0
  %4188 = vmatpush1.msra.mxu0 0.0
  %4189 = vmatprep.subr.mxu0 0.0
  %4190 = vmatpush1.msra.mxu0 0.0
  %4191 = vmatprep.subr.mxu0 0.0
  %4192 = vmatpush1.msra.mxu0 0.0
  %4193 = vmatprep.subr.mxu0 0.0
  %4194 = vmatpush1.msra.mxu0 0.0
  %4195 = vmatprep.subr.mxu0 0.0
  %4196 = vmatpush1.msra.mxu0 0.0
  %4197 = vmatprep.subr.mxu0 0.0
  %4198 = vmatpush1.msra.mxu0 0.0
  %4199 = vmatprep.subr.mxu0 0.0
  %4200 = vmatpush1.msra.mxu0 0.0
  %4201 = vmatprep.subr.mxu0 0.0
  %4202 = vmatpush1.msra.mxu0 0.0
  %4203 = vmatprep.subr.mxu0 0.0
  %4204 = vmatpush1.msra.mxu0 0.0
  %4205 = vmatprep.subr.mxu0 0.0
  %4206 = vmatpush1.msra.mxu0 0.0
  %4207 = vmatprep.subr.mxu0 0.0
  %4208 = vmatpush1.msra.mxu0 0.0
  %4209 = vmatprep.subr.mxu0 0.0
  %4210 = vmatpush1.msra.mxu0 0.0
  %4211 = vmatprep.subr.mxu0 0.0
  %4212 = vmatpush1.msra.mxu0 0.0
  %4213 = vmatprep.subr.mxu0 0.0
  %4214 = vmatpush1.msra.mxu0 0.0
  %4215 = vmatprep.subr.mxu0 0.0
  %4216 = vmatpush1.msra.mxu0 0.0
  %4217 = vmatprep.subr.mxu0 0.0
  %4218 = vmatpush1.msra.mxu0 0.0
  %4219 = vmatprep.mubr.f32.mxu0 0.0
  %4220 = vmatmul.mubr.f32.gmra.mrb[0].mxu0 %v4070
  %v4221 = vpop.f32.mrb[0].mxu0
  %v4222 = vadd.f32 0.0, %v4221
  %v4223 = vpop.f32.mrb[0].mxu0
  %v4224 = vadd.f32 0.0, %v4223
  %4225 = vdwg.mxu0
  %4226 = vmatprep.subr.mxu0 %v4082
  %4227 = vmatpush1.msra.mxu0 %v4080
  %4228 = vmatprep.subr.mxu0 0.0
  %4229 = vmatpush1.msra.mxu0 0.0
  %4230 = vmatprep.subr.mxu0 0.0
  %4231 = vmatpush1.msra.mxu0 0.0
  %4232 = vmatprep.subr.mxu0 0.0
  %4233 = vmatpush1.msra.mxu0 0.0
  %4234 = vmatprep.subr.mxu0 0.0
  %4235 = vmatpush1.msra.mxu0 0.0
  %4236 = vmatprep.subr.mxu0 0.0
  %4237 = vmatpush1.msra.mxu0 0.0
  %4238 = vmatprep.subr.mxu0 0.0
  %4239 = vmatpush1.msra.mxu0 0.0
  %4240 = vmatprep.subr.mxu0 0.0
  %4241 = vmatpush1.msra.mxu0 0.0
  %4242 = vmatprep.subr.mxu0 0.0
  %4243 = vmatpush1.msra.mxu0 0.0
  %4244 = vmatprep.subr.mxu0 0.0
  %4245 = vmatpush1.msra.mxu0 0.0
  %4246 = vmatprep.subr.mxu0 0.0
  %4247 = vmatpush1.msra.mxu0 0.0
  %4248 = vmatprep.subr.mxu0 0.0
  %4249 = vmatpush1.msra.mxu0 0.0
  %4250 = vmatprep.subr.mxu0 0.0
  %4251 = vmatpush1.msra.mxu0 0.0
  %4252 = vmatprep.subr.mxu0 0.0
  %4253 = vmatpush1.msra.mxu0 0.0
  %4254 = vmatprep.subr.mxu0 0.0
  %4255 = vmatpush1.msra.mxu0 0.0
  %4256 = vmatprep.subr.mxu0 0.0
  %4257 = vmatpush1.msra.mxu0 0.0
  %4258 = vmatprep.subr.mxu0 0.0
  %4259 = vmatpush1.msra.mxu0 0.0
  %4260 = vmatprep.subr.mxu0 0.0
  %4261 = vmatpush1.msra.mxu0 0.0
  %4262 = vmatprep.subr.mxu0 0.0
  %4263 = vmatpush1.msra.mxu0 0.0
  %4264 = vmatprep.subr.mxu0 0.0
  %4265 = vmatpush1.msra.mxu0 0.0
  %4266 = vmatprep.subr.mxu0 0.0
  %4267 = vmatpush1.msra.mxu0 0.0
  %4268 = vmatprep.subr.mxu0 0.0
  %4269 = vmatpush1.msra.mxu0 0.0
  %4270 = vmatprep.subr.mxu0 0.0
  %4271 = vmatpush1.msra.mxu0 0.0
  %4272 = vmatprep.subr.mxu0 0.0
  %4273 = vmatpush1.msra.mxu0 0.0
  %4274 = vmatprep.subr.mxu0 0.0
  %4275 = vmatpush1.msra.mxu0 0.0
  %4276 = vmatprep.subr.mxu0 0.0
  %4277 = vmatpush1.msra.mxu0 0.0
  %4278 = vmatprep.subr.mxu0 0.0
  %4279 = vmatpush1.msra.mxu0 0.0
  %4280 = vmatprep.subr.mxu0 0.0
  %4281 = vmatpush1.msra.mxu0 0.0
  %4282 = vmatprep.subr.mxu0 0.0
  %4283 = vmatpush1.msra.mxu0 0.0
  %4284 = vmatprep.subr.mxu0 0.0
  %4285 = vmatpush1.msra.mxu0 0.0
  %4286 = vmatprep.subr.mxu0 0.0
  %4287 = vmatpush1.msra.mxu0 0.0
  %4288 = vmatprep.subr.mxu0 0.0
  %4289 = vmatpush1.msra.mxu0 0.0
  %4290 = vmatprep.mubr.f32.mxu0 0.0
  %4291 = vmatmul.mubr.f32.gmra.mrb[0].mxu0 %v4070
  %v4292 = vpop.f32.mrb[0].mxu0
  %v4293 = vadd.f32 0.0, %v4292
  %v4294 = vpop.f32.mrb[0].mxu0
  %v4295 = vadd.f32 0.0, %v4294
  %4296 = vdwg.mxu0
  %v4297 = vadd.f32 %v4044, %v4151
  %v4298 = vadd.f32 %v4045, %v4153
  %v4299 = vadd.f32 %v4046, %v4222
  %v4300 = vadd.f32 %v4047, %v4224
  %v4301 = vadd.f32 %v4048, %v4293
  %v4302 = vadd.f32 %v4049, %v4295
  %s4303 = scalar_lea.vmem %s4, 28
  %v4304 = vld [vmem:[%s4303] sm:$0xf]
  %4305 = vrot.lane.b32.xlu0 %v2550, 91
  %v4306 = vpop.permute.xlu0 %4305
  %4307 = vrot.lane.b32.xlu0 %v2551, 91
  %v4308 = vpop.permute.xlu0 %4307
  %4309 = vrot.lane.b32.xlu0 %v2552, 91
  %v4310 = vpop.permute.xlu0 %4309
  %4311 = vrot.lane.b32.xlu0 %v2553, 91
  %v4312 = vpop.permute.xlu0 %4311
  %4313 = vrot.lane.b32.xlu0 %v2554, 91
  %v4314 = vpop.permute.xlu0 %4313
  %4315 = vrot.lane.b32.xlu0 %v2555, 91
  %v4316 = vpop.permute.xlu0 %4315
  %v4317 = vsel %vm1860, %v4306, %v4308
  %v4318 = vsel %vm1860, %v4308, %v4310
  %v4319 = vsel %vm1860, %v4310, %v4312
  %v4320 = vsel %vm1860, %v4312, %v4314
  %v4321 = vsel %vm1860, %v4314, %v4316
  %v4323 = vsel %vm118, %v4304, 0
  %v4325 = vsel %vm122, %v4317, 0
  %v4327 = vsel %vm122, %v4318, 0
  %v4329 = vsel %vm122, %v4319, 0
  %v4331 = vsel %vm122, %v4320, 0
  %v4333 = vsel %vm122, %v4321, 0
  %v4335 = vsel %vm122, %v4316, 0
  %4337 = vmatprep.subr.mxu0 %v4327
  %4338 = vmatpush1.msra.mxu0 %v4325
  %4339 = vmatprep.subr.mxu0 0.0
  %4340 = vmatpush1.msra.mxu0 0.0
  %4341 = vmatprep.subr.mxu0 0.0
  %4342 = vmatpush1.msra.mxu0 0.0
  %4343 = vmatprep.subr.mxu0 0.0
  %4344 = vmatpush1.msra.mxu0 0.0
  %4345 = vmatprep.subr.mxu0 0.0
  %4346 = vmatpush1.msra.mxu0 0.0
  %4347 = vmatprep.subr.mxu0 0.0
  %4348 = vmatpush1.msra.mxu0 0.0
  %4349 = vmatprep.subr.mxu0 0.0
  %4350 = vmatpush1.msra.mxu0 0.0
  %4351 = vmatprep.subr.mxu0 0.0
  %4352 = vmatpush1.msra.mxu0 0.0
  %4353 = vmatprep.subr.mxu0 0.0
  %4354 = vmatpush1.msra.mxu0 0.0
  %4355 = vmatprep.subr.mxu0 0.0
  %4356 = vmatpush1.msra.mxu0 0.0
  %4357 = vmatprep.subr.mxu0 0.0
  %4358 = vmatpush1.msra.mxu0 0.0
  %4359 = vmatprep.subr.mxu0 0.0
  %4360 = vmatpush1.msra.mxu0 0.0
  %4361 = vmatprep.subr.mxu0 0.0
  %4362 = vmatpush1.msra.mxu0 0.0
  %4363 = vmatprep.subr.mxu0 0.0
  %4364 = vmatpush1.msra.mxu0 0.0
  %4365 = vmatprep.subr.mxu0 0.0
  %4366 = vmatpush1.msra.mxu0 0.0
  %4367 = vmatprep.subr.mxu0 0.0
  %4368 = vmatpush1.msra.mxu0 0.0
  %4369 = vmatprep.subr.mxu0 0.0
  %4370 = vmatpush1.msra.mxu0 0.0
  %4371 = vmatprep.subr.mxu0 0.0
  %4372 = vmatpush1.msra.mxu0 0.0
  %4373 = vmatprep.subr.mxu0 0.0
  %4374 = vmatpush1.msra.mxu0 0.0
  %4375 = vmatprep.subr.mxu0 0.0
  %4376 = vmatpush1.msra.mxu0 0.0
  %4377 = vmatprep.subr.mxu0 0.0
  %4378 = vmatpush1.msra.mxu0 0.0
  %4379 = vmatprep.subr.mxu0 0.0
  %4380 = vmatpush1.msra.mxu0 0.0
  %4381 = vmatprep.subr.mxu0 0.0
  %4382 = vmatpush1.msra.mxu0 0.0
  %4383 = vmatprep.subr.mxu0 0.0
  %4384 = vmatpush1.msra.mxu0 0.0
  %4385 = vmatprep.subr.mxu0 0.0
  %4386 = vmatpush1.msra.mxu0 0.0
  %4387 = vmatprep.subr.mxu0 0.0
  %4388 = vmatpush1.msra.mxu0 0.0
  %4389 = vmatprep.subr.mxu0 0.0
  %4390 = vmatpush1.msra.mxu0 0.0
  %4391 = vmatprep.subr.mxu0 0.0
  %4392 = vmatpush1.msra.mxu0 0.0
  %4393 = vmatprep.subr.mxu0 0.0
  %4394 = vmatpush1.msra.mxu0 0.0
  %4395 = vmatprep.subr.mxu0 0.0
  %4396 = vmatpush1.msra.mxu0 0.0
  %4397 = vmatprep.subr.mxu0 0.0
  %4398 = vmatpush1.msra.mxu0 0.0
  %4399 = vmatprep.subr.mxu0 0.0
  %4400 = vmatpush1.msra.mxu0 0.0
  %4401 = vmatprep.mubr.f32.mxu0 0.0
  %4402 = vmatmul.mubr.f32.gmra.mrb[0].mxu0 %v4323
  %v4403 = vpop.f32.mrb[0].mxu0
  %v4404 = vadd.f32 0.0, %v4403
  %v4405 = vpop.f32.mrb[0].mxu0
  %v4406 = vadd.f32 0.0, %v4405
  %4407 = vdwg.mxu0
  %4408 = vmatprep.subr.mxu0 %v4331
  %4409 = vmatpush1.msra.mxu0 %v4329
  %4410 = vmatprep.subr.mxu0 0.0
  %4411 = vmatpush1.msra.mxu0 0.0
  %4412 = vmatprep.subr.mxu0 0.0
  %4413 = vmatpush1.msra.mxu0 0.0
  %4414 = vmatprep.subr.mxu0 0.0
  %4415 = vmatpush1.msra.mxu0 0.0
  %4416 = vmatprep.subr.mxu0 0.0
  %4417 = vmatpush1.msra.mxu0 0.0
  %4418 = vmatprep.subr.mxu0 0.0
  %4419 = vmatpush1.msra.mxu0 0.0
  %4420 = vmatprep.subr.mxu0 0.0
  %4421 = vmatpush1.msra.mxu0 0.0
  %4422 = vmatprep.subr.mxu0 0.0
  %4423 = vmatpush1.msra.mxu0 0.0
  %4424 = vmatprep.subr.mxu0 0.0
  %4425 = vmatpush1.msra.mxu0 0.0
  %4426 = vmatprep.subr.mxu0 0.0
  %4427 = vmatpush1.msra.mxu0 0.0
  %4428 = vmatprep.subr.mxu0 0.0
  %4429 = vmatpush1.msra.mxu0 0.0
  %4430 = vmatprep.subr.mxu0 0.0
  %4431 = vmatpush1.msra.mxu0 0.0
  %4432 = vmatprep.subr.mxu0 0.0
  %4433 = vmatpush1.msra.mxu0 0.0
  %4434 = vmatprep.subr.mxu0 0.0
  %4435 = vmatpush1.msra.mxu0 0.0
  %4436 = vmatprep.subr.mxu0 0.0
  %4437 = vmatpush1.msra.mxu0 0.0
  %4438 = vmatprep.subr.mxu0 0.0
  %4439 = vmatpush1.msra.mxu0 0.0
  %4440 = vmatprep.subr.mxu0 0.0
  %4441 = vmatpush1.msra.mxu0 0.0
  %4442 = vmatprep.subr.mxu0 0.0
  %4443 = vmatpush1.msra.mxu0 0.0
  %4444 = vmatprep.subr.mxu0 0.0
  %4445 = vmatpush1.msra.mxu0 0.0
  %4446 = vmatprep.subr.mxu0 0.0
  %4447 = vmatpush1.msra.mxu0 0.0
  %4448 = vmatprep.subr.mxu0 0.0
  %4449 = vmatpush1.msra.mxu0 0.0
  %4450 = vmatprep.subr.mxu0 0.0
  %4451 = vmatpush1.msra.mxu0 0.0
  %4452 = vmatprep.subr.mxu0 0.0
  %4453 = vmatpush1.msra.mxu0 0.0
  %4454 = vmatprep.subr.mxu0 0.0
  %4455 = vmatpush1.msra.mxu0 0.0
  %4456 = vmatprep.subr.mxu0 0.0
  %4457 = vmatpush1.msra.mxu0 0.0
  %4458 = vmatprep.subr.mxu0 0.0
  %4459 = vmatpush1.msra.mxu0 0.0
  %4460 = vmatprep.subr.mxu0 0.0
  %4461 = vmatpush1.msra.mxu0 0.0
  %4462 = vmatprep.subr.mxu0 0.0
  %4463 = vmatpush1.msra.mxu0 0.0
  %4464 = vmatprep.subr.mxu0 0.0
  %4465 = vmatpush1.msra.mxu0 0.0
  %4466 = vmatprep.subr.mxu0 0.0
  %4467 = vmatpush1.msra.mxu0 0.0
  %4468 = vmatprep.subr.mxu0 0.0
  %4469 = vmatpush1.msra.mxu0 0.0
  %4470 = vmatprep.subr.mxu0 0.0
  %4471 = vmatpush1.msra.mxu0 0.0
  %4472 = vmatprep.mubr.f32.mxu0 0.0
  %4473 = vmatmul.mubr.f32.gmra.mrb[0].mxu0 %v4323
  %v4474 = vpop.f32.mrb[0].mxu0
  %v4475 = vadd.f32 0.0, %v4474
  %v4476 = vpop.f32.mrb[0].mxu0
  %v4477 = vadd.f32 0.0, %v4476
  %4478 = vdwg.mxu0
  %4479 = vmatprep.subr.mxu0 %v4335
  %4480 = vmatpush1.msra.mxu0 %v4333
  %4481 = vmatprep.subr.mxu0 0.0
  %4482 = vmatpush1.msra.mxu0 0.0
  %4483 = vmatprep.subr.mxu0 0.0
  %4484 = vmatpush1.msra.mxu0 0.0
  %4485 = vmatprep.subr.mxu0 0.0
  %4486 = vmatpush1.msra.mxu0 0.0
  %4487 = vmatprep.subr.mxu0 0.0
  %4488 = vmatpush1.msra.mxu0 0.0
  %4489 = vmatprep.subr.mxu0 0.0
  %4490 = vmatpush1.msra.mxu0 0.0
  %4491 = vmatprep.subr.mxu0 0.0
  %4492 = vmatpush1.msra.mxu0 0.0
  %4493 = vmatprep.subr.mxu0 0.0
  %4494 = vmatpush1.msra.mxu0 0.0
  %4495 = vmatprep.subr.mxu0 0.0
  %4496 = vmatpush1.msra.mxu0 0.0
  %4497 = vmatprep.subr.mxu0 0.0
  %4498 = vmatpush1.msra.mxu0 0.0
  %4499 = vmatprep.subr.mxu0 0.0
  %4500 = vmatpush1.msra.mxu0 0.0
  %4501 = vmatprep.subr.mxu0 0.0
  %4502 = vmatpush1.msra.mxu0 0.0
  %4503 = vmatprep.subr.mxu0 0.0
  %4504 = vmatpush1.msra.mxu0 0.0
  %4505 = vmatprep.subr.mxu0 0.0
  %4506 = vmatpush1.msra.mxu0 0.0
  %4507 = vmatprep.subr.mxu0 0.0
  %4508 = vmatpush1.msra.mxu0 0.0
  %4509 = vmatprep.subr.mxu0 0.0
  %4510 = vmatpush1.msra.mxu0 0.0
  %4511 = vmatprep.subr.mxu0 0.0
  %4512 = vmatpush1.msra.mxu0 0.0
  %4513 = vmatprep.subr.mxu0 0.0
  %4514 = vmatpush1.msra.mxu0 0.0
  %4515 = vmatprep.subr.mxu0 0.0
  %4516 = vmatpush1.msra.mxu0 0.0
  %4517 = vmatprep.subr.mxu0 0.0
  %4518 = vmatpush1.msra.mxu0 0.0
  %4519 = vmatprep.subr.mxu0 0.0
  %4520 = vmatpush1.msra.mxu0 0.0
  %4521 = vmatprep.subr.mxu0 0.0
  %4522 = vmatpush1.msra.mxu0 0.0
  %4523 = vmatprep.subr.mxu0 0.0
  %4524 = vmatpush1.msra.mxu0 0.0
  %4525 = vmatprep.subr.mxu0 0.0
  %4526 = vmatpush1.msra.mxu0 0.0
  %4527 = vmatprep.subr.mxu0 0.0
  %4528 = vmatpush1.msra.mxu0 0.0
  %4529 = vmatprep.subr.mxu0 0.0
  %4530 = vmatpush1.msra.mxu0 0.0
  %4531 = vmatprep.subr.mxu0 0.0
  %4532 = vmatpush1.msra.mxu0 0.0
  %4533 = vmatprep.subr.mxu0 0.0
  %4534 = vmatpush1.msra.mxu0 0.0
  %4535 = vmatprep.subr.mxu0 0.0
  %4536 = vmatpush1.msra.mxu0 0.0
  %4537 = vmatprep.subr.mxu0 0.0
  %4538 = vmatpush1.msra.mxu0 0.0
  %4539 = vmatprep.subr.mxu0 0.0
  %4540 = vmatpush1.msra.mxu0 0.0
  %4541 = vmatprep.subr.mxu0 0.0
  %4542 = vmatpush1.msra.mxu0 0.0
  %4543 = vmatprep.mubr.f32.mxu0 0.0
  %4544 = vmatmul.mubr.f32.gmra.mrb[0].mxu0 %v4323
  %v4545 = vpop.f32.mrb[0].mxu0
  %v4546 = vadd.f32 0.0, %v4545
  %v4547 = vpop.f32.mrb[0].mxu0
  %v4548 = vadd.f32 0.0, %v4547
  %4549 = vdwg.mxu0
  %v4550 = vadd.f32 %v4297, %v4404
  %v4551 = vadd.f32 %v4298, %v4406
  %v4552 = vadd.f32 %v4299, %v4475
  %v4553 = vadd.f32 %v4300, %v4477
  %v4554 = vadd.f32 %v4301, %v4546
  %v4555 = vadd.f32 %v4302, %v4548
  %s4556 = scalar_lea.vmem %s4, 32
  %v4557 = vld [vmem:[%s4556] sm:$0xf]
  %4558 = vrot.lane.b32.xlu0 %v2550, 90
  %v4559 = vpop.permute.xlu0 %4558
  %4560 = vrot.lane.b32.xlu0 %v2551, 90
  %v4561 = vpop.permute.xlu0 %4560
  %4562 = vrot.lane.b32.xlu0 %v2552, 90
  %v4563 = vpop.permute.xlu0 %4562
  %4564 = vrot.lane.b32.xlu0 %v2553, 90
  %v4565 = vpop.permute.xlu0 %4564
  %4566 = vrot.lane.b32.xlu0 %v2554, 90
  %v4567 = vpop.permute.xlu0 %4566
  %4568 = vrot.lane.b32.xlu0 %v2555, 90
  %v4569 = vpop.permute.xlu0 %4568
  %v4570 = vsel %vm2114, %v4559, %v4561
  %v4571 = vsel %vm2114, %v4561, %v4563
  %v4572 = vsel %vm2114, %v4563, %v4565
  %v4573 = vsel %vm2114, %v4565, %v4567
  %v4574 = vsel %vm2114, %v4567, %v4569
  %v4576 = vsel %vm118, %v4557, 0
  %v4578 = vsel %vm122, %v4570, 0
  %v4580 = vsel %vm122, %v4571, 0
  %v4582 = vsel %vm122, %v4572, 0
  %v4584 = vsel %vm122, %v4573, 0
  %v4586 = vsel %vm122, %v4574, 0
  %v4588 = vsel %vm122, %v4569, 0
  %4590 = vmatprep.subr.mxu0 %v4580
  %4591 = vmatpush1.msra.mxu0 %v4578
  %4592 = vmatprep.subr.mxu0 0.0
  %4593 = vmatpush1.msra.mxu0 0.0
  %4594 = vmatprep.subr.mxu0 0.0
  %4595 = vmatpush1.msra.mxu0 0.0
  %4596 = vmatprep.subr.mxu0 0.0
  %4597 = vmatpush1.msra.mxu0 0.0
  %4598 = vmatprep.subr.mxu0 0.0
  %4599 = vmatpush1.msra.mxu0 0.0
  %4600 = vmatprep.subr.mxu0 0.0
  %4601 = vmatpush1.msra.mxu0 0.0
  %4602 = vmatprep.subr.mxu0 0.0
  %4603 = vmatpush1.msra.mxu0 0.0
  %4604 = vmatprep.subr.mxu0 0.0
  %4605 = vmatpush1.msra.mxu0 0.0
  %4606 = vmatprep.subr.mxu0 0.0
  %4607 = vmatpush1.msra.mxu0 0.0
  %4608 = vmatprep.subr.mxu0 0.0
  %4609 = vmatpush1.msra.mxu0 0.0
  %4610 = vmatprep.subr.mxu0 0.0
  %4611 = vmatpush1.msra.mxu0 0.0
  %4612 = vmatprep.subr.mxu0 0.0
  %4613 = vmatpush1.msra.mxu0 0.0
  %4614 = vmatprep.subr.mxu0 0.0
  %4615 = vmatpush1.msra.mxu0 0.0
  %4616 = vmatprep.subr.mxu0 0.0
  %4617 = vmatpush1.msra.mxu0 0.0
  %4618 = vmatprep.subr.mxu0 0.0
  %4619 = vmatpush1.msra.mxu0 0.0
  %4620 = vmatprep.subr.mxu0 0.0
  %4621 = vmatpush1.msra.mxu0 0.0
  %4622 = vmatprep.subr.mxu0 0.0
  %4623 = vmatpush1.msra.mxu0 0.0
  %4624 = vmatprep.subr.mxu0 0.0
  %4625 = vmatpush1.msra.mxu0 0.0
  %4626 = vmatprep.subr.mxu0 0.0
  %4627 = vmatpush1.msra.mxu0 0.0
  %4628 = vmatprep.subr.mxu0 0.0
  %4629 = vmatpush1.msra.mxu0 0.0
  %4630 = vmatprep.subr.mxu0 0.0
  %4631 = vmatpush1.msra.mxu0 0.0
  %4632 = vmatprep.subr.mxu0 0.0
  %4633 = vmatpush1.msra.mxu0 0.0
  %4634 = vmatprep.subr.mxu0 0.0
  %4635 = vmatpush1.msra.mxu0 0.0
  %4636 = vmatprep.subr.mxu0 0.0
  %4637 = vmatpush1.msra.mxu0 0.0
  %4638 = vmatprep.subr.mxu0 0.0
  %4639 = vmatpush1.msra.mxu0 0.0
  %4640 = vmatprep.subr.mxu0 0.0
  %4641 = vmatpush1.msra.mxu0 0.0
  %4642 = vmatprep.subr.mxu0 0.0
  %4643 = vmatpush1.msra.mxu0 0.0
  %4644 = vmatprep.subr.mxu0 0.0
  %4645 = vmatpush1.msra.mxu0 0.0
  %4646 = vmatprep.subr.mxu0 0.0
  %4647 = vmatpush1.msra.mxu0 0.0
  %4648 = vmatprep.subr.mxu0 0.0
  %4649 = vmatpush1.msra.mxu0 0.0
  %4650 = vmatprep.subr.mxu0 0.0
  %4651 = vmatpush1.msra.mxu0 0.0
  %4652 = vmatprep.subr.mxu0 0.0
  %4653 = vmatpush1.msra.mxu0 0.0
  %4654 = vmatprep.mubr.f32.mxu0 0.0
  %4655 = vmatmul.mubr.f32.gmra.mrb[0].mxu0 %v4576
  %v4656 = vpop.f32.mrb[0].mxu0
  %v4657 = vadd.f32 0.0, %v4656
  %v4658 = vpop.f32.mrb[0].mxu0
  %v4659 = vadd.f32 0.0, %v4658
  %4660 = vdwg.mxu0
  %4661 = vmatprep.subr.mxu0 %v4584
  %4662 = vmatpush1.msra.mxu0 %v4582
  %4663 = vmatprep.subr.mxu0 0.0
  %4664 = vmatpush1.msra.mxu0 0.0
  %4665 = vmatprep.subr.mxu0 0.0
  %4666 = vmatpush1.msra.mxu0 0.0
  %4667 = vmatprep.subr.mxu0 0.0
  %4668 = vmatpush1.msra.mxu0 0.0
  %4669 = vmatprep.subr.mxu0 0.0
  %4670 = vmatpush1.msra.mxu0 0.0
  %4671 = vmatprep.subr.mxu0 0.0
  %4672 = vmatpush1.msra.mxu0 0.0
  %4673 = vmatprep.subr.mxu0 0.0
  %4674 = vmatpush1.msra.mxu0 0.0
  %4675 = vmatprep.subr.mxu0 0.0
  %4676 = vmatpush1.msra.mxu0 0.0
  %4677 = vmatprep.subr.mxu0 0.0
  %4678 = vmatpush1.msra.mxu0 0.0
  %4679 = vmatprep.subr.mxu0 0.0
  %4680 = vmatpush1.msra.mxu0 0.0
  %4681 = vmatprep.subr.mxu0 0.0
  %4682 = vmatpush1.msra.mxu0 0.0
  %4683 = vmatprep.subr.mxu0 0.0
  %4684 = vmatpush1.msra.mxu0 0.0
  %4685 = vmatprep.subr.mxu0 0.0
  %4686 = vmatpush1.msra.mxu0 0.0
  %4687 = vmatprep.subr.mxu0 0.0
  %4688 = vmatpush1.msra.mxu0 0.0
  %4689 = vmatprep.subr.mxu0 0.0
  %4690 = vmatpush1.msra.mxu0 0.0
  %4691 = vmatprep.subr.mxu0 0.0
  %4692 = vmatpush1.msra.mxu0 0.0
  %4693 = vmatprep.subr.mxu0 0.0
  %4694 = vmatpush1.msra.mxu0 0.0
  %4695 = vmatprep.subr.mxu0 0.0
  %4696 = vmatpush1.msra.mxu0 0.0
  %4697 = vmatprep.subr.mxu0 0.0
  %4698 = vmatpush1.msra.mxu0 0.0
  %4699 = vmatprep.subr.mxu0 0.0
  %4700 = vmatpush1.msra.mxu0 0.0
  %4701 = vmatprep.subr.mxu0 0.0
  %4702 = vmatpush1.msra.mxu0 0.0
  %4703 = vmatprep.subr.mxu0 0.0
  %4704 = vmatpush1.msra.mxu0 0.0
  %4705 = vmatprep.subr.mxu0 0.0
  %4706 = vmatpush1.msra.mxu0 0.0
  %4707 = vmatprep.subr.mxu0 0.0
  %4708 = vmatpush1.msra.mxu0 0.0
  %4709 = vmatprep.subr.mxu0 0.0
  %4710 = vmatpush1.msra.mxu0 0.0
  %4711 = vmatprep.subr.mxu0 0.0
  %4712 = vmatpush1.msra.mxu0 0.0
  %4713 = vmatprep.subr.mxu0 0.0
  %4714 = vmatpush1.msra.mxu0 0.0
  %4715 = vmatprep.subr.mxu0 0.0
  %4716 = vmatpush1.msra.mxu0 0.0
  %4717 = vmatprep.subr.mxu0 0.0
  %4718 = vmatpush1.msra.mxu0 0.0
  %4719 = vmatprep.subr.mxu0 0.0
  %4720 = vmatpush1.msra.mxu0 0.0
  %4721 = vmatprep.subr.mxu0 0.0
  %4722 = vmatpush1.msra.mxu0 0.0
  %4723 = vmatprep.subr.mxu0 0.0
  %4724 = vmatpush1.msra.mxu0 0.0
  %4725 = vmatprep.mubr.f32.mxu0 0.0
  %4726 = vmatmul.mubr.f32.gmra.mrb[0].mxu0 %v4576
  %v4727 = vpop.f32.mrb[0].mxu0
  %v4728 = vadd.f32 0.0, %v4727
  %v4729 = vpop.f32.mrb[0].mxu0
  %v4730 = vadd.f32 0.0, %v4729
  %4731 = vdwg.mxu0
  %4732 = vmatprep.subr.mxu0 %v4588
  %4733 = vmatpush1.msra.mxu0 %v4586
  %4734 = vmatprep.subr.mxu0 0.0
  %4735 = vmatpush1.msra.mxu0 0.0
  %4736 = vmatprep.subr.mxu0 0.0
  %4737 = vmatpush1.msra.mxu0 0.0
  %4738 = vmatprep.subr.mxu0 0.0
  %4739 = vmatpush1.msra.mxu0 0.0
  %4740 = vmatprep.subr.mxu0 0.0
  %4741 = vmatpush1.msra.mxu0 0.0
  %4742 = vmatprep.subr.mxu0 0.0
  %4743 = vmatpush1.msra.mxu0 0.0
  %4744 = vmatprep.subr.mxu0 0.0
  %4745 = vmatpush1.msra.mxu0 0.0
  %4746 = vmatprep.subr.mxu0 0.0
  %4747 = vmatpush1.msra.mxu0 0.0
  %4748 = vmatprep.subr.mxu0 0.0
  %4749 = vmatpush1.msra.mxu0 0.0
  %4750 = vmatprep.subr.mxu0 0.0
  %4751 = vmatpush1.msra.mxu0 0.0
  %4752 = vmatprep.subr.mxu0 0.0
  %4753 = vmatpush1.msra.mxu0 0.0
  %4754 = vmatprep.subr.mxu0 0.0
  %4755 = vmatpush1.msra.mxu0 0.0
  %4756 = vmatprep.subr.mxu0 0.0
  %4757 = vmatpush1.msra.mxu0 0.0
  %4758 = vmatprep.subr.mxu0 0.0
  %4759 = vmatpush1.msra.mxu0 0.0
  %4760 = vmatprep.subr.mxu0 0.0
  %4761 = vmatpush1.msra.mxu0 0.0
  %4762 = vmatprep.subr.mxu0 0.0
  %4763 = vmatpush1.msra.mxu0 0.0
  %4764 = vmatprep.subr.mxu0 0.0
  %4765 = vmatpush1.msra.mxu0 0.0
  %4766 = vmatprep.subr.mxu0 0.0
  %4767 = vmatpush1.msra.mxu0 0.0
  %4768 = vmatprep.subr.mxu0 0.0
  %4769 = vmatpush1.msra.mxu0 0.0
  %4770 = vmatprep.subr.mxu0 0.0
  %4771 = vmatpush1.msra.mxu0 0.0
  %4772 = vmatprep.subr.mxu0 0.0
  %4773 = vmatpush1.msra.mxu0 0.0
  %4774 = vmatprep.subr.mxu0 0.0
  %4775 = vmatpush1.msra.mxu0 0.0
  %4776 = vmatprep.subr.mxu0 0.0
  %4777 = vmatpush1.msra.mxu0 0.0
  %4778 = vmatprep.subr.mxu0 0.0
  %4779 = vmatpush1.msra.mxu0 0.0
  %4780 = vmatprep.subr.mxu0 0.0
  %4781 = vmatpush1.msra.mxu0 0.0
  %4782 = vmatprep.subr.mxu0 0.0
  %4783 = vmatpush1.msra.mxu0 0.0
  %4784 = vmatprep.subr.mxu0 0.0
  %4785 = vmatpush1.msra.mxu0 0.0
  %4786 = vmatprep.subr.mxu0 0.0
  %4787 = vmatpush1.msra.mxu0 0.0
  %4788 = vmatprep.subr.mxu0 0.0
  %4789 = vmatpush1.msra.mxu0 0.0
  %4790 = vmatprep.subr.mxu0 0.0
  %4791 = vmatpush1.msra.mxu0 0.0
  %4792 = vmatprep.subr.mxu0 0.0
  %4793 = vmatpush1.msra.mxu0 0.0
  %4794 = vmatprep.subr.mxu0 0.0
  %4795 = vmatpush1.msra.mxu0 0.0
  %4796 = vmatprep.mubr.f32.mxu0 0.0
  %4797 = vmatmul.mubr.f32.gmra.mrb[0].mxu0 %v4576
  %v4798 = vpop.f32.mrb[0].mxu0
  %v4799 = vadd.f32 0.0, %v4798
  %v4800 = vpop.f32.mrb[0].mxu0
  %v4801 = vadd.f32 0.0, %v4800
  %4802 = vdwg.mxu0
  %v4803 = vadd.f32 %v4550, %v4657
  %v4804 = vadd.f32 %v4551, %v4659
  %v4805 = vadd.f32 %v4552, %v4728
  %v4806 = vadd.f32 %v4553, %v4730
  %v4807 = vadd.f32 %v4554, %v4799
  %v4808 = vadd.f32 %v4555, %v4801
  %v4809 = vmax.f32 %v4803, 0.0
  %v4810 = vmax.f32 %v4804, 0.0
  %v4811 = vmax.f32 %v4805, 0.0
  %v4812 = vmax.f32 %v4806, 0.0
  %v4813 = vmax.f32 %v4807, 0.0
  %v4814 = vmax.f32 %v4808, 0.0
  %4815 = vrot.lane.b32.xlu0 %v2364, 90
  %v4816 = vpop.permute.xlu0 %4815
  %4817 = vrot.lane.b32.xlu0 %v2368, 90
  %v4818 = vpop.permute.xlu0 %4817
  %4819 = vrot.lane.b32.xlu0 %v2372, 90
  %v4820 = vpop.permute.xlu0 %4819
  %4821 = vrot.lane.b32.xlu0 %v2376, 90
  %v4822 = vpop.permute.xlu0 %4821
  %4823 = vrot.lane.b32.xlu0 %v2380, 90
  %v4824 = vpop.permute.xlu0 %4823
  %4825 = vrot.lane.b32.xlu0 %v2384, 90
  %v4826 = vpop.permute.xlu0 %4825
  %v4827 = vsel %vm2114, %v4816, %v4818
  %v4828 = vsel %vm2114, %v4818, %v4820
  %v4829 = vsel %vm2114, %v4820, %v4822
  %v4830 = vsel %vm2114, %v4822, %v4824
  %v4831 = vsel %vm2114, %v4824, %v4826
  %v4838 = vmul.f32 %v4809, %v4827
  %v4839 = vmul.f32 %v4810, %v4828
  %v4840 = vmul.f32 %v4811, %v4829
  %v4841 = vmul.f32 %v4812, %v4830
  %v4842 = vmul.f32 %v4813, %v4831
  %v4843 = vmul.f32 %v4814, %v4826
  %vm4844 = vcmask 1043456
  %v4845 = vsel %vm4844, %v4838, 0.0
  %v4846 = vsel %vm4844, %v4839, 0.0
  %v4847 = vadd.f32 %v4845, %v4846
  %v4848 = vsel %vm4844, %v4840, 0.0
  %v4849 = vadd.f32 %v4847, %v4848
  %v4850 = vsel %vm4844, %v4841, 0.0
  %v4851 = vadd.f32 %v4849, %v4850
  %v4852 = vsel %vm4844, %v4842, 0.0
  %v4853 = vadd.f32 %v4851, %v4852
  %vm4854 = vcmask 60416
  %v4855 = vsel %vm4854, %v4843, 0.0
  %v4856 = vadd.f32 %v4853, %v4855
  %4857 = vadd.xlane.f32.xlu0 %v4856
  %v4858 = vpop.xlane.xlu0 %4857
  %v4859 = vmul.f32 %v4838, %v4838
  %v4860 = vmul.f32 %v4839, %v4839
  %v4861 = vmul.f32 %v4840, %v4840
  %v4862 = vmul.f32 %v4841, %v4841
  %v4863 = vmul.f32 %v4842, %v4842
  %v4864 = vmul.f32 %v4843, %v4843
  %v4865 = vsel %vm4844, %v4859, 0.0
  %v4866 = vsel %vm4844, %v4860, 0.0
  %v4867 = vadd.f32 %v4865, %v4866
  %v4868 = vsel %vm4844, %v4861, 0.0
  %v4869 = vadd.f32 %v4867, %v4868
  %v4870 = vsel %vm4844, %v4862, 0.0
  %v4871 = vadd.f32 %v4869, %v4870
  %v4872 = vsel %vm4844, %v4863, 0.0
  %v4873 = vadd.f32 %v4871, %v4872
  %v4874 = vsel %vm4854, %v4864, 0.0
  %v4875 = vadd.f32 %v4873, %v4874
  %4876 = vadd.xlane.f32.xlu0 %v4875
  %v4877 = vpop.xlane.xlu0 %4876
  %v4878 = vmul.f32 %v4858, 0.001953125
  %v4879 = vmul.f32 %v4877, 0.001953125
  %v4880 = vmul.f32 %v4878, %v4878
  %v4881 = vsub.f32 %v4879, %v4880
  %v4882 = vld [vmem:[%s7] sm:$0xf]
  %v4883 = vadd.f32 %v4881, 1e-05
  %v4884 = vrsqrt.pop %v4883
  %v4885 = vmul.f32 %v4882, %v4884
  %v4886 = vld [vmem:[%s8] sm:$0xf]
  %v4887 = vmul.f32 %v4878, %v4885
  %v4888 = vsub.f32 %v4886, %v4887
  %4890 = vset.pattern.permute.xlu0 0
  %4891 = vperm.xlu0 %4890, %v4885
  %v4892 = vpop.permute.xlu0 %4891
  %v4894 = vmul.f32 %v4838, %v4892
  %v4895 = vmul.f32 %v4839, %v4892
  %v4896 = vmul.f32 %v4840, %v4892
  %v4897 = vmul.f32 %v4841, %v4892
  %v4898 = vmul.f32 %v4842, %v4892
  %v4899 = vmul.f32 %v4843, %v4892
  %4901 = vset.pattern.permute.xlu0 0
  %4902 = vperm.xlu0 %4901, %v4888
  %v4903 = vpop.permute.xlu0 %4902
  %v4905 = vmul.f32 %v4903, %v2364
  %v4906 = vmul.f32 %v4903, %v2368
  %v4907 = vmul.f32 %v4903, %v2372
  %v4908 = vmul.f32 %v4903, %v2376
  %v4909 = vmul.f32 %v4903, %v2380
  %v4910 = vmul.f32 %v4903, %v2384
  %4917 = vrot.lane.b32.xlu0 %v4905, 90
  %v4918 = vpop.permute.xlu0 %4917
  %4919 = vrot.lane.b32.xlu0 %v4906, 90
  %v4920 = vpop.permute.xlu0 %4919
  %4921 = vrot.lane.b32.xlu0 %v4907, 90
  %v4922 = vpop.permute.xlu0 %4921
  %4923 = vrot.lane.b32.xlu0 %v4908, 90
  %v4924 = vpop.permute.xlu0 %4923
  %4925 = vrot.lane.b32.xlu0 %v4909, 90
  %v4926 = vpop.permute.xlu0 %4925
  %4927 = vrot.lane.b32.xlu0 %v4910, 90
  %v4928 = vpop.permute.xlu0 %4927
  %v4929 = vsel %vm2114, %v4918, %v4920
  %v4930 = vsel %vm2114, %v4920, %v4922
  %v4931 = vsel %vm2114, %v4922, %v4924
  %v4932 = vsel %vm2114, %v4924, %v4926
  %v4933 = vsel %vm2114, %v4926, %v4928
  %v4940 = vadd.f32 %v4894, %v4929
  %v4941 = vadd.f32 %v4895, %v4930
  %v4942 = vadd.f32 %v4896, %v4931
  %v4943 = vadd.f32 %v4897, %v4932
  %v4944 = vadd.f32 %v4898, %v4933
  %v4945 = vadd.f32 %v4899, %v4928
  %v4952 = vcombine.low %v4940, %v4941
  %v4953 = vcombine.low %v4942, %v4943
  %v4954 = vcombine.low %v4944, %v4945
  %4958 = vst [vmem:[%s9] sm:$0xff] %v4952
  %4959 = vst [vmem:[%s9 + $0x8] sm:$0xff] %v4953
  %vm4960 = vcmask 64516
  %vm4961 = vmor %vm4960, %vm4844
  %4962 = vst.msk [vmem:[%s9 + $0x10] sm:$0xff] %vm4961, %v4954
  // Predicated region
  $region38: #{conv_odef_forward.1} parent=0 // pred_check
    _
  $region39: #{conv_odef_forward.1} parent=0 // pred_check_branch
    %4964 = sbr.rel (0) target = $region41
  $region40: #{conv_odef_forward.1} parent=0 // pred_region
    _
  $region41: #{conv_odef_forward.1} parent=0 // pred_fallthru
    _
  // Predicated region
  $region42: #{conv_odef_forward.1} parent=0 // pred_check
    _
  $region43: #{conv_odef_forward.1} parent=0 // pred_check_branch
    %4966 = sbr.rel (0) target = $region45
  $region44: #{conv_odef_forward.1} parent=0 // pred_region
    _
  $region45: #{conv_odef_forward.1} parent=0 // pred_fallthru
    _

</llo_original>
